<compile_context>
chip_gen: v7x
topology: tpu7x:2x2x1
jax: 0.10.0
libtpu: 0.0.40
codegen_flags: <defaults>
</compile_context>

<pallas_src>
import functools

import jax
import jax.numpy as jnp
from jax import lax
from jax.experimental import pallas as pl
from jax.experimental.pallas import tpu as pltpu

EPS = 1e-5                  # PyTorch BatchNorm3d default
LANE = 128                  # lane width / channel padding granularity
_MiB = 1024 * 1024
_TARGET_M = 512             # target rows*W (M) per MXU matmul
_ACC_BYTES = 512 * 1024     # cap on the f32 row-chunk accumulator scratch


def _round_up(x, m):
    return (x + m - 1) // m * m


def _row_chunk(H, W, Cp):
    """Rows per in-kernel chunk: aim for M ~= _TARGET_M, bound the f32 acc."""
    r_m = max(1, _TARGET_M // max(W, 1))
    r_acc = max(1, _ACC_BYTES // (W * Cp * 4))
    return max(1, min(H, r_m, r_acc))


def _vmem_budget_bytes():
    """Generation-aware VMEM budget (~70% of per-core VMEM, clamped)."""
    cap = 64 * _MiB                       # conservative fallback (v7x per-TC)
    try:
        cap = int(pltpu.get_tpu_info().vmem_capacity_bytes)
    except Exception:
        pass
    return int(max(32 * _MiB, min(cap * 7 // 10, 96 * _MiB)))


# ----------------------------------------------------------------------------
# In-kernel helpers
# ----------------------------------------------------------------------------
def _zero_halo_rows(ref, tb, H, W):
    """Zero only the two halo rows of slice `tb` (columns are baked into the
    interior stores, the interior itself is fully rewritten every visit)."""
    Cp = ref.shape[-1]
    z = jnp.zeros((1, W + 2, Cp), ref.dtype)
    ref[tb, 0:1, :, :] = z
    ref[tb, H + 1:H + 2, :, :] = z


def _pad_cols(h, W):
    """(rr, W, Cp) -> (rr, W+2, Cp) with zero edge columns (aligned stores)."""
    z = jnp.zeros((h.shape[0], 1, h.shape[2]), h.dtype)
    return jnp.concatenate([z, h, z], axis=1)


def _conv3x3_chunk(src_ref, w_ref, acc_ref, tb, r0, rr, W, Cp):
    """1x3x3 conv for output rows [r0, r0+rr) of slice `tb`.

    src_ref: (TB, H+2, W+2, Cp) halo scratch in the compute dtype.
    w_ref:   (3, 3*Cp, Cp) BN-folded weight, the 3 column taps stacked along K.
    acc_ref: (R, W, Cp) f32 VMEM accumulator; result left in acc_ref[0:rr].
    Per dh the row window is loaded once (offset 0, full width); the three
    column shifts are value slices concatenated along channels, giving one
    K = 3*Cp MXU matmul per dh (3 matmuls per chunk instead of 9).
    """
    for dh in range(3):
        win = src_ref[tb, r0 + dh:r0 + dh + rr, :, :]
        lhs = jnp.concatenate(
            [win[:, 0:W, :], win[:, 1:W + 1, :], win[:, 2:W + 2, :]], axis=-1)
        part = lax.dot_general(lhs, w_ref[dh], (((2,), (0,)), ((), ())),
                               preferred_element_type=jnp.float32)
        if dh == 0:
            acc_ref[0:rr, :, :] = part
        else:
            acc_ref[0:rr, :, :] += part


def _make_bottleneck_kernel(TB, H, W, Cp, R):
    """Fused 1x1x1 -> 1x3x3 -> 1x1x1 (+ residual, + ReLU), BN folded."""

    def kernel(x_ref, w11_ref, b11_ref, w12_ref, b12_ref, w13_ref, b13_ref,
               o_ref, xpad_ref, acc_ref):
        f32 = jnp.float32

        def tb_body(tb, carry):
            _zero_halo_rows(xpad_ref, tb, H, W)

            # stage 1: pointwise conv + BN + ReLU -> halo interior
            for r0 in range(0, H, R):
                rr = min(R, H - r0)
                h = lax.dot_general(x_ref[tb, r0:r0 + rr, :, :], w11_ref[...],
                                    (((2,), (0,)), ((), ())),
                                    preferred_element_type=f32)
                h = jnp.maximum(h + b11_ref[...], 0.0)
                xpad_ref[tb, 1 + r0:1 + r0 + rr, :, :] = _pad_cols(
                    h.astype(xpad_ref.dtype), W)

            # stage 2+3: 3x3 conv + BN + ReLU, then pointwise + BN + res + ReLU
            for r0 in range(0, H, R):
                rr = min(R, H - r0)
                _conv3x3_chunk(xpad_ref, w12_ref, acc_ref, tb, r0, rr, W, Cp)
                h2 = jnp.maximum(acc_ref[0:rr, :, :] + b12_ref[...], 0.0)
                h2 = h2.astype(w13_ref.dtype)
                out = lax.dot_general(h2, w13_ref[...], (((2,), (0,)), ((), ())),
                                      preferred_element_type=f32)
                out = out + b13_ref[...] + x_ref[tb, r0:r0 + rr, :, :].astype(f32)
                o_ref[tb, r0:r0 + rr, :, :] = (
                    jnp.maximum(out, 0.0).astype(o_ref.dtype))
            return carry

        lax.fori_loop(0, TB, tb_body, 0)

    return kernel


def _make_basic_kernel(TB, H, W, Cp, R):
    """Fused 1x3x3 -> 1x3x3 (+ residual, + ReLU), BN folded."""

    def kernel(x_ref, w21_ref, b21_ref, w22_ref, b22_ref, o_ref,
               xpad_ref, hpad_ref, acc_ref):
        f32 = jnp.float32

        def tb_body(tb, carry):
            _zero_halo_rows(xpad_ref, tb, H, W)
            _zero_halo_rows(hpad_ref, tb, H, W)

            # copy input into the first halo interior (aligned full-width rows)
            for r0 in range(0, H, R):
                rr = min(R, H - r0)
                xpad_ref[tb, 1 + r0:1 + r0 + rr, :, :] = _pad_cols(
                    x_ref[tb, r0:r0 + rr, :, :].astype(xpad_ref.dtype), W)

            # conv21 + BN + ReLU -> second halo interior
            for r0 in range(0, H, R):
                rr = min(R, H - r0)
                _conv3x3_chunk(xpad_ref, w21_ref, acc_ref, tb, r0, rr, W, Cp)
                h1 = jnp.maximum(acc_ref[0:rr, :, :] + b21_ref[...], 0.0)
                hpad_ref[tb, 1 + r0:1 + r0 + rr, :, :] = _pad_cols(
                    h1.astype(hpad_ref.dtype), W)

            # conv22 + BN + residual + ReLU -> output
            for r0 in range(0, H, R):
                rr = min(R, H - r0)
                _conv3x3_chunk(hpad_ref, w22_ref, acc_ref, tb, r0, rr, W, Cp)
                out = (acc_ref[0:rr, :, :] + b22_ref[...]
                       + x_ref[tb, r0:r0 + rr, :, :].astype(f32))
                o_ref[tb, r0:r0 + rr, :, :] = (
                    jnp.maximum(out, 0.0).astype(o_ref.dtype))
            return carry

        lax.fori_loop(0, TB, tb_body, 0)

    return kernel


# ----------------------------------------------------------------------------
# Parameters: raw (PyTorch layout) init, BN fold, padding / casting (done once)
# ----------------------------------------------------------------------------
def init_params(key, in_channels, out_channels):
    ks = jax.random.split(key, 10)

    def conv_w(k, c_out, c_in, kh, kw):
        # nn.Conv3d weight layout (Cout, Cin, kD=1, kH, kW)
        return 0.1 * jax.random.normal(k, (c_out, c_in, 1, kh, kw), jnp.float32)

    def bn_stats(k, c):
        g = 1.0 + 0.1 * jax.random.normal(k, (c,), jnp.float32)
        b = 0.1 * jax.random.normal(jax.random.fold_in(k, 1), (c,), jnp.float32)
        m = 0.05 * jax.random.normal(jax.random.fold_in(k, 2), (c,), jnp.float32)
        v = 0.5 + jnp.abs(jax.random.normal(jax.random.fold_in(k, 3), (c,),
                                            jnp.float32))
        return g, b, m, v

    return {
        "w11": conv_w(ks[0], out_channels, in_channels, 1, 1),
        "bn11": bn_stats(ks[1], out_channels),
        "w12": conv_w(ks[2], out_channels, out_channels, 3, 3),
        "bn12": bn_stats(ks[3], out_channels),
        "w13": conv_w(ks[4], out_channels, out_channels, 1, 1),
        "bn13": bn_stats(ks[5], out_channels),
        "w21": conv_w(ks[6], out_channels, in_channels, 3, 3),
        "bn21": bn_stats(ks[7], out_channels),
        "w22": conv_w(ks[8], out_channels, out_channels, 3, 3),
        "bn22": bn_stats(ks[9], out_channels),
    }


def _fold_bn(bn, eps=EPS):
    g, b, m, v = bn
    s = g / jnp.sqrt(v + eps)
    return s, b - m * s


def prepare_params(raw, compute_dtype=jnp.bfloat16):
    """Fold BN into conv weights, pad channels to LANE multiples, cast once."""
    def cp(n):
        return _round_up(n, LANE)

    def pw(w, bn):   # 1x1x1 conv -> (Cin_p, Cout_p), BN scale folded in
        s, bias = _fold_bn(bn)
        c_out, c_in = w.shape[0], w.shape[1]
        m = jnp.transpose(w[:, :, 0, 0, 0], (1, 0)) * s[None, :]
        m = jnp.pad(m, ((0, cp(c_in) - c_in), (0, cp(c_out) - c_out)))
        bias = jnp.pad(bias, (0, cp(c_out) - c_out)).reshape(1, -1)
        return m.astype(compute_dtype), bias.astype(jnp.float32)

    def sp(w, bn):   # 1x3x3 conv -> (3, 3*Cin_p, Cout_p), taps stacked along K
        s, bias = _fold_bn(bn)
        c_out, c_in = w.shape[0], w.shape[1]
        m = jnp.transpose(w[:, :, 0, :, :], (2, 3, 1, 0)) * s[None, None, None, :]
        m = jnp.pad(m, ((0, 0), (0, 0),
                        (0, cp(c_in) - c_in), (0, cp(c_out) - c_out)))
        m = m.reshape(3, 3 * cp(c_in), cp(c_out))
        bias = jnp.pad(bias, (0, cp(c_out) - c_out)).reshape(1, -1)
        return m.astype(compute_dtype), bias.astype(jnp.float32)

    p = {}
    p["w11"], p["b11"] = pw(raw["w11"], raw["bn11"])
    p["w12"], p["b12"] = sp(raw["w12"], raw["bn12"])
    p["w13"], p["b13"] = pw(raw["w13"], raw["bn13"])
    p["w21"], p["b21"] = sp(raw["w21"], raw["bn21"])
    p["w22"], p["b22"] = sp(raw["w22"], raw["bn22"])
    return p


# ----------------------------------------------------------------------------
# Forward
# ----------------------------------------------------------------------------
@functools.partial(jax.jit, static_argnames=("restype",))
def resblock_forward(x_ncdhw, prep, restype):
    N, C, D, H, W = x_ncdhw.shape
    B = N * D
    cdt = prep["w12"].dtype
    Cp = prep["w12"].shape[-1]
    assert Cp == _round_up(C, LANE), "residual requires in_channels == out_channels"
    cbytes = jnp.dtype(cdt).itemsize
    obytes = jnp.dtype(x_ncdhw.dtype).itemsize
    R = _row_chunk(H, W, Cp)

    # NCDHW -> channels-last (B = N*D, H, W, C), cast once.
    x = jnp.transpose(x_ncdhw, (0, 2, 3, 4, 1)).reshape(B, H, W, C).astype(cdt)

    if restype == "bottleneck":
        ws = [prep["w11"], prep["b11"], prep["w12"], prep["b12"],
              prep["w13"], prep["b13"]]
        n_halo = 1
    elif restype == "basic":
        ws = [prep["w21"], prep["b21"], prep["w22"], prep["b22"]]
        n_halo = 2
    else:
        raise ValueError(restype)

    # --- generation-aware tiling: slices per grid step (TB) ------------------
    budget = _vmem_budget_bytes()
    w_bytes = 2 * sum(int(a.size) * a.dtype.itemsize for a in ws)   # dbl-buffered
    acc_bytes = R * W * Cp * 4
    temp_bytes = R * W * Cp * 24 + 2 * _MiB       # in-kernel value temporaries
    per_slice = (2 * H * W * Cp * (cbytes + obytes)        # dbl-buffered in/out
                 + n_halo * (H + 2) * (W + 2) * Cp * cbytes)
    avail = budget - w_bytes - acc_bytes - temp_bytes
    TB = max(1, min(B, avail // per_slice))
    if B >= 2:                    # >=2 grid steps: pipelining + v7x 2-TC split
        TB = min(TB, -(-B // 2))
    TB = int(TB)
    B_pad = -(-B // TB) * TB
    vmem_limit = int(min(128 * _MiB,
                         max(budget, w_bytes + acc_bytes + temp_bytes + per_slice)))

    if Cp != C or B_pad != B:
        x = jnp.pad(x, ((0, B_pad - B), (0, 0), (0, 0), (0, Cp - C)))

    blk_io = pl.BlockSpec((TB, H, W, Cp), lambda i: (i, 0, 0, 0))

    def w_spec(a):
        return pl.BlockSpec(a.shape, lambda i, _nd=a.ndim: (0,) * _nd)

    scratch = ([pltpu.VMEM((TB, H + 2, W + 2, Cp), cdt) for _ in range(n_halo)]
               + [pltpu.VMEM((R, W, Cp), jnp.float32)])
    kernel = (_make_bottleneck_kernel if restype == "bottleneck"
              else _make_basic_kernel)(TB, H, W, Cp, R)

    out = pl.pallas_call(
        kernel,
        out_shape=jax.ShapeDtypeStruct((B_pad, H, W, Cp), x_ncdhw.dtype),
        grid=(B_pad // TB,),
        in_specs=[blk_io] + [w_spec(a) for a in ws],
        out_specs=blk_io,
        scratch_shapes=scratch,
        compiler_params=pltpu.CompilerParams(
            dimension_semantics=("parallel",),
            vmem_limit_bytes=vmem_limit),
    )(x, *ws)

    out = out[:B, :, :, :C].reshape(N, D, H, W, C)
    return jnp.transpose(out, (0, 4, 1, 2, 3))        # back to NCDHW


# ----------------------------------------------------------------------------
# Pure-JAX reference (f32, unfused) for correctness checking
# ----------------------------------------------------------------------------
def _conv2d_ref(x, w_hwio, pad):
    return jax.lax.conv_general_dilated(
        x, w_hwio, (1, 1), ((pad, pad), (pad, pad)),
        dimension_numbers=("NHWC", "HWIO", "NHWC"))


def resblock_ref(x_ncdhw, raw, restype):
    N, C, D, H, W = x_ncdhw.shape
    x = jnp.transpose(x_ncdhw, (0, 2, 3, 4, 1)).reshape(N * D, H, W, C)
    identity = x

    def bn(h, key):
        s, b = _fold_bn(raw[key])
        return h * s + b

    def pw_mat(w):
        return jnp.transpose(w[:, :, 0, 0, 0], (1, 0))

    def sp_mat(w):
        return jnp.transpose(w[:, :, 0, :, :], (2, 3, 1, 0))

    if restype == "bottleneck":
        h = jax.nn.relu(bn(x @ pw_mat(raw["w11"]), "bn11"))
        h = jax.nn.relu(bn(_conv2d_ref(h, sp_mat(raw["w12"]), 1), "bn12"))
        out = jax.nn.relu(bn(h @ pw_mat(raw["w13"]), "bn13") + identity)
    else:
        h = jax.nn.relu(bn(_conv2d_ref(x, sp_mat(raw["w21"]), 1), "bn21"))
        out = jax.nn.relu(bn(_conv2d_ref(h, sp_mat(raw["w22"]), 1), "bn22")
                          + identity)
    c = out.shape[-1]
    return jnp.transpose(out.reshape(N, D, H, W, c), (0, 4, 1, 2, 3))


# ----------------------------------------------------------------------------
if __name__ == "__main__":
    key = jax.random.PRNGKey(0)
    k_x, k_p = jax.random.split(key)

    # in_channels == out_channels (the module's residual add requires it)
    N, C, D, H, W = 2, 4, 2, 8, 8
    x = jax.random.normal(k_x, (N, C, D, H, W), jnp.float32)
    raw = init_params(k_p, in_channels=C, out_channels=C)

    ok = True
    for cdt, atol, rtol in ((jnp.float32, 1e-4, 1e-4),
                            (jnp.bfloat16, 3e-2, 3e-2)):
        prep = prepare_params(raw, compute_dtype=cdt)
        for restype in ("basic", "bottleneck"):
            out = jax.block_until_ready(resblock_forward(x, prep, restype))
            ref = resblock_ref(x, raw, restype)
            if not jnp.allclose(out, ref, atol=atol, rtol=rtol):
                ok = False
                print(f"MISMATCH restype={restype} dtype={jnp.dtype(cdt).name}: "
                      f"max err {float(jnp.max(jnp.abs(out - ref)))}")

    if ok:
        print("KERNEL_OK")
</pallas_src>

<mosaic_0001>
module attributes {stable_mosaic.version = 11 : i64} {
  func.func @kernel(%arg0: i32, %arg1: memref<2x8x8x128xf32, #tpu.memory_space<vmem>>, %arg2: memref<3x384x128xf32, #tpu.memory_space<vmem>>, %arg3: memref<1x128xf32, #tpu.memory_space<vmem>>, %arg4: memref<3x384x128xf32, #tpu.memory_space<vmem>>, %arg5: memref<1x128xf32, #tpu.memory_space<vmem>>, %arg6: memref<2x8x8x128xf32, #tpu.memory_space<vmem>>, %arg7: memref<2x10x10x128xf32, #tpu.memory_space<vmem>>, %arg8: memref<2x10x10x128xf32, #tpu.memory_space<vmem>>, %arg9: memref<8x8x128xf32, #tpu.memory_space<vmem>>) attributes {dimension_semantics = [#tpu.dimension_semantics<parallel>], iteration_bounds = array<i64: 2>, scalar_prefetch = 0 : i64, scratch_operands = 3 : i64, tpu.core_type = #tpu.core_type<tc>, window_params = [{transform_indices = @transform_0, window_bounds = array<i64: 2, 8, 8, 128>}, {pipeline_mode = #tpu.pipeline_mode<synchronous>, transform_indices = @transform_1, window_bounds = array<i64: 3, 384, 128>}, {pipeline_mode = #tpu.pipeline_mode<synchronous>, transform_indices = @transform_2, window_bounds = array<i64: 1, 128>}, {pipeline_mode = #tpu.pipeline_mode<synchronous>, transform_indices = @transform_3, window_bounds = array<i64: 3, 384, 128>}, {pipeline_mode = #tpu.pipeline_mode<synchronous>, transform_indices = @transform_4, window_bounds = array<i64: 1, 128>}, {transform_indices = @transform_5, window_bounds = array<i64: 2, 8, 8, 128>}]} {
    %c0_i32 = arith.constant 0 : i32
    %c2_i32 = arith.constant 2 : i32
    %0 = arith.addi %c0_i32, %c2_i32 : i32
    %c1_i32 = arith.constant 1 : i32
    scf.for %arg10 = %c0_i32 to %0 step %c1_i32  : i32 {
      %cst = arith.constant 0.000000e+00 : f32
      %1 = vector.broadcast %cst : f32 to vector<1x10x128xf32>
      %2 = arith.index_cast %arg10 : i32 to index
      %c0 = arith.constant 0 : index
      %c0_1 = arith.constant 0 : index
      %c0_2 = arith.constant 0 : index
      %3 = vector.load %arg7[%2, %c0, %c0_1, %c0_2] : memref<2x10x10x128xf32, #tpu.memory_space<vmem>>, vector<1x1x10x128xf32>
      %4 = vector.shape_cast %3 : vector<1x1x10x128xf32> to vector<1x10x128xf32>
      %5 = vector.shape_cast %1 : vector<1x10x128xf32> to vector<1x1x10x128xf32>
      tpu.vector_store %arg7[%2, %c0, %c0_1, %c0_2], %5 {strides = array<i32>} : memref<2x10x10x128xf32, #tpu.memory_space<vmem>>, vector<1x1x10x128xf32>,
      %6 = arith.index_cast %arg10 : i32 to index
      %c9 = arith.constant 9 : index
      %c0_3 = arith.constant 0 : index
      %c0_4 = arith.constant 0 : index
      %7 = vector.load %arg7[%6, %c9, %c0_3, %c0_4] : memref<2x10x10x128xf32, #tpu.memory_space<vmem>>, vector<1x1x10x128xf32>
      %8 = vector.shape_cast %7 : vector<1x1x10x128xf32> to vector<1x10x128xf32>
      %9 = vector.shape_cast %1 : vector<1x10x128xf32> to vector<1x1x10x128xf32>
      tpu.vector_store %arg7[%6, %c9, %c0_3, %c0_4], %9 {strides = array<i32>} : memref<2x10x10x128xf32, #tpu.memory_space<vmem>>, vector<1x1x10x128xf32>,
      %cst_5 = arith.constant 0.000000e+00 : f32
      %10 = vector.broadcast %cst_5 : f32 to vector<1x10x128xf32>
      %11 = arith.index_cast %arg10 : i32 to index
      %c0_6 = arith.constant 0 : index
      %c0_7 = arith.constant 0 : index
      %c0_8 = arith.constant 0 : index
      %12 = vector.load %arg8[%11, %c0_6, %c0_7, %c0_8] : memref<2x10x10x128xf32, #tpu.memory_space<vmem>>, vector<1x1x10x128xf32>
      %13 = vector.shape_cast %12 : vector<1x1x10x128xf32> to vector<1x10x128xf32>
      %14 = vector.shape_cast %10 : vector<1x10x128xf32> to vector<1x1x10x128xf32>
      tpu.vector_store %arg8[%11, %c0_6, %c0_7, %c0_8], %14 {strides = array<i32>} : memref<2x10x10x128xf32, #tpu.memory_space<vmem>>, vector<1x1x10x128xf32>,
      %15 = arith.index_cast %arg10 : i32 to index
      %c9_9 = arith.constant 9 : index
      %c0_10 = arith.constant 0 : index
      %c0_11 = arith.constant 0 : index
      %16 = vector.load %arg8[%15, %c9_9, %c0_10, %c0_11] : memref<2x10x10x128xf32, #tpu.memory_space<vmem>>, vector<1x1x10x128xf32>
      %17 = vector.shape_cast %16 : vector<1x1x10x128xf32> to vector<1x10x128xf32>
      %18 = vector.shape_cast %10 : vector<1x10x128xf32> to vector<1x1x10x128xf32>
      tpu.vector_store %arg8[%15, %c9_9, %c0_10, %c0_11], %18 {strides = array<i32>} : memref<2x10x10x128xf32, #tpu.memory_space<vmem>>, vector<1x1x10x128xf32>,
      %19 = arith.index_cast %arg10 : i32 to index
      %c0_12 = arith.constant 0 : index
      %c0_13 = arith.constant 0 : index
      %c0_14 = arith.constant 0 : index
      %20 = vector.load %arg1[%19, %c0_12, %c0_13, %c0_14] : memref<2x8x8x128xf32, #tpu.memory_space<vmem>>, vector<1x8x8x128xf32>
      %21 = vector.shape_cast %20 : vector<1x8x8x128xf32> to vector<8x8x128xf32>
      %cst_15 = arith.constant 0.000000e+00 : f32
      %22 = vector.broadcast %cst_15 : f32 to vector<8x1x128xf32>
      %23 = tpu.concatenate %22, %21, %22 in 1 : vector<8x1x128xf32>, vector<8x8x128xf32>, vector<8x1x128xf32> -> vector<8x10x128xf32>
      %24 = arith.index_cast %arg10 : i32 to index
      %c1 = arith.constant 1 : index
      %c0_16 = arith.constant 0 : index
      %c0_17 = arith.constant 0 : index
      %25 = vector.load %arg7[%24, %c1, %c0_16, %c0_17] : memref<2x10x10x128xf32, #tpu.memory_space<vmem>>, vector<1x8x10x128xf32>
      %26 = vector.shape_cast %25 : vector<1x8x10x128xf32> to vector<8x10x128xf32>
      %27 = vector.shape_cast %23 : vector<8x10x128xf32> to vector<1x8x10x128xf32>
      tpu.vector_store %arg7[%24, %c1, %c0_16, %c0_17], %27 {strides = array<i32>} : memref<2x10x10x128xf32, #tpu.memory_space<vmem>>, vector<1x8x10x128xf32>,
      %28 = arith.index_cast %arg10 : i32 to index
      %c0_18 = arith.constant 0 : index
      %c0_19 = arith.constant 0 : index
      %c0_20 = arith.constant 0 : index
      %29 = vector.load %arg7[%28, %c0_18, %c0_19, %c0_20] : memref<2x10x10x128xf32, #tpu.memory_space<vmem>>, vector<1x8x10x128xf32>
      %30 = vector.shape_cast %29 : vector<1x8x10x128xf32> to vector<8x10x128xf32>
      %31 = vector.extract_strided_slice %30 {offsets = [0, 0, 0], sizes = [8, 8, 128], strides = [1, 1, 1]} : vector<8x10x128xf32> to vector<8x8x128xf32>
      %32 = vector.extract_strided_slice %30 {offsets = [0, 1, 0], sizes = [8, 8, 128], strides = [1, 1, 1]} : vector<8x10x128xf32> to vector<8x8x128xf32>
      %33 = vector.extract_strided_slice %30 {offsets = [0, 2, 0], sizes = [8, 8, 128], strides = [1, 1, 1]} : vector<8x10x128xf32> to vector<8x8x128xf32>
      %34 = tpu.concatenate %31, %32, %33 in 2 : vector<8x8x128xf32>, vector<8x8x128xf32>, vector<8x8x128xf32> -> vector<8x8x384xf32>
      %c0_21 = arith.constant 0 : index
      %c0_22 = arith.constant 0 : index
      %c0_23 = arith.constant 0 : index
      %35 = vector.load %arg2[%c0_21, %c0_22, %c0_23] : memref<3x384x128xf32, #tpu.memory_space<vmem>>, vector<1x384x128xf32>
      %36 = vector.shape_cast %35 : vector<1x384x128xf32> to vector<384x128xf32>
      %cst_24 = arith.constant dense<0.000000e+00> : vector<8x8x128xf32>
      %37 = tpu.matmul %34, %36, %cst_24 {dimension_numbers = #tpu.dot_dimension_numbers<[2], [0], [0, 1], [1], [0, 0, 0, 1, 1, 1], [], []>} : vector<8x8x384xf32>, vector<384x128xf32>, vector<8x8x128xf32> -> vector<8x8x128xf32>
      %c0_25 = arith.constant 0 : index
      %c0_26 = arith.constant 0 : index
      %c0_27 = arith.constant 0 : index
      %38 = vector.load %arg9[%c0_25, %c0_26, %c0_27] : memref<8x8x128xf32, #tpu.memory_space<vmem>>, vector<8x8x128xf32>
      tpu.vector_store %arg9[%c0_25, %c0_26, %c0_27], %37 {strides = array<i32>} : memref<8x8x128xf32, #tpu.memory_space<vmem>>, vector<8x8x128xf32>,
      %39 = arith.index_cast %arg10 : i32 to index
      %c1_28 = arith.constant 1 : index
      %c0_29 = arith.constant 0 : index
      %c0_30 = arith.constant 0 : index
      %40 = vector.load %arg7[%39, %c1_28, %c0_29, %c0_30] : memref<2x10x10x128xf32, #tpu.memory_space<vmem>>, vector<1x8x10x128xf32>
      %41 = vector.shape_cast %40 : vector<1x8x10x128xf32> to vector<8x10x128xf32>
      %42 = vector.extract_strided_slice %41 {offsets = [0, 0, 0], sizes = [8, 8, 128], strides = [1, 1, 1]} : vector<8x10x128xf32> to vector<8x8x128xf32>
      %43 = vector.extract_strided_slice %41 {offsets = [0, 1, 0], sizes = [8, 8, 128], strides = [1, 1, 1]} : vector<8x10x128xf32> to vector<8x8x128xf32>
      %44 = vector.extract_strided_slice %41 {offsets = [0, 2, 0], sizes = [8, 8, 128], strides = [1, 1, 1]} : vector<8x10x128xf32> to vector<8x8x128xf32>
      %45 = tpu.concatenate %42, %43, %44 in 2 : vector<8x8x128xf32>, vector<8x8x128xf32>, vector<8x8x128xf32> -> vector<8x8x384xf32>
      %c1_31 = arith.constant 1 : index
      %c0_32 = arith.constant 0 : index
      %c0_33 = arith.constant 0 : index
      %46 = vector.load %arg2[%c1_31, %c0_32, %c0_33] : memref<3x384x128xf32, #tpu.memory_space<vmem>>, vector<1x384x128xf32>
      %47 = vector.shape_cast %46 : vector<1x384x128xf32> to vector<384x128xf32>
      %cst_34 = arith.constant dense<0.000000e+00> : vector<8x8x128xf32>
      %48 = tpu.matmul %45, %47, %cst_34 {dimension_numbers = #tpu.dot_dimension_numbers<[2], [0], [0, 1], [1], [0, 0, 0, 1, 1, 1], [], []>} : vector<8x8x384xf32>, vector<384x128xf32>, vector<8x8x128xf32> -> vector<8x8x128xf32>
      %c0_35 = arith.constant 0 : index
      %c0_36 = arith.constant 0 : index
      %c0_37 = arith.constant 0 : index
      %49 = vector.load %arg9[%c0_35, %c0_36, %c0_37] : memref<8x8x128xf32, #tpu.memory_space<vmem>>, vector<8x8x128xf32>
      %50 = arith.addf %49, %48 : vector<8x8x128xf32>
      %c0_38 = arith.constant 0 : index
      %c0_39 = arith.constant 0 : index
      %c0_40 = arith.constant 0 : index
      %51 = vector.load %arg9[%c0_38, %c0_39, %c0_40] : memref<8x8x128xf32, #tpu.memory_space<vmem>>, vector<8x8x128xf32>
      tpu.vector_store %arg9[%c0_38, %c0_39, %c0_40], %50 {strides = array<i32>} : memref<8x8x128xf32, #tpu.memory_space<vmem>>, vector<8x8x128xf32>,
      %52 = arith.index_cast %arg10 : i32 to index
      %c2 = arith.constant 2 : index
      %c0_41 = arith.constant 0 : index
      %c0_42 = arith.constant 0 : index
      %53 = vector.load %arg7[%52, %c2, %c0_41, %c0_42] : memref<2x10x10x128xf32, #tpu.memory_space<vmem>>, vector<1x8x10x128xf32>
      %54 = vector.shape_cast %53 : vector<1x8x10x128xf32> to vector<8x10x128xf32>
      %55 = vector.extract_strided_slice %54 {offsets = [0, 0, 0], sizes = [8, 8, 128], strides = [1, 1, 1]} : vector<8x10x128xf32> to vector<8x8x128xf32>
      %56 = vector.extract_strided_slice %54 {offsets = [0, 1, 0], sizes = [8, 8, 128], strides = [1, 1, 1]} : vector<8x10x128xf32> to vector<8x8x128xf32>
      %57 = vector.extract_strided_slice %54 {offsets = [0, 2, 0], sizes = [8, 8, 128], strides = [1, 1, 1]} : vector<8x10x128xf32> to vector<8x8x128xf32>
      %58 = tpu.concatenate %55, %56, %57 in 2 : vector<8x8x128xf32>, vector<8x8x128xf32>, vector<8x8x128xf32> -> vector<8x8x384xf32>
      %c2_43 = arith.constant 2 : index
      %c0_44 = arith.constant 0 : index
      %c0_45 = arith.constant 0 : index
      %59 = vector.load %arg2[%c2_43, %c0_44, %c0_45] : memref<3x384x128xf32, #tpu.memory_space<vmem>>, vector<1x384x128xf32>
      %60 = vector.shape_cast %59 : vector<1x384x128xf32> to vector<384x128xf32>
      %cst_46 = arith.constant dense<0.000000e+00> : vector<8x8x128xf32>
      %61 = tpu.matmul %58, %60, %cst_46 {dimension_numbers = #tpu.dot_dimension_numbers<[2], [0], [0, 1], [1], [0, 0, 0, 1, 1, 1], [], []>} : vector<8x8x384xf32>, vector<384x128xf32>, vector<8x8x128xf32> -> vector<8x8x128xf32>
      %c0_47 = arith.constant 0 : index
      %c0_48 = arith.constant 0 : index
      %c0_49 = arith.constant 0 : index
      %62 = vector.load %arg9[%c0_47, %c0_48, %c0_49] : memref<8x8x128xf32, #tpu.memory_space<vmem>>, vector<8x8x128xf32>
      %63 = arith.addf %62, %61 : vector<8x8x128xf32>
      %c0_50 = arith.constant 0 : index
      %c0_51 = arith.constant 0 : index
      %c0_52 = arith.constant 0 : index
      %64 = vector.load %arg9[%c0_50, %c0_51, %c0_52] : memref<8x8x128xf32, #tpu.memory_space<vmem>>, vector<8x8x128xf32>
      tpu.vector_store %arg9[%c0_50, %c0_51, %c0_52], %63 {strides = array<i32>} : memref<8x8x128xf32, #tpu.memory_space<vmem>>, vector<8x8x128xf32>,
      %c0_53 = arith.constant 0 : index
      %c0_54 = arith.constant 0 : index
      %c0_55 = arith.constant 0 : index
      %65 = vector.load %arg9[%c0_53, %c0_54, %c0_55] : memref<8x8x128xf32, #tpu.memory_space<vmem>>, vector<8x8x128xf32>
      %c0_56 = arith.constant 0 : index
      %c0_57 = arith.constant 0 : index
      %66 = vector.load %arg3[%c0_56, %c0_57] : memref<1x128xf32, #tpu.memory_space<vmem>>, vector<1x128xf32>
      %67 = vector.shape_cast %66 : vector<1x128xf32> to vector<1x1x128xf32>
      %68 = vector.broadcast %67 : vector<1x1x128xf32> to vector<8x8x128xf32>
      %69 = arith.addf %65, %68 : vector<8x8x128xf32>
      %cst_58 = arith.constant 0.000000e+00 : f32
      %70 = vector.broadcast %cst_58 : f32 to vector<8x8x128xf32>
      %71 = arith.maximumf %69, %70 : vector<8x8x128xf32>
      %cst_59 = arith.constant 0.000000e+00 : f32
      %72 = vector.broadcast %cst_59 : f32 to vector<8x1x128xf32>
      %73 = tpu.concatenate %72, %71, %72 in 1 : vector<8x1x128xf32>, vector<8x8x128xf32>, vector<8x1x128xf32> -> vector<8x10x128xf32>
      %74 = arith.index_cast %arg10 : i32 to index
      %c1_60 = arith.constant 1 : index
      %c0_61 = arith.constant 0 : index
      %c0_62 = arith.constant 0 : index
      %75 = vector.load %arg8[%74, %c1_60, %c0_61, %c0_62] : memref<2x10x10x128xf32, #tpu.memory_space<vmem>>, vector<1x8x10x128xf32>
      %76 = vector.shape_cast %75 : vector<1x8x10x128xf32> to vector<8x10x128xf32>
      %77 = vector.shape_cast %73 : vector<8x10x128xf32> to vector<1x8x10x128xf32>
      tpu.vector_store %arg8[%74, %c1_60, %c0_61, %c0_62], %77 {strides = array<i32>} : memref<2x10x10x128xf32, #tpu.memory_space<vmem>>, vector<1x8x10x128xf32>,
      %78 = arith.index_cast %arg10 : i32 to index
      %c0_63 = arith.constant 0 : index
      %c0_64 = arith.constant 0 : index
      %c0_65 = arith.constant 0 : index
      %79 = vector.load %arg8[%78, %c0_63, %c0_64, %c0_65] : memref<2x10x10x128xf32, #tpu.memory_space<vmem>>, vector<1x8x10x128xf32>
      %80 = vector.shape_cast %79 : vector<1x8x10x128xf32> to vector<8x10x128xf32>
      %81 = vector.extract_strided_slice %80 {offsets = [0, 0, 0], sizes = [8, 8, 128], strides = [1, 1, 1]} : vector<8x10x128xf32> to vector<8x8x128xf32>
      %82 = vector.extract_strided_slice %80 {offsets = [0, 1, 0], sizes = [8, 8, 128], strides = [1, 1, 1]} : vector<8x10x128xf32> to vector<8x8x128xf32>
      %83 = vector.extract_strided_slice %80 {offsets = [0, 2, 0], sizes = [8, 8, 128], strides = [1, 1, 1]} : vector<8x10x128xf32> to vector<8x8x128xf32>
      %84 = tpu.concatenate %81, %82, %83 in 2 : vector<8x8x128xf32>, vector<8x8x128xf32>, vector<8x8x128xf32> -> vector<8x8x384xf32>
      %c0_66 = arith.constant 0 : index
      %c0_67 = arith.constant 0 : index
      %c0_68 = arith.constant 0 : index
      %85 = vector.load %arg4[%c0_66, %c0_67, %c0_68] : memref<3x384x128xf32, #tpu.memory_space<vmem>>, vector<1x384x128xf32>
      %86 = vector.shape_cast %85 : vector<1x384x128xf32> to vector<384x128xf32>
      %cst_69 = arith.constant dense<0.000000e+00> : vector<8x8x128xf32>
      %87 = tpu.matmul %84, %86, %cst_69 {dimension_numbers = #tpu.dot_dimension_numbers<[2], [0], [0, 1], [1], [0, 0, 0, 1, 1, 1], [], []>} : vector<8x8x384xf32>, vector<384x128xf32>, vector<8x8x128xf32> -> vector<8x8x128xf32>
      %c0_70 = arith.constant 0 : index
      %c0_71 = arith.constant 0 : index
      %c0_72 = arith.constant 0 : index
      %88 = vector.load %arg9[%c0_70, %c0_71, %c0_72] : memref<8x8x128xf32, #tpu.memory_space<vmem>>, vector<8x8x128xf32>
      tpu.vector_store %arg9[%c0_70, %c0_71, %c0_72], %87 {strides = array<i32>} : memref<8x8x128xf32, #tpu.memory_space<vmem>>, vector<8x8x128xf32>,
      %89 = arith.index_cast %arg10 : i32 to index
      %c1_73 = arith.constant 1 : index
      %c0_74 = arith.constant 0 : index
      %c0_75 = arith.constant 0 : index
      %90 = vector.load %arg8[%89, %c1_73, %c0_74, %c0_75] : memref<2x10x10x128xf32, #tpu.memory_space<vmem>>, vector<1x8x10x128xf32>
      %91 = vector.shape_cast %90 : vector<1x8x10x128xf32> to vector<8x10x128xf32>
      %92 = vector.extract_strided_slice %91 {offsets = [0, 0, 0], sizes = [8, 8, 128], strides = [1, 1, 1]} : vector<8x10x128xf32> to vector<8x8x128xf32>
      %93 = vector.extract_strided_slice %91 {offsets = [0, 1, 0], sizes = [8, 8, 128], strides = [1, 1, 1]} : vector<8x10x128xf32> to vector<8x8x128xf32>
      %94 = vector.extract_strided_slice %91 {offsets = [0, 2, 0], sizes = [8, 8, 128], strides = [1, 1, 1]} : vector<8x10x128xf32> to vector<8x8x128xf32>
      %95 = tpu.concatenate %92, %93, %94 in 2 : vector<8x8x128xf32>, vector<8x8x128xf32>, vector<8x8x128xf32> -> vector<8x8x384xf32>
      %c1_76 = arith.constant 1 : index
      %c0_77 = arith.constant 0 : index
      %c0_78 = arith.constant 0 : index
      %96 = vector.load %arg4[%c1_76, %c0_77, %c0_78] : memref<3x384x128xf32, #tpu.memory_space<vmem>>, vector<1x384x128xf32>
      %97 = vector.shape_cast %96 : vector<1x384x128xf32> to vector<384x128xf32>
      %cst_79 = arith.constant dense<0.000000e+00> : vector<8x8x128xf32>
      %98 = tpu.matmul %95, %97, %cst_79 {dimension_numbers = #tpu.dot_dimension_numbers<[2], [0], [0, 1], [1], [0, 0, 0, 1, 1, 1], [], []>} : vector<8x8x384xf32>, vector<384x128xf32>, vector<8x8x128xf32> -> vector<8x8x128xf32>
      %c0_80 = arith.constant 0 : index
      %c0_81 = arith.constant 0 : index
      %c0_82 = arith.constant 0 : index
      %99 = vector.load %arg9[%c0_80, %c0_81, %c0_82] : memref<8x8x128xf32, #tpu.memory_space<vmem>>, vector<8x8x128xf32>
      %100 = arith.addf %99, %98 : vector<8x8x128xf32>
      %c0_83 = arith.constant 0 : index
      %c0_84 = arith.constant 0 : index
      %c0_85 = arith.constant 0 : index
      %101 = vector.load %arg9[%c0_83, %c0_84, %c0_85] : memref<8x8x128xf32, #tpu.memory_space<vmem>>, vector<8x8x128xf32>
      tpu.vector_store %arg9[%c0_83, %c0_84, %c0_85], %100 {strides = array<i32>} : memref<8x8x128xf32, #tpu.memory_space<vmem>>, vector<8x8x128xf32>,
      %102 = arith.index_cast %arg10 : i32 to index
      %c2_86 = arith.constant 2 : index
      %c0_87 = arith.constant 0 : index
      %c0_88 = arith.constant 0 : index
      %103 = vector.load %arg8[%102, %c2_86, %c0_87, %c0_88] : memref<2x10x10x128xf32, #tpu.memory_space<vmem>>, vector<1x8x10x128xf32>
      %104 = vector.shape_cast %103 : vector<1x8x10x128xf32> to vector<8x10x128xf32>
      %105 = vector.extract_strided_slice %104 {offsets = [0, 0, 0], sizes = [8, 8, 128], strides = [1, 1, 1]} : vector<8x10x128xf32> to vector<8x8x128xf32>
      %106 = vector.extract_strided_slice %104 {offsets = [0, 1, 0], sizes = [8, 8, 128], strides = [1, 1, 1]} : vector<8x10x128xf32> to vector<8x8x128xf32>
      %107 = vector.extract_strided_slice %104 {offsets = [0, 2, 0], sizes = [8, 8, 128], strides = [1, 1, 1]} : vector<8x10x128xf32> to vector<8x8x128xf32>
      %108 = tpu.concatenate %105, %106, %107 in 2 : vector<8x8x128xf32>, vector<8x8x128xf32>, vector<8x8x128xf32> -> vector<8x8x384xf32>
      %c2_89 = arith.constant 2 : index
      %c0_90 = arith.constant 0 : index
      %c0_91 = arith.constant 0 : index
      %109 = vector.load %arg4[%c2_89, %c0_90, %c0_91] : memref<3x384x128xf32, #tpu.memory_space<vmem>>, vector<1x384x128xf32>
      %110 = vector.shape_cast %109 : vector<1x384x128xf32> to vector<384x128xf32>
      %cst_92 = arith.constant dense<0.000000e+00> : vector<8x8x128xf32>
      %111 = tpu.matmul %108, %110, %cst_92 {dimension_numbers = #tpu.dot_dimension_numbers<[2], [0], [0, 1], [1], [0, 0, 0, 1, 1, 1], [], []>} : vector<8x8x384xf32>, vector<384x128xf32>, vector<8x8x128xf32> -> vector<8x8x128xf32>
      %c0_93 = arith.constant 0 : index
      %c0_94 = arith.constant 0 : index
      %c0_95 = arith.constant 0 : index
      %112 = vector.load %arg9[%c0_93, %c0_94, %c0_95] : memref<8x8x128xf32, #tpu.memory_space<vmem>>, vector<8x8x128xf32>
      %113 = arith.addf %112, %111 : vector<8x8x128xf32>
      %c0_96 = arith.constant 0 : index
      %c0_97 = arith.constant 0 : index
      %c0_98 = arith.constant 0 : index
      %114 = vector.load %arg9[%c0_96, %c0_97, %c0_98] : memref<8x8x128xf32, #tpu.memory_space<vmem>>, vector<8x8x128xf32>
      tpu.vector_store %arg9[%c0_96, %c0_97, %c0_98], %113 {strides = array<i32>} : memref<8x8x128xf32, #tpu.memory_space<vmem>>, vector<8x8x128xf32>,
      %c0_99 = arith.constant 0 : index
      %c0_100 = arith.constant 0 : index
      %c0_101 = arith.constant 0 : index
      %115 = vector.load %arg9[%c0_99, %c0_100, %c0_101] : memref<8x8x128xf32, #tpu.memory_space<vmem>>, vector<8x8x128xf32>
      %c0_102 = arith.constant 0 : index
      %c0_103 = arith.constant 0 : index
      %116 = vector.load %arg5[%c0_102, %c0_103] : memref<1x128xf32, #tpu.memory_space<vmem>>, vector<1x128xf32>
      %117 = vector.shape_cast %116 : vector<1x128xf32> to vector<1x1x128xf32>
      %118 = vector.broadcast %117 : vector<1x1x128xf32> to vector<8x8x128xf32>
      %119 = arith.addf %115, %118 : vector<8x8x128xf32>
      %120 = arith.index_cast %arg10 : i32 to index
      %c0_104 = arith.constant 0 : index
      %c0_105 = arith.constant 0 : index
      %c0_106 = arith.constant 0 : index
      %121 = vector.load %arg1[%120, %c0_104, %c0_105, %c0_106] : memref<2x8x8x128xf32, #tpu.memory_space<vmem>>, vector<1x8x8x128xf32>
      %122 = vector.shape_cast %121 : vector<1x8x8x128xf32> to vector<8x8x128xf32>
      %123 = arith.addf %119, %122 : vector<8x8x128xf32>
      %cst_107 = arith.constant 0.000000e+00 : f32
      %124 = vector.broadcast %cst_107 : f32 to vector<8x8x128xf32>
      %125 = arith.maximumf %123, %124 : vector<8x8x128xf32>
      %126 = arith.index_cast %arg10 : i32 to index
      %c0_108 = arith.constant 0 : index
      %c0_109 = arith.constant 0 : index
      %c0_110 = arith.constant 0 : index
      %127 = vector.load %arg6[%126, %c0_108, %c0_109, %c0_110] : memref<2x8x8x128xf32, #tpu.memory_space<vmem>>, vector<1x8x8x128xf32>
      %128 = vector.shape_cast %127 : vector<1x8x8x128xf32> to vector<8x8x128xf32>
      %129 = vector.shape_cast %125 : vector<8x8x128xf32> to vector<1x8x8x128xf32>
      tpu.vector_store %arg6[%126, %c0_108, %c0_109, %c0_110], %129 {strides = array<i32>} : memref<2x8x8x128xf32, #tpu.memory_space<vmem>>, vector<1x8x8x128xf32>,
    }
    %c2_i32_0 = arith.constant 2 : i32
    return
  }
  func.func @transform_0(%arg0: i32) -> (i32, i32, i32, i32) {
    %c0_i32 = arith.constant 0 : i32
    %c0_i32_0 = arith.constant 0 : i32
    %c0_i32_1 = arith.constant 0 : i32
    %c0_i32_2 = arith.constant 0 : i32
    return %arg0, %c0_i32, %c0_i32_0, %c0_i32_1 : i32, i32, i32, i32
  }
  func.func @transform_1(%arg0: i32) -> (i32, i32, i32) {
    %c0_i32 = arith.constant 0 : i32
    %c0_i32_0 = arith.constant 0 : i32
    %c0_i32_1 = arith.constant 0 : i32
    %c0_i32_2 = arith.constant 0 : i32
    return %c0_i32, %c0_i32_0, %c0_i32_1 : i32, i32, i32
  }
  func.func @transform_2(%arg0: i32) -> (i32, i32) {
    %c0_i32 = arith.constant 0 : i32
    %c0_i32_0 = arith.constant 0 : i32
    %c0_i32_1 = arith.constant 0 : i32
    return %c0_i32, %c0_i32_0 : i32, i32
  }
  func.func @transform_3(%arg0: i32) -> (i32, i32, i32) {
    %c0_i32 = arith.constant 0 : i32
    %c0_i32_0 = arith.constant 0 : i32
    %c0_i32_1 = arith.constant 0 : i32
    %c0_i32_2 = arith.constant 0 : i32
    return %c0_i32, %c0_i32_0, %c0_i32_1 : i32, i32, i32
  }
  func.func @transform_4(%arg0: i32) -> (i32, i32) {
    %c0_i32 = arith.constant 0 : i32
    %c0_i32_0 = arith.constant 0 : i32
    %c0_i32_1 = arith.constant 0 : i32
    return %c0_i32, %c0_i32_0 : i32, i32
  }
  func.func @transform_5(%arg0: i32) -> (i32, i32, i32, i32) {
    %c0_i32 = arith.constant 0 : i32
    %c0_i32_0 = arith.constant 0 : i32
    %c0_i32_1 = arith.constant 0 : i32
    %c0_i32_2 = arith.constant 0 : i32
    return %arg0, %c0_i32, %c0_i32_0, %c0_i32_1 : i32, i32, i32, i32
  }
}

</mosaic_0001>

<llo_original>
// kernel: resblock_forward.1
$region0: #{resblock_forward.1}
  #allocation0 [shape = 'u32[]', space=smem, size = 0x4, offset = 0x4, fixed_abs, tag = 'smem constant byte address 0x4 - core index']
  #allocation1 [shape = 'u32[144,128]{1,0:T(1,128)}', space=vmem, size = 0x12000, scoped, tag = 'internal scratch']
  #allocation2 [shape = 'f32[2,10,10,128]{3,2,1,0:T(8,128)}', space=vmem, size = 0x28000, scoped, tag = 'scratch operand']
  #allocation3 [shape = 'f32[2,10,10,128]{3,2,1,0:T(8,128)}', space=vmem, size = 0x28000, scoped, tag = 'scratch operand']
  #allocation4 [shape = 'f32[8,8,128]{2,1,0:T(8,128)}', space=vmem, size = 0x8000, scoped, tag = 'scratch operand']
  %s0 = inlined_call_operand.vmem [shape: f32[4,8,8,128], index: 0, kind: input, shape index: {}]
  %s1 = inlined_call_operand.hbm [shape: f32[3,384,128], index: 1, kind: input, shape index: {}]
  %s2 = inlined_call_operand.vmem [shape: f32[1,128], index: 2, kind: input, shape index: {}]
  %s3 = inlined_call_operand.hbm [shape: f32[3,384,128], index: 3, kind: input, shape index: {}]
  %s4 = inlined_call_operand.vmem [shape: f32[1,128], index: 4, kind: input, shape index: {}]
  %s5 = inlined_call_operand.vmem [shape: f32[4,8,8,128], index: 5, kind: output, shape index: {}]
  %s6 = sld [smem:[#allocation0]]
  $region68: #{resblock_forward.1} parent=0
    _
  %s8 = ssub.s32 1, %s6
  %s9 = scalar_select 0, %s8, %s6
  $region1: #{resblock_forward.1} parent=0
    #allocation5 [shape = 'u8[589824]{0}', space=vmem, size = 0x90000, scoped, tag = 'input window, operand 1, single buffered']
    #allocation6 [shape = 's32[2]{0}', space=sflag, size = 0x8, scoped, tag = 'scoped memory for resblock_forward.1']
    #allocation7 [shape = 'u8[589824]{0}', space=vmem, size = 0x90000, scoped, tag = 'input window, operand 3, single buffered']
    #allocation8 [shape = 's32[1]{0}', space=sflag, size = 0x4, scoped, tag = 'scoped memory for resblock_forward.1']
    %10 = vsyncpa [#allocation6], 0
    %11 = vsyncpa [#allocation8], 0
    loop: start=0, step=1, limit=4
    $region2: #{resblock_forward.1} parent=1 // loop_pre_header
      _
    $region3: #{resblock_forward.1} parent=1 // loop_header
      %s13 = sphi 0, %s17
      %p14 = scmp.ge.s32.totalorder %s13, 4
      %s23 = sphi 0, %s25
      %s26 = sphi 0, %s23
      %s27 = sphi 0, %s26
      %s43 = sphi 0, %s27
      %s47 = sphi 0, %s47
      %s49 = sphi 0, %s47
      %s50 = sphi 0, %s49
      %s64 = sphi 0, %s50
      %s68 = sphi 0, %s68
      %s70 = sphi 0, %s68
      %s71 = sphi 0, %s70
      %s85 = sphi 0, %s71
      %s89 = sphi 0, %s89
      %s91 = sphi 0, %s89
      %s92 = sphi 0, %s91
      %s106 = sphi 0, %s92
      %s110 = sphi 0, %s110
      %s112 = sphi 0, %s110
      %s113 = sphi 0, %s112
      %s127 = sphi 0, %s113
      %s133 = sphi 0, %s135
      %s136 = sphi 0, %s133
      %s137 = sphi 0, %s136
      %s153 = sphi 0, %s137
    $region4: #{resblock_forward.1} parent=1 // loop_header_branch
      %16 = sbr.rel (%p14) target = $region8
    $region5: #{resblock_forward.1} parent=1 // loop_body
      %s18 = ssub.s32 %s13, 1
      %s19 = ssub.s32 %s13, 2
      %s20 = sadd.s32 %s13, 1
      %s21 = ssub.s32 %s13, %s20
      %p22 = scmp.eq.s32.totalorder %s21, 0
      %s24 = sadd.s32 %s23, 1
      %s25 = scalar_select %p22, %s23, %s24
      %p28 = pneg %p22
      %p29 = scmp.eq.s32.totalorder %s13, 1
      %p30 = por %p28, %p29
      %p31 = scmp.ne.s32.totalorder %s23, %s26
      %p32 = scmp.eq.s32.totalorder %s13, 0
      %p33 = por %p31, %p32
      %p34 = scmp.ne.s32.totalorder %s23, %s26
      %p35 = scmp.eq.s32.totalorder %s18, 1
      %p36 = por %p34, %p35
      %p37 = scmp.ne.s32.totalorder %s26, %s27
      %p38 = scmp.eq.s32.totalorder %s18, 0
      %p39 = por %p37, %p38
      %p40 = scmp.ne.s32.totalorder %s26, %s27
      %p41 = scmp.eq.s32.totalorder %s19, 1
      %p42 = por %p40, %p41
      %p44 = scmp.ne.s32.totalorder %s27, %s43
      %p45 = scmp.eq.s32.totalorder %s19, 0
      %p46 = por %p44, %p45
      %s48 = sadd.s32 %s47, 1
      %p51 = scmp.eq.s32.totalorder %s13, 1
      %p52 = scmp.ne.s32.totalorder %s47, %s49
      %p53 = scmp.eq.s32.totalorder %s13, 0
      %p54 = por %p52, %p53
      %p55 = scmp.ne.s32.totalorder %s47, %s49
      %p56 = scmp.eq.s32.totalorder %s18, 1
      %p57 = por %p55, %p56
      %p58 = scmp.ne.s32.totalorder %s49, %s50
      %p59 = scmp.eq.s32.totalorder %s18, 0
      %p60 = por %p58, %p59
      %p61 = scmp.ne.s32.totalorder %s49, %s50
      %p62 = scmp.eq.s32.totalorder %s19, 1
      %p63 = por %p61, %p62
      %p65 = scmp.ne.s32.totalorder %s50, %s64
      %p66 = scmp.eq.s32.totalorder %s19, 0
      %p67 = por %p65, %p66
      %s69 = sadd.s32 %s68, 1
      %p72 = scmp.eq.s32.totalorder %s13, 1
      %p73 = scmp.ne.s32.totalorder %s68, %s70
      %p74 = scmp.eq.s32.totalorder %s13, 0
      %p75 = por %p73, %p74
      %p76 = scmp.ne.s32.totalorder %s68, %s70
      %p77 = scmp.eq.s32.totalorder %s18, 1
      %p78 = por %p76, %p77
      %p79 = scmp.ne.s32.totalorder %s70, %s71
      %p80 = scmp.eq.s32.totalorder %s18, 0
      %p81 = por %p79, %p80
      %p82 = scmp.ne.s32.totalorder %s70, %s71
      %p83 = scmp.eq.s32.totalorder %s19, 1
      %p84 = por %p82, %p83
      %p86 = scmp.ne.s32.totalorder %s71, %s85
      %p87 = scmp.eq.s32.totalorder %s19, 0
      %p88 = por %p86, %p87
      %s90 = sadd.s32 %s89, 1
      %p93 = scmp.eq.s32.totalorder %s13, 1
      %p94 = scmp.ne.s32.totalorder %s89, %s91
      %p95 = scmp.eq.s32.totalorder %s13, 0
      %p96 = por %p94, %p95
      %p97 = scmp.ne.s32.totalorder %s89, %s91
      %p98 = scmp.eq.s32.totalorder %s18, 1
      %p99 = por %p97, %p98
      %p100 = scmp.ne.s32.totalorder %s91, %s92
      %p101 = scmp.eq.s32.totalorder %s18, 0
      %p102 = por %p100, %p101
      %p103 = scmp.ne.s32.totalorder %s91, %s92
      %p104 = scmp.eq.s32.totalorder %s19, 1
      %p105 = por %p103, %p104
      %p107 = scmp.ne.s32.totalorder %s92, %s106
      %p108 = scmp.eq.s32.totalorder %s19, 0
      %p109 = por %p107, %p108
      %s111 = sadd.s32 %s110, 1
      %p114 = scmp.eq.s32.totalorder %s13, 1
      %p115 = scmp.ne.s32.totalorder %s110, %s112
      %p116 = scmp.eq.s32.totalorder %s13, 0
      %p117 = por %p115, %p116
      %p118 = scmp.ne.s32.totalorder %s110, %s112
      %p119 = scmp.eq.s32.totalorder %s18, 1
      %p120 = por %p118, %p119
      %p121 = scmp.ne.s32.totalorder %s112, %s113
      %p122 = scmp.eq.s32.totalorder %s18, 0
      %p123 = por %p121, %p122
      %p124 = scmp.ne.s32.totalorder %s112, %s113
      %p125 = scmp.eq.s32.totalorder %s19, 1
      %p126 = por %p124, %p125
      %p128 = scmp.ne.s32.totalorder %s113, %s127
      %p129 = scmp.eq.s32.totalorder %s19, 0
      %p130 = por %p128, %p129
      %s131 = ssub.s32 %s13, %s20
      %p132 = scmp.eq.s32.totalorder %s131, 0
      %s134 = sadd.s32 %s133, 1
      %s135 = scalar_select %p132, %s133, %s134
      %p138 = pneg %p132
      %p139 = scmp.eq.s32.totalorder %s13, 1
      %p140 = por %p138, %p139
      %p141 = scmp.ne.s32.totalorder %s133, %s136
      %p142 = scmp.eq.s32.totalorder %s13, 0
      %p143 = por %p141, %p142
      %p144 = scmp.ne.s32.totalorder %s133, %s136
      %p145 = scmp.eq.s32.totalorder %s18, 1
      %p146 = por %p144, %p145
      %p147 = scmp.ne.s32.totalorder %s136, %s137
      %p148 = scmp.eq.s32.totalorder %s18, 0
      %p149 = por %p147, %p148
      %p150 = scmp.ne.s32.totalorder %s136, %s137
      %p151 = scmp.eq.s32.totalorder %s19, 1
      %p152 = por %p150, %p151
      %p154 = scmp.ne.s32.totalorder %s137, %s153
      %p155 = scmp.eq.s32.totalorder %s19, 0
      %p156 = por %p154, %p155
      %p157 = scmp.le.s32.totalorder 1, %s13
      %p158 = scmp.lt.s32.totalorder %s13, 3
      %p159 = pnand %p157, %p158
      %p160 = pneg %p159
      // Predicated region
      $region9: #{resblock_forward.1} parent=5 // pred_check
        _
      $region10: #{resblock_forward.1} parent=5 // pred_check_branch
        %162 = sbr.rel (%p159) target = $region12
      $region11: #{resblock_forward.1} parent=5 // pred_region
        %s163 = ssub.s32 %s13, 1
        // Predicated region
        $region13: #{resblock_forward.1} parent=11 // pred_check
          %p164 = pneg %p60
        $region14: #{resblock_forward.1} parent=11 // pred_check_branch
          %166 = sbr.rel (%p164) target = $region16
        $region15: #{resblock_forward.1} parent=11 // pred_region
          %s168 = ssub.s32 18432, 18432
          %169 = vsyncadd [#allocation6], %s168
          %s170 = sshll.u32 [#allocation5], 4
          %s171 = int_to_ptr.vmem [resolvable:$true] %s170
          %176 = dma.hbm_to_vmem [thread:$0]  %s1, 18432, %s171, [#allocation6], 128, 128, 8
        $region16: #{resblock_forward.1} parent=11 // pred_fallthru
          _
        // Predicated region
        $region17: #{resblock_forward.1} parent=11 // pred_check
          %p177 = pneg %p81
        $region18: #{resblock_forward.1} parent=11 // pred_check_branch
          %179 = sbr.rel (%p177) target = $region20
        $region19: #{resblock_forward.1} parent=11 // pred_region
          _
        $region20: #{resblock_forward.1} parent=11 // pred_fallthru
          _
        // Predicated region
        $region21: #{resblock_forward.1} parent=11 // pred_check
          %p180 = pneg %p102
        $region22: #{resblock_forward.1} parent=11 // pred_check_branch
          %182 = sbr.rel (%p180) target = $region24
        $region23: #{resblock_forward.1} parent=11 // pred_region
          %s184 = ssub.s32 18432, 18432
          %185 = vsyncadd [#allocation8], %s184
          %s186 = sshll.u32 [#allocation7], 4
          %s187 = int_to_ptr.vmem [resolvable:$true] %s186
          %192 = dma.hbm_to_vmem [thread:$0]  %s3, 18432, %s187, [#allocation8], 128, 128, 8
        $region24: #{resblock_forward.1} parent=11 // pred_fallthru
          _
        // Predicated region
        $region25: #{resblock_forward.1} parent=11 // pred_check
          %p193 = pneg %p123
        $region26: #{resblock_forward.1} parent=11 // pred_check_branch
          %195 = sbr.rel (%p193) target = $region28
        $region27: #{resblock_forward.1} parent=11 // pred_region
          _
        $region28: #{resblock_forward.1} parent=11 // pred_fallthru
          _
      $region12: #{resblock_forward.1} parent=5 // pred_fallthru
        _
      %p196 = scmp.lt.s32.totalorder %s13, 2
      // Predicated region
      $region29: #{resblock_forward.1} parent=5 // pred_check
        %p197 = pneg %p196
      $region30: #{resblock_forward.1} parent=5 // pred_check_branch
        %199 = sbr.rel (%p197) target = $region32
      $region31: #{resblock_forward.1} parent=5 // pred_region
        // Predicated region
        $region33: #{resblock_forward.1} parent=31 // pred_check
          %p200 = pneg %p33
        $region34: #{resblock_forward.1} parent=31 // pred_check_branch
          %202 = sbr.rel (%p200) target = $region36
        $region35: #{resblock_forward.1} parent=31 // pred_region
          %s203 = smul.u32 2, %s13
          %p204 = scmp.lt.s32.totalorder %s203, 3
          %s205 = scalar_select %p204, %s203, 3
          %s206 = smul.addr %s205, 8
          %s207 = smul.addr %s206, 8
          %s208 = scalar_lea.vmem %s0, %s207
          %s209 = smul.u32 2, %s13
        $region36: #{resblock_forward.1} parent=31 // pred_fallthru
          _
      $region32: #{resblock_forward.1} parent=5 // pred_fallthru
        _
      %p210 = scmp.le.s32.totalorder 1, %s13
      %p211 = scmp.lt.s32.totalorder %s13, 3
      %p212 = pnand %p210, %p211
      %p213 = pneg %p212
      // Predicated region
      $region37: #{resblock_forward.1} parent=5 // pred_check
        _
      $region38: #{resblock_forward.1} parent=5 // pred_check_branch
        %215 = sbr.rel (%p212) target = $region40
      $region39: #{resblock_forward.1} parent=5 // pred_region
        %s216 = ssub.s32 %s13, 1
        // Predicated region
        $region41: #{resblock_forward.1} parent=39 // pred_check
          %p217 = pneg %p60
        $region42: #{resblock_forward.1} parent=39 // pred_check_branch
          %219 = sbr.rel (%p217) target = $region44
        $region43: #{resblock_forward.1} parent=39 // pred_region
          %220 = dma.done [#allocation6], 18432
        $region44: #{resblock_forward.1} parent=39 // pred_fallthru
          _
        // Predicated region
        $region45: #{resblock_forward.1} parent=39 // pred_check
          %p221 = pneg %p102
        $region46: #{resblock_forward.1} parent=39 // pred_check_branch
          %223 = sbr.rel (%p221) target = $region48
        $region47: #{resblock_forward.1} parent=39 // pred_region
          %224 = dma.done [#allocation8], 18432
        $region48: #{resblock_forward.1} parent=39 // pred_fallthru
          _
        %s225 = smul.u32 2, %s18
        %p226 = scmp.lt.s32.totalorder %s225, 3
        %s227 = scalar_select %p226, %s225, 3
        %s228 = smul.addr %s227, 8
        %s229 = smul.addr %s228, 8
        %s230 = scalar_lea.vmem %s0, %s229
        %p231 = pneg %p39
        %p232 = pneg %p36
        %p233 = pneg %p60
        %p234 = pneg %p57
        %p235 = pneg %p81
        %p236 = pneg %p78
        %p237 = pneg %p102
        %p238 = pneg %p99
        %p239 = pneg %p123
        %p240 = pneg %p120
        %p241 = pneg %p149
        %p242 = pneg %p146
        %s243 = smul.u32 2, %s18
        %p244 = scmp.lt.s32.totalorder %s243, 3
        %s245 = scalar_select %p244, %s243, 3
        %s246 = smul.addr %s245, 8
        %s247 = smul.addr %s246, 8
        %s248 = scalar_lea.vmem %s5, %s247
        %s249 = smul.u32 2, %s18
        %p250 = scmp.lt.s32.totalorder %s249, 3
        %s251 = scalar_select %p250, %s249, 3
        %s252 = smul.addr %s251, 8
        %s253 = smul.addr %s252, 8
        %s254 = scalar_lea.vmem %s0, %s253
        %s255 = smul.u32 2, %s18
        %s256 = smul.u32 2, %s18
        %p257 = scmp.lt.s32.totalorder %s256, 3
        %s258 = scalar_select %p257, %s256, 3
        %s259 = smul.addr %s258, 8
        %s260 = smul.addr %s259, 8
        %s261 = scalar_lea.vmem %s5, %s260
        %s262 = smul.u32 2, %s18
        loop: start=0, step=1, limit=2
        $region49: #{resblock_forward.1} parent=39 // loop_pre_header
          _
        $region50: #{resblock_forward.1} parent=39 // loop_header
          %s264 = sphi 0, %s268
          %p265 = scmp.ge.s32.totalorder %s264, 2
        $region51: #{resblock_forward.1} parent=39 // loop_header_branch
          %267 = sbr.rel (%p265) target = $region55
        $region52: #{resblock_forward.1} parent=39 // loop_body
          %s269 = smul.u32 %s264, 160
          %s270 = scalar_lea.vmem [#allocation2], %s269
          %271 = vst [vmem:[%s270] sm:$0xff] 0.0
          %272 = vst [vmem:[%s270 + $0x8] sm:$0x3] 0.0
          %s273 = sadd.s32 144, %s269
          %s274 = scalar_lea.vmem [#allocation2], %s273
          %275 = vst [vmem:[%s274] sm:$0xff] 0.0
          %276 = vst [vmem:[%s274 + $0x8] sm:$0x3] 0.0
          %s277 = scalar_lea.vmem [#allocation3], %s269
          %278 = vst [vmem:[%s277] sm:$0xff] 0.0
          %279 = vst [vmem:[%s277 + $0x8] sm:$0x3] 0.0
          %s280 = scalar_lea.vmem [#allocation3], %s273
          %281 = vst [vmem:[%s280] sm:$0xff] 0.0
          %282 = vst [vmem:[%s280 + $0x8] sm:$0x3] 0.0
          %s283 = smul.u32 %s264, 64
          %s284 = scalar_lea.vmem %s254, %s283
          %v285 = vld [vmem:[%s284] sm:$0xff]
          %v286 = vld [vmem:[%s284 + $0x8] sm:$0xff]
          %v287 = vld [vmem:[%s284 + $0x10] sm:$0xff]
          %v288 = vld [vmem:[%s284 + $0x18] sm:$0xff]
          %v289 = vld [vmem:[%s284 + $0x20] sm:$0xff]
          %v290 = vld [vmem:[%s284 + $0x28] sm:$0xff]
          %v291 = vld [vmem:[%s284 + $0x30] sm:$0xff]
          %v292 = vld [vmem:[%s284 + $0x38] sm:$0xff]
          %v301 = vrot.slane %v285, 7
          %v302 = vrot.slane %v286, 7
          %v303 = vrot.slane %v287, 7
          %v304 = vrot.slane %v288, 7
          %v305 = vrot.slane %v289, 7
          %v306 = vrot.slane %v290, 7
          %v307 = vrot.slane %v291, 7
          %v308 = vrot.slane %v292, 7
          %vm317 = vcmask 1040384
          %v318 = vsel %vm317, 0.0, %v301
          %v319 = vsel %vm317, 0.0, %v302
          %v320 = vsel %vm317, 0.0, %v303
          %v321 = vsel %vm317, 0.0, %v304
          %v322 = vsel %vm317, 0.0, %v305
          %v323 = vsel %vm317, 0.0, %v306
          %v324 = vsel %vm317, 0.0, %v307
          %v325 = vsel %vm317, 0.0, %v308
          %v326 = vsel %vm317, %v301, 0.0
          %v327 = vsel %vm317, %v302, 0.0
          %v328 = vsel %vm317, %v303, 0.0
          %v329 = vsel %vm317, %v304, 0.0
          %v330 = vsel %vm317, %v305, 0.0
          %v331 = vsel %vm317, %v306, 0.0
          %v332 = vsel %vm317, %v307, 0.0
          %v333 = vsel %vm317, %v308, 0.0
          %s334 = sadd.s32 16, %s269
          %s335 = scalar_lea.vmem [#allocation2], %s334
          %336 = vst [vmem:[%s335] sm:$0xff] %v318
          %337 = vst [vmem:[%s335 + $0x8] sm:$0x3] %v326
          %338 = vst [vmem:[%s335 + $0x10] sm:$0xff] %v319
          %339 = vst [vmem:[%s335 + $0x18] sm:$0x3] %v327
          %340 = vst [vmem:[%s335 + $0x20] sm:$0xff] %v320
          %341 = vst [vmem:[%s335 + $0x28] sm:$0x3] %v328
          %342 = vst [vmem:[%s335 + $0x30] sm:$0xff] %v321
          %343 = vst [vmem:[%s335 + $0x38] sm:$0x3] %v329
          %344 = vst [vmem:[%s335 + $0x40] sm:$0xff] %v322
          %345 = vst [vmem:[%s335 + $0x48] sm:$0x3] %v330
          %346 = vst [vmem:[%s335 + $0x50] sm:$0xff] %v323
          %347 = vst [vmem:[%s335 + $0x58] sm:$0x3] %v331
          %348 = vst [vmem:[%s335 + $0x60] sm:$0xff] %v324
          %349 = vst [vmem:[%s335 + $0x68] sm:$0x3] %v332
          %350 = vst [vmem:[%s335 + $0x70] sm:$0xff] %v325
          %351 = vst [vmem:[%s335 + $0x78] sm:$0x3] %v333
          %v352 = vld [vmem:[%s270] sm:$0xff]
          %v353 = vld [vmem:[%s270 + $0x8] sm:$0x3]
          %v354 = vld [vmem:[%s270 + $0x10] sm:$0xff]
          %v355 = vld [vmem:[%s270 + $0x18] sm:$0x3]
          %v356 = vld [vmem:[%s270 + $0x20] sm:$0xff]
          %v357 = vld [vmem:[%s270 + $0x28] sm:$0x3]
          %v358 = vld [vmem:[%s270 + $0x30] sm:$0xff]
          %v359 = vld [vmem:[%s270 + $0x38] sm:$0x3]
          %v360 = vld [vmem:[%s270 + $0x40] sm:$0xff]
          %v361 = vld [vmem:[%s270 + $0x48] sm:$0x3]
          %v362 = vld [vmem:[%s270 + $0x50] sm:$0xff]
          %v363 = vld [vmem:[%s270 + $0x58] sm:$0x3]
          %v364 = vld [vmem:[%s270 + $0x60] sm:$0xff]
          %v365 = vld [vmem:[%s270 + $0x68] sm:$0x3]
          %v366 = vld [vmem:[%s270 + $0x70] sm:$0xff]
          %v367 = vld [vmem:[%s270 + $0x78] sm:$0x3]
          %vm384 = vcmask 1046528
          %v385 = vrot.slane %v352, 1
          %v386 = vrot.slane %v353, 1
          %v387 = vsel %vm384, %v385, %v386
          %v388 = vrot.slane %v354, 1
          %v389 = vrot.slane %v355, 1
          %v390 = vsel %vm384, %v388, %v389
          %v391 = vrot.slane %v356, 1
          %v392 = vrot.slane %v357, 1
          %v393 = vsel %vm384, %v391, %v392
          %v394 = vrot.slane %v358, 1
          %v395 = vrot.slane %v359, 1
          %v396 = vsel %vm384, %v394, %v395
          %v397 = vrot.slane %v360, 1
          %v398 = vrot.slane %v361, 1
          %v399 = vsel %vm384, %v397, %v398
          %v400 = vrot.slane %v362, 1
          %v401 = vrot.slane %v363, 1
          %v402 = vsel %vm384, %v400, %v401
          %v403 = vrot.slane %v364, 1
          %v404 = vrot.slane %v365, 1
          %v405 = vsel %vm384, %v403, %v404
          %v406 = vrot.slane %v366, 1
          %v407 = vrot.slane %v367, 1
          %v408 = vsel %vm384, %v406, %v407
          %vm417 = vcmask 1045504
          %v418 = vrot.slane %v352, 2
          %v419 = vrot.slane %v353, 2
          %v420 = vsel %vm417, %v418, %v419
          %v421 = vrot.slane %v354, 2
          %v422 = vrot.slane %v355, 2
          %v423 = vsel %vm417, %v421, %v422
          %v424 = vrot.slane %v356, 2
          %v425 = vrot.slane %v357, 2
          %v426 = vsel %vm417, %v424, %v425
          %v427 = vrot.slane %v358, 2
          %v428 = vrot.slane %v359, 2
          %v429 = vsel %vm417, %v427, %v428
          %v430 = vrot.slane %v360, 2
          %v431 = vrot.slane %v361, 2
          %v432 = vsel %vm417, %v430, %v431
          %v433 = vrot.slane %v362, 2
          %v434 = vrot.slane %v363, 2
          %v435 = vsel %vm417, %v433, %v434
          %v436 = vrot.slane %v364, 2
          %v437 = vrot.slane %v365, 2
          %v438 = vsel %vm417, %v436, %v437
          %v439 = vrot.slane %v366, 2
          %v440 = vrot.slane %v367, 2
          %v441 = vsel %vm417, %v439, %v440
          %v450 = vld [vmem:[#allocation5] sm:$0xff]
          %v451 = vld [vmem:[#allocation5 + $0x8] sm:$0xff]
          %v452 = vld [vmem:[#allocation5 + $0x10] sm:$0xff]
          %v453 = vld [vmem:[#allocation5 + $0x18] sm:$0xff]
          %v454 = vld [vmem:[#allocation5 + $0x20] sm:$0xff]
          %v455 = vld [vmem:[#allocation5 + $0x28] sm:$0xff]
          %v456 = vld [vmem:[#allocation5 + $0x30] sm:$0xff]
          %v457 = vld [vmem:[#allocation5 + $0x38] sm:$0xff]
          %v458 = vld [vmem:[#allocation5 + $0x40] sm:$0xff]
          %v459 = vld [vmem:[#allocation5 + $0x48] sm:$0xff]
          %v460 = vld [vmem:[#allocation5 + $0x50] sm:$0xff]
          %v461 = vld [vmem:[#allocation5 + $0x58] sm:$0xff]
          %v462 = vld [vmem:[#allocation5 + $0x60] sm:$0xff]
          %v463 = vld [vmem:[#allocation5 + $0x68] sm:$0xff]
          %v464 = vld [vmem:[#allocation5 + $0x70] sm:$0xff]
          %v465 = vld [vmem:[#allocation5 + $0x78] sm:$0xff]
          %v466 = vld [vmem:[#allocation5 + $0x80] sm:$0xff]
          %v467 = vld [vmem:[#allocation5 + $0x88] sm:$0xff]
          %v468 = vld [vmem:[#allocation5 + $0x90] sm:$0xff]
          %v469 = vld [vmem:[#allocation5 + $0x98] sm:$0xff]
          %v470 = vld [vmem:[#allocation5 + $0xa0] sm:$0xff]
          %v471 = vld [vmem:[#allocation5 + $0xa8] sm:$0xff]
          %v472 = vld [vmem:[#allocation5 + $0xb0] sm:$0xff]
          %v473 = vld [vmem:[#allocation5 + $0xb8] sm:$0xff]
          %v474 = vld [vmem:[#allocation5 + $0xc0] sm:$0xff]
          %v475 = vld [vmem:[#allocation5 + $0xc8] sm:$0xff]
          %v476 = vld [vmem:[#allocation5 + $0xd0] sm:$0xff]
          %v477 = vld [vmem:[#allocation5 + $0xd8] sm:$0xff]
          %v478 = vld [vmem:[#allocation5 + $0xe0] sm:$0xff]
          %v479 = vld [vmem:[#allocation5 + $0xe8] sm:$0xff]
          %v480 = vld [vmem:[#allocation5 + $0xf0] sm:$0xff]
          %v481 = vld [vmem:[#allocation5 + $0xf8] sm:$0xff]
          %v482 = vld [vmem:[#allocation5 + $0x100] sm:$0xff]
          %v483 = vld [vmem:[#allocation5 + $0x108] sm:$0xff]
          %v484 = vld [vmem:[#allocation5 + $0x110] sm:$0xff]
          %v485 = vld [vmem:[#allocation5 + $0x118] sm:$0xff]
          %v486 = vld [vmem:[#allocation5 + $0x120] sm:$0xff]
          %v487 = vld [vmem:[#allocation5 + $0x128] sm:$0xff]
          %v488 = vld [vmem:[#allocation5 + $0x130] sm:$0xff]
          %v489 = vld [vmem:[#allocation5 + $0x138] sm:$0xff]
          %v490 = vld [vmem:[#allocation5 + $0x140] sm:$0xff]
          %v491 = vld [vmem:[#allocation5 + $0x148] sm:$0xff]
          %v492 = vld [vmem:[#allocation5 + $0x150] sm:$0xff]
          %v493 = vld [vmem:[#allocation5 + $0x158] sm:$0xff]
          %v494 = vld [vmem:[#allocation5 + $0x160] sm:$0xff]
          %v495 = vld [vmem:[#allocation5 + $0x168] sm:$0xff]
          %v496 = vld [vmem:[#allocation5 + $0x170] sm:$0xff]
          %v497 = vld [vmem:[#allocation5 + $0x178] sm:$0xff]
          %498 = vmatprep.subr.mxu0 0.0
          %499 = vmatpush1.msra.mxu0 %v450
          %500 = vmatprep.subr.mxu0 0.0
          %501 = vmatpush1.msra.mxu0 %v451
          %502 = vmatprep.subr.mxu0 0.0
          %503 = vmatpush1.msra.mxu0 %v452
          %504 = vmatprep.subr.mxu0 0.0
          %505 = vmatpush1.msra.mxu0 %v453
          %506 = vmatprep.subr.mxu0 0.0
          %507 = vmatpush1.msra.mxu0 %v454
          %508 = vmatprep.subr.mxu0 0.0
          %509 = vmatpush1.msra.mxu0 %v455
          %510 = vmatprep.subr.mxu0 0.0
          %511 = vmatpush1.msra.mxu0 %v456
          %512 = vmatprep.subr.mxu0 0.0
          %513 = vmatpush1.msra.mxu0 %v457
          %514 = vmatprep.subr.mxu0 0.0
          %515 = vmatpush1.msra.mxu0 %v458
          %516 = vmatprep.subr.mxu0 0.0
          %517 = vmatpush1.msra.mxu0 %v459
          %518 = vmatprep.subr.mxu0 0.0
          %519 = vmatpush1.msra.mxu0 %v460
          %520 = vmatprep.subr.mxu0 0.0
          %521 = vmatpush1.msra.mxu0 %v461
          %522 = vmatprep.subr.mxu0 0.0
          %523 = vmatpush1.msra.mxu0 %v462
          %524 = vmatprep.subr.mxu0 0.0
          %525 = vmatpush1.msra.mxu0 %v463
          %526 = vmatprep.subr.mxu0 0.0
          %527 = vmatpush1.msra.mxu0 %v464
          %528 = vmatprep.subr.mxu0 0.0
          %529 = vmatpush1.msra.mxu0 %v465
          %530 = vmatprep.subr.mxu0 0.0
          %531 = vmatpush1.msra.mxu0 %v466
          %532 = vmatprep.subr.mxu0 0.0
          %533 = vmatpush1.msra.mxu0 %v467
          %534 = vmatprep.subr.mxu0 0.0
          %535 = vmatpush1.msra.mxu0 %v468
          %536 = vmatprep.subr.mxu0 0.0
          %537 = vmatpush1.msra.mxu0 %v469
          %538 = vmatprep.subr.mxu0 0.0
          %539 = vmatpush1.msra.mxu0 %v470
          %540 = vmatprep.subr.mxu0 0.0
          %541 = vmatpush1.msra.mxu0 %v471
          %542 = vmatprep.subr.mxu0 0.0
          %543 = vmatpush1.msra.mxu0 %v472
          %544 = vmatprep.subr.mxu0 0.0
          %545 = vmatpush1.msra.mxu0 %v473
          %546 = vmatprep.subr.mxu0 0.0
          %547 = vmatpush1.msra.mxu0 %v474
          %548 = vmatprep.subr.mxu0 0.0
          %549 = vmatpush1.msra.mxu0 %v475
          %550 = vmatprep.subr.mxu0 0.0
          %551 = vmatpush1.msra.mxu0 %v476
          %552 = vmatprep.subr.mxu0 0.0
          %553 = vmatpush1.msra.mxu0 %v477
          %554 = vmatprep.subr.mxu0 0.0
          %555 = vmatpush1.msra.mxu0 %v478
          %556 = vmatprep.subr.mxu0 0.0
          %557 = vmatpush1.msra.mxu0 %v479
          %558 = vmatprep.subr.mxu0 0.0
          %559 = vmatpush1.msra.mxu0 %v480
          %560 = vmatprep.subr.mxu0 0.0
          %561 = vmatpush1.msra.mxu0 %v481
          %562 = vmatprep.mubr.f32.mxu0 %v387
          %563 = vmatmul.mubr.f32.gmra.mrb[0].mxu0 %v352
          %v564 = vpop.f32.mrb[0].mxu0
          %v565 = vadd.f32 0.0, %v564
          %v566 = vpop.f32.mrb[0].mxu0
          %567 = vmatprep.mubr.f32.mxu0 %v390
          %568 = vmatmul.mubr.f32.gmra.mrb[0].mxu0 %v354
          %v569 = vpop.f32.mrb[0].mxu0
          %v570 = vadd.f32 0.0, %v569
          %v571 = vpop.f32.mrb[0].mxu0
          %572 = vmatprep.mubr.f32.mxu0 %v393
          %573 = vmatmul.mubr.f32.gmra.mrb[0].mxu0 %v356
          %v574 = vpop.f32.mrb[0].mxu0
          %v575 = vadd.f32 0.0, %v574
          %v576 = vpop.f32.mrb[0].mxu0
          %577 = vmatprep.mubr.f32.mxu0 %v396
          %578 = vmatmul.mubr.f32.gmra.mrb[0].mxu0 %v358
          %v579 = vpop.f32.mrb[0].mxu0
          %v580 = vadd.f32 0.0, %v579
          %v581 = vpop.f32.mrb[0].mxu0
          %582 = vmatprep.mubr.f32.mxu0 %v399
          %583 = vmatmul.mubr.f32.gmra.mrb[0].mxu0 %v360
          %v584 = vpop.f32.mrb[0].mxu0
          %v585 = vadd.f32 0.0, %v584
          %v586 = vpop.f32.mrb[0].mxu0
          %587 = vmatprep.mubr.f32.mxu0 %v402
          %588 = vmatmul.mubr.f32.gmra.mrb[0].mxu0 %v362
          %v589 = vpop.f32.mrb[0].mxu0
          %v590 = vadd.f32 0.0, %v589
          %v591 = vpop.f32.mrb[0].mxu0
          %592 = vmatprep.mubr.f32.mxu0 %v405
          %593 = vmatmul.mubr.f32.gmra.mrb[0].mxu0 %v364
          %v594 = vpop.f32.mrb[0].mxu0
          %v595 = vadd.f32 0.0, %v594
          %v596 = vpop.f32.mrb[0].mxu0
          %597 = vmatprep.mubr.f32.mxu0 %v408
          %598 = vmatmul.mubr.f32.gmra.mrb[0].mxu0 %v366
          %v599 = vpop.f32.mrb[0].mxu0
          %v600 = vadd.f32 0.0, %v599
          %v601 = vpop.f32.mrb[0].mxu0
          %602 = vdwg.mxu0
          %603 = vmatprep.subr.mxu0 0.0
          %604 = vmatpush1.msra.mxu0 %v482
          %605 = vmatprep.subr.mxu0 0.0
          %606 = vmatpush1.msra.mxu0 %v483
          %607 = vmatprep.subr.mxu0 0.0
          %608 = vmatpush1.msra.mxu0 %v484
          %609 = vmatprep.subr.mxu0 0.0
          %610 = vmatpush1.msra.mxu0 %v485
          %611 = vmatprep.subr.mxu0 0.0
          %612 = vmatpush1.msra.mxu0 %v486
          %613 = vmatprep.subr.mxu0 0.0
          %614 = vmatpush1.msra.mxu0 %v487
          %615 = vmatprep.subr.mxu0 0.0
          %616 = vmatpush1.msra.mxu0 %v488
          %617 = vmatprep.subr.mxu0 0.0
          %618 = vmatpush1.msra.mxu0 %v489
          %619 = vmatprep.subr.mxu0 0.0
          %620 = vmatpush1.msra.mxu0 %v490
          %621 = vmatprep.subr.mxu0 0.0
          %622 = vmatpush1.msra.mxu0 %v491
          %623 = vmatprep.subr.mxu0 0.0
          %624 = vmatpush1.msra.mxu0 %v492
          %625 = vmatprep.subr.mxu0 0.0
          %626 = vmatpush1.msra.mxu0 %v493
          %627 = vmatprep.subr.mxu0 0.0
          %628 = vmatpush1.msra.mxu0 %v494
          %629 = vmatprep.subr.mxu0 0.0
          %630 = vmatpush1.msra.mxu0 %v495
          %631 = vmatprep.subr.mxu0 0.0
          %632 = vmatpush1.msra.mxu0 %v496
          %633 = vmatprep.subr.mxu0 0.0
          %634 = vmatpush1.msra.mxu0 %v497
          %635 = vmatprep.subr.mxu0 0.0
          %636 = vmatpush1.msra.mxu0 0.0
          %637 = vmatprep.subr.mxu0 0.0
          %638 = vmatpush1.msra.mxu0 0.0
          %639 = vmatprep.subr.mxu0 0.0
          %640 = vmatpush1.msra.mxu0 0.0
          %641 = vmatprep.subr.mxu0 0.0
          %642 = vmatpush1.msra.mxu0 0.0
          %643 = vmatprep.subr.mxu0 0.0
          %644 = vmatpush1.msra.mxu0 0.0
          %645 = vmatprep.subr.mxu0 0.0
          %646 = vmatpush1.msra.mxu0 0.0
          %647 = vmatprep.subr.mxu0 0.0
          %648 = vmatpush1.msra.mxu0 0.0
          %649 = vmatprep.subr.mxu0 0.0
          %650 = vmatpush1.msra.mxu0 0.0
          %651 = vmatprep.subr.mxu0 0.0
          %652 = vmatpush1.msra.mxu0 0.0
          %653 = vmatprep.subr.mxu0 0.0
          %654 = vmatpush1.msra.mxu0 0.0
          %655 = vmatprep.subr.mxu0 0.0
          %656 = vmatpush1.msra.mxu0 0.0
          %657 = vmatprep.subr.mxu0 0.0
          %658 = vmatpush1.msra.mxu0 0.0
          %659 = vmatprep.subr.mxu0 0.0
          %660 = vmatpush1.msra.mxu0 0.0
          %661 = vmatprep.subr.mxu0 0.0
          %662 = vmatpush1.msra.mxu0 0.0
          %663 = vmatprep.subr.mxu0 0.0
          %664 = vmatpush1.msra.mxu0 0.0
          %665 = vmatprep.subr.mxu0 0.0
          %666 = vmatpush1.msra.mxu0 0.0
          %667 = vmatprep.mubr.f32.mxu0 0.0
          %668 = vmatmul.mubr.f32.gmra.mrb[0].mxu0 %v420
          %v669 = vpop.f32.mrb[0].mxu0
          %v670 = vadd.f32 %v565, %v669
          %v671 = vpop.f32.mrb[0].mxu0
          %672 = vmatprep.mubr.f32.mxu0 0.0
          %673 = vmatmul.mubr.f32.gmra.mrb[0].mxu0 %v423
          %v674 = vpop.f32.mrb[0].mxu0
          %v675 = vadd.f32 %v570, %v674
          %v676 = vpop.f32.mrb[0].mxu0
          %677 = vmatprep.mubr.f32.mxu0 0.0
          %678 = vmatmul.mubr.f32.gmra.mrb[0].mxu0 %v426
          %v679 = vpop.f32.mrb[0].mxu0
          %v680 = vadd.f32 %v575, %v679
          %v681 = vpop.f32.mrb[0].mxu0
          %682 = vmatprep.mubr.f32.mxu0 0.0
          %683 = vmatmul.mubr.f32.gmra.mrb[0].mxu0 %v429
          %v684 = vpop.f32.mrb[0].mxu0
          %v685 = vadd.f32 %v580, %v684
          %v686 = vpop.f32.mrb[0].mxu0
          %687 = vmatprep.mubr.f32.mxu0 0.0
          %688 = vmatmul.mubr.f32.gmra.mrb[0].mxu0 %v432
          %v689 = vpop.f32.mrb[0].mxu0
          %v690 = vadd.f32 %v585, %v689
          %v691 = vpop.f32.mrb[0].mxu0
          %692 = vmatprep.mubr.f32.mxu0 0.0
          %693 = vmatmul.mubr.f32.gmra.mrb[0].mxu0 %v435
          %v694 = vpop.f32.mrb[0].mxu0
          %v695 = vadd.f32 %v590, %v694
          %v696 = vpop.f32.mrb[0].mxu0
          %697 = vmatprep.mubr.f32.mxu0 0.0
          %698 = vmatmul.mubr.f32.gmra.mrb[0].mxu0 %v438
          %v699 = vpop.f32.mrb[0].mxu0
          %v700 = vadd.f32 %v595, %v699
          %v701 = vpop.f32.mrb[0].mxu0
          %702 = vmatprep.mubr.f32.mxu0 0.0
          %703 = vmatmul.mubr.f32.gmra.mrb[0].mxu0 %v441
          %v704 = vpop.f32.mrb[0].mxu0
          %v705 = vadd.f32 %v600, %v704
          %v706 = vpop.f32.mrb[0].mxu0
          %707 = vdwg.mxu0
          %708 = vst [vmem:[#allocation4] sm:$0xff] %v670
          %709 = vst [vmem:[#allocation4 + $0x8] sm:$0xff] %v675
          %710 = vst [vmem:[#allocation4 + $0x10] sm:$0xff] %v680
          %711 = vst [vmem:[#allocation4 + $0x18] sm:$0xff] %v685
          %712 = vst [vmem:[#allocation4 + $0x20] sm:$0xff] %v690
          %713 = vst [vmem:[#allocation4 + $0x28] sm:$0xff] %v695
          %714 = vst [vmem:[#allocation4 + $0x30] sm:$0xff] %v700
          %715 = vst [vmem:[#allocation4 + $0x38] sm:$0xff] %v705
          %v716 = vld [vmem:[%s335] sm:$0xff]
          %v717 = vld [vmem:[%s335 + $0x8] sm:$0x3]
          %v718 = vld [vmem:[%s335 + $0x10] sm:$0xff]
          %v719 = vld [vmem:[%s335 + $0x18] sm:$0x3]
          %v720 = vld [vmem:[%s335 + $0x20] sm:$0xff]
          %v721 = vld [vmem:[%s335 + $0x28] sm:$0x3]
          %v722 = vld [vmem:[%s335 + $0x30] sm:$0xff]
          %v723 = vld [vmem:[%s335 + $0x38] sm:$0x3]
          %v724 = vld [vmem:[%s335 + $0x40] sm:$0xff]
          %v725 = vld [vmem:[%s335 + $0x48] sm:$0x3]
          %v726 = vld [vmem:[%s335 + $0x50] sm:$0xff]
          %v727 = vld [vmem:[%s335 + $0x58] sm:$0x3]
          %v728 = vld [vmem:[%s335 + $0x60] sm:$0xff]
          %v729 = vld [vmem:[%s335 + $0x68] sm:$0x3]
          %v730 = vld [vmem:[%s335 + $0x70] sm:$0xff]
          %v731 = vld [vmem:[%s335 + $0x78] sm:$0x3]
          %v748 = vrot.slane %v716, 1
          %v749 = vrot.slane %v717, 1
          %v750 = vsel %vm384, %v748, %v749
          %v751 = vrot.slane %v718, 1
          %v752 = vrot.slane %v719, 1
          %v753 = vsel %vm384, %v751, %v752
          %v754 = vrot.slane %v720, 1
          %v755 = vrot.slane %v721, 1
          %v756 = vsel %vm384, %v754, %v755
          %v757 = vrot.slane %v722, 1
          %v758 = vrot.slane %v723, 1
          %v759 = vsel %vm384, %v757, %v758
          %v760 = vrot.slane %v724, 1
          %v761 = vrot.slane %v725, 1
          %v762 = vsel %vm384, %v760, %v761
          %v763 = vrot.slane %v726, 1
          %v764 = vrot.slane %v727, 1
          %v765 = vsel %vm384, %v763, %v764
          %v766 = vrot.slane %v728, 1
          %v767 = vrot.slane %v729, 1
          %v768 = vsel %vm384, %v766, %v767
          %v769 = vrot.slane %v730, 1
          %v770 = vrot.slane %v731, 1
          %v771 = vsel %vm384, %v769, %v770
          %v780 = vrot.slane %v716, 2
          %v781 = vrot.slane %v717, 2
          %v782 = vsel %vm417, %v780, %v781
          %v783 = vrot.slane %v718, 2
          %v784 = vrot.slane %v719, 2
          %v785 = vsel %vm417, %v783, %v784
          %v786 = vrot.slane %v720, 2
          %v787 = vrot.slane %v721, 2
          %v788 = vsel %vm417, %v786, %v787
          %v789 = vrot.slane %v722, 2
          %v790 = vrot.slane %v723, 2
          %v791 = vsel %vm417, %v789, %v790
          %v792 = vrot.slane %v724, 2
          %v793 = vrot.slane %v725, 2
          %v794 = vsel %vm417, %v792, %v793
          %v795 = vrot.slane %v726, 2
          %v796 = vrot.slane %v727, 2
          %v797 = vsel %vm417, %v795, %v796
          %v798 = vrot.slane %v728, 2
          %v799 = vrot.slane %v729, 2
          %v800 = vsel %vm417, %v798, %v799
          %v801 = vrot.slane %v730, 2
          %v802 = vrot.slane %v731, 2
          %v803 = vsel %vm417, %v801, %v802
          %s812 = scalar_lea.vmem [#allocation5], 384
          %v813 = vld [vmem:[%s812] sm:$0xff]
          %v814 = vld [vmem:[%s812 + $0x8] sm:$0xff]
          %v815 = vld [vmem:[%s812 + $0x10] sm:$0xff]
          %v816 = vld [vmem:[%s812 + $0x18] sm:$0xff]
          %v817 = vld [vmem:[%s812 + $0x20] sm:$0xff]
          %v818 = vld [vmem:[%s812 + $0x28] sm:$0xff]
          %v819 = vld [vmem:[%s812 + $0x30] sm:$0xff]
          %v820 = vld [vmem:[%s812 + $0x38] sm:$0xff]
          %v821 = vld [vmem:[%s812 + $0x40] sm:$0xff]
          %v822 = vld [vmem:[%s812 + $0x48] sm:$0xff]
          %v823 = vld [vmem:[%s812 + $0x50] sm:$0xff]
          %v824 = vld [vmem:[%s812 + $0x58] sm:$0xff]
          %v825 = vld [vmem:[%s812 + $0x60] sm:$0xff]
          %v826 = vld [vmem:[%s812 + $0x68] sm:$0xff]
          %v827 = vld [vmem:[%s812 + $0x70] sm:$0xff]
          %v828 = vld [vmem:[%s812 + $0x78] sm:$0xff]
          %v829 = vld [vmem:[%s812 + $0x80] sm:$0xff]
          %v830 = vld [vmem:[%s812 + $0x88] sm:$0xff]
          %v831 = vld [vmem:[%s812 + $0x90] sm:$0xff]
          %v832 = vld [vmem:[%s812 + $0x98] sm:$0xff]
          %v833 = vld [vmem:[%s812 + $0xa0] sm:$0xff]
          %v834 = vld [vmem:[%s812 + $0xa8] sm:$0xff]
          %v835 = vld [vmem:[%s812 + $0xb0] sm:$0xff]
          %v836 = vld [vmem:[%s812 + $0xb8] sm:$0xff]
          %v837 = vld [vmem:[%s812 + $0xc0] sm:$0xff]
          %v838 = vld [vmem:[%s812 + $0xc8] sm:$0xff]
          %v839 = vld [vmem:[%s812 + $0xd0] sm:$0xff]
          %v840 = vld [vmem:[%s812 + $0xd8] sm:$0xff]
          %v841 = vld [vmem:[%s812 + $0xe0] sm:$0xff]
          %v842 = vld [vmem:[%s812 + $0xe8] sm:$0xff]
          %v843 = vld [vmem:[%s812 + $0xf0] sm:$0xff]
          %v844 = vld [vmem:[%s812 + $0xf8] sm:$0xff]
          %v845 = vld [vmem:[%s812 + $0x100] sm:$0xff]
          %v846 = vld [vmem:[%s812 + $0x108] sm:$0xff]
          %v847 = vld [vmem:[%s812 + $0x110] sm:$0xff]
          %v848 = vld [vmem:[%s812 + $0x118] sm:$0xff]
          %v849 = vld [vmem:[%s812 + $0x120] sm:$0xff]
          %v850 = vld [vmem:[%s812 + $0x128] sm:$0xff]
          %v851 = vld [vmem:[%s812 + $0x130] sm:$0xff]
          %v852 = vld [vmem:[%s812 + $0x138] sm:$0xff]
          %v853 = vld [vmem:[%s812 + $0x140] sm:$0xff]
          %v854 = vld [vmem:[%s812 + $0x148] sm:$0xff]
          %v855 = vld [vmem:[%s812 + $0x150] sm:$0xff]
          %v856 = vld [vmem:[%s812 + $0x158] sm:$0xff]
          %v857 = vld [vmem:[%s812 + $0x160] sm:$0xff]
          %v858 = vld [vmem:[%s812 + $0x168] sm:$0xff]
          %v859 = vld [vmem:[%s812 + $0x170] sm:$0xff]
          %v860 = vld [vmem:[%s812 + $0x178] sm:$0xff]
          %861 = vmatprep.subr.mxu0 0.0
          %862 = vmatpush1.msra.mxu0 %v813
          %863 = vmatprep.subr.mxu0 0.0
          %864 = vmatpush1.msra.mxu0 %v814
          %865 = vmatprep.subr.mxu0 0.0
          %866 = vmatpush1.msra.mxu0 %v815
          %867 = vmatprep.subr.mxu0 0.0
          %868 = vmatpush1.msra.mxu0 %v816
          %869 = vmatprep.subr.mxu0 0.0
          %870 = vmatpush1.msra.mxu0 %v817
          %871 = vmatprep.subr.mxu0 0.0
          %872 = vmatpush1.msra.mxu0 %v818
          %873 = vmatprep.subr.mxu0 0.0
          %874 = vmatpush1.msra.mxu0 %v819
          %875 = vmatprep.subr.mxu0 0.0
          %876 = vmatpush1.msra.mxu0 %v820
          %877 = vmatprep.subr.mxu0 0.0
          %878 = vmatpush1.msra.mxu0 %v821
          %879 = vmatprep.subr.mxu0 0.0
          %880 = vmatpush1.msra.mxu0 %v822
          %881 = vmatprep.subr.mxu0 0.0
          %882 = vmatpush1.msra.mxu0 %v823
          %883 = vmatprep.subr.mxu0 0.0
          %884 = vmatpush1.msra.mxu0 %v824
          %885 = vmatprep.subr.mxu0 0.0
          %886 = vmatpush1.msra.mxu0 %v825
          %887 = vmatprep.subr.mxu0 0.0
          %888 = vmatpush1.msra.mxu0 %v826
          %889 = vmatprep.subr.mxu0 0.0
          %890 = vmatpush1.msra.mxu0 %v827
          %891 = vmatprep.subr.mxu0 0.0
          %892 = vmatpush1.msra.mxu0 %v828
          %893 = vmatprep.subr.mxu0 0.0
          %894 = vmatpush1.msra.mxu0 %v829
          %895 = vmatprep.subr.mxu0 0.0
          %896 = vmatpush1.msra.mxu0 %v830
          %897 = vmatprep.subr.mxu0 0.0
          %898 = vmatpush1.msra.mxu0 %v831
          %899 = vmatprep.subr.mxu0 0.0
          %900 = vmatpush1.msra.mxu0 %v832
          %901 = vmatprep.subr.mxu0 0.0
          %902 = vmatpush1.msra.mxu0 %v833
          %903 = vmatprep.subr.mxu0 0.0
          %904 = vmatpush1.msra.mxu0 %v834
          %905 = vmatprep.subr.mxu0 0.0
          %906 = vmatpush1.msra.mxu0 %v835
          %907 = vmatprep.subr.mxu0 0.0
          %908 = vmatpush1.msra.mxu0 %v836
          %909 = vmatprep.subr.mxu0 0.0
          %910 = vmatpush1.msra.mxu0 %v837
          %911 = vmatprep.subr.mxu0 0.0
          %912 = vmatpush1.msra.mxu0 %v838
          %913 = vmatprep.subr.mxu0 0.0
          %914 = vmatpush1.msra.mxu0 %v839
          %915 = vmatprep.subr.mxu0 0.0
          %916 = vmatpush1.msra.mxu0 %v840
          %917 = vmatprep.subr.mxu0 0.0
          %918 = vmatpush1.msra.mxu0 %v841
          %919 = vmatprep.subr.mxu0 0.0
          %920 = vmatpush1.msra.mxu0 %v842
          %921 = vmatprep.subr.mxu0 0.0
          %922 = vmatpush1.msra.mxu0 %v843
          %923 = vmatprep.subr.mxu0 0.0
          %924 = vmatpush1.msra.mxu0 %v844
          %925 = vmatprep.mubr.f32.mxu0 %v750
          %926 = vmatmul.mubr.f32.gmra.mrb[0].mxu0 %v716
          %v927 = vpop.f32.mrb[0].mxu0
          %v928 = vadd.f32 0.0, %v927
          %v929 = vpop.f32.mrb[0].mxu0
          %930 = vmatprep.mubr.f32.mxu0 %v753
          %931 = vmatmul.mubr.f32.gmra.mrb[0].mxu0 %v718
          %v932 = vpop.f32.mrb[0].mxu0
          %v933 = vadd.f32 0.0, %v932
          %v934 = vpop.f32.mrb[0].mxu0
          %935 = vmatprep.mubr.f32.mxu0 %v756
          %936 = vmatmul.mubr.f32.gmra.mrb[0].mxu0 %v720
          %v937 = vpop.f32.mrb[0].mxu0
          %v938 = vadd.f32 0.0, %v937
          %v939 = vpop.f32.mrb[0].mxu0
          %940 = vmatprep.mubr.f32.mxu0 %v759
          %941 = vmatmul.mubr.f32.gmra.mrb[0].mxu0 %v722
          %v942 = vpop.f32.mrb[0].mxu0
          %v943 = vadd.f32 0.0, %v942
          %v944 = vpop.f32.mrb[0].mxu0
          %945 = vmatprep.mubr.f32.mxu0 %v762
          %946 = vmatmul.mubr.f32.gmra.mrb[0].mxu0 %v724
          %v947 = vpop.f32.mrb[0].mxu0
          %v948 = vadd.f32 0.0, %v947
          %v949 = vpop.f32.mrb[0].mxu0
          %950 = vmatprep.mubr.f32.mxu0 %v765
          %951 = vmatmul.mubr.f32.gmra.mrb[0].mxu0 %v726
          %v952 = vpop.f32.mrb[0].mxu0
          %v953 = vadd.f32 0.0, %v952
          %v954 = vpop.f32.mrb[0].mxu0
          %955 = vmatprep.mubr.f32.mxu0 %v768
          %956 = vmatmul.mubr.f32.gmra.mrb[0].mxu0 %v728
          %v957 = vpop.f32.mrb[0].mxu0
          %v958 = vadd.f32 0.0, %v957
          %v959 = vpop.f32.mrb[0].mxu0
          %960 = vmatprep.mubr.f32.mxu0 %v771
          %961 = vmatmul.mubr.f32.gmra.mrb[0].mxu0 %v730
          %v962 = vpop.f32.mrb[0].mxu0
          %v963 = vadd.f32 0.0, %v962
          %v964 = vpop.f32.mrb[0].mxu0
          %965 = vdwg.mxu0
          %966 = vmatprep.subr.mxu0 0.0
          %967 = vmatpush1.msra.mxu0 %v845
          %968 = vmatprep.subr.mxu0 0.0
          %969 = vmatpush1.msra.mxu0 %v846
          %970 = vmatprep.subr.mxu0 0.0
          %971 = vmatpush1.msra.mxu0 %v847
          %972 = vmatprep.subr.mxu0 0.0
          %973 = vmatpush1.msra.mxu0 %v848
          %974 = vmatprep.subr.mxu0 0.0
          %975 = vmatpush1.msra.mxu0 %v849
          %976 = vmatprep.subr.mxu0 0.0
          %977 = vmatpush1.msra.mxu0 %v850
          %978 = vmatprep.subr.mxu0 0.0
          %979 = vmatpush1.msra.mxu0 %v851
          %980 = vmatprep.subr.mxu0 0.0
          %981 = vmatpush1.msra.mxu0 %v852
          %982 = vmatprep.subr.mxu0 0.0
          %983 = vmatpush1.msra.mxu0 %v853
          %984 = vmatprep.subr.mxu0 0.0
          %985 = vmatpush1.msra.mxu0 %v854
          %986 = vmatprep.subr.mxu0 0.0
          %987 = vmatpush1.msra.mxu0 %v855
          %988 = vmatprep.subr.mxu0 0.0
          %989 = vmatpush1.msra.mxu0 %v856
          %990 = vmatprep.subr.mxu0 0.0
          %991 = vmatpush1.msra.mxu0 %v857
          %992 = vmatprep.subr.mxu0 0.0
          %993 = vmatpush1.msra.mxu0 %v858
          %994 = vmatprep.subr.mxu0 0.0
          %995 = vmatpush1.msra.mxu0 %v859
          %996 = vmatprep.subr.mxu0 0.0
          %997 = vmatpush1.msra.mxu0 %v860
          %998 = vmatprep.subr.mxu0 0.0
          %999 = vmatpush1.msra.mxu0 0.0
          %1000 = vmatprep.subr.mxu0 0.0
          %1001 = vmatpush1.msra.mxu0 0.0
          %1002 = vmatprep.subr.mxu0 0.0
          %1003 = vmatpush1.msra.mxu0 0.0
          %1004 = vmatprep.subr.mxu0 0.0
          %1005 = vmatpush1.msra.mxu0 0.0
          %1006 = vmatprep.subr.mxu0 0.0
          %1007 = vmatpush1.msra.mxu0 0.0
          %1008 = vmatprep.subr.mxu0 0.0
          %1009 = vmatpush1.msra.mxu0 0.0
          %1010 = vmatprep.subr.mxu0 0.0
          %1011 = vmatpush1.msra.mxu0 0.0
          %1012 = vmatprep.subr.mxu0 0.0
          %1013 = vmatpush1.msra.mxu0 0.0
          %1014 = vmatprep.subr.mxu0 0.0
          %1015 = vmatpush1.msra.mxu0 0.0
          %1016 = vmatprep.subr.mxu0 0.0
          %1017 = vmatpush1.msra.mxu0 0.0
          %1018 = vmatprep.subr.mxu0 0.0
          %1019 = vmatpush1.msra.mxu0 0.0
          %1020 = vmatprep.subr.mxu0 0.0
          %1021 = vmatpush1.msra.mxu0 0.0
          %1022 = vmatprep.subr.mxu0 0.0
          %1023 = vmatpush1.msra.mxu0 0.0
          %1024 = vmatprep.subr.mxu0 0.0
          %1025 = vmatpush1.msra.mxu0 0.0
          %1026 = vmatprep.subr.mxu0 0.0
          %1027 = vmatpush1.msra.mxu0 0.0
          %1028 = vmatprep.subr.mxu0 0.0
          %1029 = vmatpush1.msra.mxu0 0.0
          %1030 = vmatprep.mubr.f32.mxu0 0.0
          %1031 = vmatmul.mubr.f32.gmra.mrb[0].mxu0 %v782
          %v1032 = vpop.f32.mrb[0].mxu0
          %v1033 = vadd.f32 %v928, %v1032
          %v1034 = vpop.f32.mrb[0].mxu0
          %1035 = vmatprep.mubr.f32.mxu0 0.0
          %1036 = vmatmul.mubr.f32.gmra.mrb[0].mxu0 %v785
          %v1037 = vpop.f32.mrb[0].mxu0
          %v1038 = vadd.f32 %v933, %v1037
          %v1039 = vpop.f32.mrb[0].mxu0
          %1040 = vmatprep.mubr.f32.mxu0 0.0
          %1041 = vmatmul.mubr.f32.gmra.mrb[0].mxu0 %v788
          %v1042 = vpop.f32.mrb[0].mxu0
          %v1043 = vadd.f32 %v938, %v1042
          %v1044 = vpop.f32.mrb[0].mxu0
          %1045 = vmatprep.mubr.f32.mxu0 0.0
          %1046 = vmatmul.mubr.f32.gmra.mrb[0].mxu0 %v791
          %v1047 = vpop.f32.mrb[0].mxu0
          %v1048 = vadd.f32 %v943, %v1047
          %v1049 = vpop.f32.mrb[0].mxu0
          %1050 = vmatprep.mubr.f32.mxu0 0.0
          %1051 = vmatmul.mubr.f32.gmra.mrb[0].mxu0 %v794
          %v1052 = vpop.f32.mrb[0].mxu0
          %v1053 = vadd.f32 %v948, %v1052
          %v1054 = vpop.f32.mrb[0].mxu0
          %1055 = vmatprep.mubr.f32.mxu0 0.0
          %1056 = vmatmul.mubr.f32.gmra.mrb[0].mxu0 %v797
          %v1057 = vpop.f32.mrb[0].mxu0
          %v1058 = vadd.f32 %v953, %v1057
          %v1059 = vpop.f32.mrb[0].mxu0
          %1060 = vmatprep.mubr.f32.mxu0 0.0
          %1061 = vmatmul.mubr.f32.gmra.mrb[0].mxu0 %v800
          %v1062 = vpop.f32.mrb[0].mxu0
          %v1063 = vadd.f32 %v958, %v1062
          %v1064 = vpop.f32.mrb[0].mxu0
          %1065 = vmatprep.mubr.f32.mxu0 0.0
          %1066 = vmatmul.mubr.f32.gmra.mrb[0].mxu0 %v803
          %v1067 = vpop.f32.mrb[0].mxu0
          %v1068 = vadd.f32 %v963, %v1067
          %v1069 = vpop.f32.mrb[0].mxu0
          %1070 = vdwg.mxu0
          %v1071 = vld [vmem:[#allocation4] sm:$0xff]
          %v1072 = vld [vmem:[#allocation4 + $0x8] sm:$0xff]
          %v1073 = vld [vmem:[#allocation4 + $0x10] sm:$0xff]
          %v1074 = vld [vmem:[#allocation4 + $0x18] sm:$0xff]
          %v1075 = vld [vmem:[#allocation4 + $0x20] sm:$0xff]
          %v1076 = vld [vmem:[#allocation4 + $0x28] sm:$0xff]
          %v1077 = vld [vmem:[#allocation4 + $0x30] sm:$0xff]
          %v1078 = vld [vmem:[#allocation4 + $0x38] sm:$0xff]
          %v1079 = vadd.f32 %v1071, %v1033
          %v1080 = vadd.f32 %v1072, %v1038
          %v1081 = vadd.f32 %v1073, %v1043
          %v1082 = vadd.f32 %v1074, %v1048
          %v1083 = vadd.f32 %v1075, %v1053
          %v1084 = vadd.f32 %v1076, %v1058
          %v1085 = vadd.f32 %v1077, %v1063
          %v1086 = vadd.f32 %v1078, %v1068
          %1087 = vst [vmem:[#allocation4] sm:$0xff] %v1079
          %1088 = vst [vmem:[#allocation4 + $0x8] sm:$0xff] %v1080
          %1089 = vst [vmem:[#allocation4 + $0x10] sm:$0xff] %v1081
          %1090 = vst [vmem:[#allocation4 + $0x18] sm:$0xff] %v1082
          %1091 = vst [vmem:[#allocation4 + $0x20] sm:$0xff] %v1083
          %1092 = vst [vmem:[#allocation4 + $0x28] sm:$0xff] %v1084
          %1093 = vst [vmem:[#allocation4 + $0x30] sm:$0xff] %v1085
          %1094 = vst [vmem:[#allocation4 + $0x38] sm:$0xff] %v1086
          %s1095 = sadd.s32 32, %s269
          %s1096 = scalar_lea.vmem [#allocation2], %s1095
          %v1097 = vld [vmem:[%s1096] sm:$0xff]
          %v1098 = vld [vmem:[%s1096 + $0x8] sm:$0x3]
          %v1099 = vld [vmem:[%s1096 + $0x10] sm:$0xff]
          %v1100 = vld [vmem:[%s1096 + $0x18] sm:$0x3]
          %v1101 = vld [vmem:[%s1096 + $0x20] sm:$0xff]
          %v1102 = vld [vmem:[%s1096 + $0x28] sm:$0x3]
          %v1103 = vld [vmem:[%s1096 + $0x30] sm:$0xff]
          %v1104 = vld [vmem:[%s1096 + $0x38] sm:$0x3]
          %v1105 = vld [vmem:[%s1096 + $0x40] sm:$0xff]
          %v1106 = vld [vmem:[%s1096 + $0x48] sm:$0x3]
          %v1107 = vld [vmem:[%s1096 + $0x50] sm:$0xff]
          %v1108 = vld [vmem:[%s1096 + $0x58] sm:$0x3]
          %v1109 = vld [vmem:[%s1096 + $0x60] sm:$0xff]
          %v1110 = vld [vmem:[%s1096 + $0x68] sm:$0x3]
          %v1111 = vld [vmem:[%s1096 + $0x70] sm:$0xff]
          %v1112 = vld [vmem:[%s1096 + $0x78] sm:$0x3]
          %v1129 = vrot.slane %v1097, 1
          %v1130 = vrot.slane %v1098, 1
          %v1131 = vsel %vm384, %v1129, %v1130
          %v1132 = vrot.slane %v1099, 1
          %v1133 = vrot.slane %v1100, 1
          %v1134 = vsel %vm384, %v1132, %v1133
          %v1135 = vrot.slane %v1101, 1
          %v1136 = vrot.slane %v1102, 1
          %v1137 = vsel %vm384, %v1135, %v1136
          %v1138 = vrot.slane %v1103, 1
          %v1139 = vrot.slane %v1104, 1
          %v1140 = vsel %vm384, %v1138, %v1139
          %v1141 = vrot.slane %v1105, 1
          %v1142 = vrot.slane %v1106, 1
          %v1143 = vsel %vm384, %v1141, %v1142
          %v1144 = vrot.slane %v1107, 1
          %v1145 = vrot.slane %v1108, 1
          %v1146 = vsel %vm384, %v1144, %v1145
          %v1147 = vrot.slane %v1109, 1
          %v1148 = vrot.slane %v1110, 1
          %v1149 = vsel %vm384, %v1147, %v1148
          %v1150 = vrot.slane %v1111, 1
          %v1151 = vrot.slane %v1112, 1
          %v1152 = vsel %vm384, %v1150, %v1151
          %v1161 = vrot.slane %v1097, 2
          %v1162 = vrot.slane %v1098, 2
          %v1163 = vsel %vm417, %v1161, %v1162
          %v1164 = vrot.slane %v1099, 2
          %v1165 = vrot.slane %v1100, 2
          %v1166 = vsel %vm417, %v1164, %v1165
          %v1167 = vrot.slane %v1101, 2
          %v1168 = vrot.slane %v1102, 2
          %v1169 = vsel %vm417, %v1167, %v1168
          %v1170 = vrot.slane %v1103, 2
          %v1171 = vrot.slane %v1104, 2
          %v1172 = vsel %vm417, %v1170, %v1171
          %v1173 = vrot.slane %v1105, 2
          %v1174 = vrot.slane %v1106, 2
          %v1175 = vsel %vm417, %v1173, %v1174
          %v1176 = vrot.slane %v1107, 2
          %v1177 = vrot.slane %v1108, 2
          %v1178 = vsel %vm417, %v1176, %v1177
          %v1179 = vrot.slane %v1109, 2
          %v1180 = vrot.slane %v1110, 2
          %v1181 = vsel %vm417, %v1179, %v1180
          %v1182 = vrot.slane %v1111, 2
          %v1183 = vrot.slane %v1112, 2
          %v1184 = vsel %vm417, %v1182, %v1183
          %s1193 = scalar_lea.vmem [#allocation5], 768
          %v1194 = vld [vmem:[%s1193] sm:$0xff]
          %v1195 = vld [vmem:[%s1193 + $0x8] sm:$0xff]
          %v1196 = vld [vmem:[%s1193 + $0x10] sm:$0xff]
          %v1197 = vld [vmem:[%s1193 + $0x18] sm:$0xff]
          %v1198 = vld [vmem:[%s1193 + $0x20] sm:$0xff]
          %v1199 = vld [vmem:[%s1193 + $0x28] sm:$0xff]
          %v1200 = vld [vmem:[%s1193 + $0x30] sm:$0xff]
          %v1201 = vld [vmem:[%s1193 + $0x38] sm:$0xff]
          %v1202 = vld [vmem:[%s1193 + $0x40] sm:$0xff]
          %v1203 = vld [vmem:[%s1193 + $0x48] sm:$0xff]
          %v1204 = vld [vmem:[%s1193 + $0x50] sm:$0xff]
          %v1205 = vld [vmem:[%s1193 + $0x58] sm:$0xff]
          %v1206 = vld [vmem:[%s1193 + $0x60] sm:$0xff]
          %v1207 = vld [vmem:[%s1193 + $0x68] sm:$0xff]
          %v1208 = vld [vmem:[%s1193 + $0x70] sm:$0xff]
          %v1209 = vld [vmem:[%s1193 + $0x78] sm:$0xff]
          %v1210 = vld [vmem:[%s1193 + $0x80] sm:$0xff]
          %v1211 = vld [vmem:[%s1193 + $0x88] sm:$0xff]
          %v1212 = vld [vmem:[%s1193 + $0x90] sm:$0xff]
          %v1213 = vld [vmem:[%s1193 + $0x98] sm:$0xff]
          %v1214 = vld [vmem:[%s1193 + $0xa0] sm:$0xff]
          %v1215 = vld [vmem:[%s1193 + $0xa8] sm:$0xff]
          %v1216 = vld [vmem:[%s1193 + $0xb0] sm:$0xff]
          %v1217 = vld [vmem:[%s1193 + $0xb8] sm:$0xff]
          %v1218 = vld [vmem:[%s1193 + $0xc0] sm:$0xff]
          %v1219 = vld [vmem:[%s1193 + $0xc8] sm:$0xff]
          %v1220 = vld [vmem:[%s1193 + $0xd0] sm:$0xff]
          %v1221 = vld [vmem:[%s1193 + $0xd8] sm:$0xff]
          %v1222 = vld [vmem:[%s1193 + $0xe0] sm:$0xff]
          %v1223 = vld [vmem:[%s1193 + $0xe8] sm:$0xff]
          %v1224 = vld [vmem:[%s1193 + $0xf0] sm:$0xff]
          %v1225 = vld [vmem:[%s1193 + $0xf8] sm:$0xff]
          %v1226 = vld [vmem:[%s1193 + $0x100] sm:$0xff]
          %v1227 = vld [vmem:[%s1193 + $0x108] sm:$0xff]
          %v1228 = vld [vmem:[%s1193 + $0x110] sm:$0xff]
          %v1229 = vld [vmem:[%s1193 + $0x118] sm:$0xff]
          %v1230 = vld [vmem:[%s1193 + $0x120] sm:$0xff]
          %v1231 = vld [vmem:[%s1193 + $0x128] sm:$0xff]
          %v1232 = vld [vmem:[%s1193 + $0x130] sm:$0xff]
          %v1233 = vld [vmem:[%s1193 + $0x138] sm:$0xff]
          %v1234 = vld [vmem:[%s1193 + $0x140] sm:$0xff]
          %v1235 = vld [vmem:[%s1193 + $0x148] sm:$0xff]
          %v1236 = vld [vmem:[%s1193 + $0x150] sm:$0xff]
          %v1237 = vld [vmem:[%s1193 + $0x158] sm:$0xff]
          %v1238 = vld [vmem:[%s1193 + $0x160] sm:$0xff]
          %v1239 = vld [vmem:[%s1193 + $0x168] sm:$0xff]
          %v1240 = vld [vmem:[%s1193 + $0x170] sm:$0xff]
          %v1241 = vld [vmem:[%s1193 + $0x178] sm:$0xff]
          %1242 = vmatprep.subr.mxu0 0.0
          %1243 = vmatpush1.msra.mxu0 %v1194
          %1244 = vmatprep.subr.mxu0 0.0
          %1245 = vmatpush1.msra.mxu0 %v1195
          %1246 = vmatprep.subr.mxu0 0.0
          %1247 = vmatpush1.msra.mxu0 %v1196
          %1248 = vmatprep.subr.mxu0 0.0
          %1249 = vmatpush1.msra.mxu0 %v1197
          %1250 = vmatprep.subr.mxu0 0.0
          %1251 = vmatpush1.msra.mxu0 %v1198
          %1252 = vmatprep.subr.mxu0 0.0
          %1253 = vmatpush1.msra.mxu0 %v1199
          %1254 = vmatprep.subr.mxu0 0.0
          %1255 = vmatpush1.msra.mxu0 %v1200
          %1256 = vmatprep.subr.mxu0 0.0
          %1257 = vmatpush1.msra.mxu0 %v1201
          %1258 = vmatprep.subr.mxu0 0.0
          %1259 = vmatpush1.msra.mxu0 %v1202
          %1260 = vmatprep.subr.mxu0 0.0
          %1261 = vmatpush1.msra.mxu0 %v1203
          %1262 = vmatprep.subr.mxu0 0.0
          %1263 = vmatpush1.msra.mxu0 %v1204
          %1264 = vmatprep.subr.mxu0 0.0
          %1265 = vmatpush1.msra.mxu0 %v1205
          %1266 = vmatprep.subr.mxu0 0.0
          %1267 = vmatpush1.msra.mxu0 %v1206
          %1268 = vmatprep.subr.mxu0 0.0
          %1269 = vmatpush1.msra.mxu0 %v1207
          %1270 = vmatprep.subr.mxu0 0.0
          %1271 = vmatpush1.msra.mxu0 %v1208
          %1272 = vmatprep.subr.mxu0 0.0
          %1273 = vmatpush1.msra.mxu0 %v1209
          %1274 = vmatprep.subr.mxu0 0.0
          %1275 = vmatpush1.msra.mxu0 %v1210
          %1276 = vmatprep.subr.mxu0 0.0
          %1277 = vmatpush1.msra.mxu0 %v1211
          %1278 = vmatprep.subr.mxu0 0.0
          %1279 = vmatpush1.msra.mxu0 %v1212
          %1280 = vmatprep.subr.mxu0 0.0
          %1281 = vmatpush1.msra.mxu0 %v1213
          %1282 = vmatprep.subr.mxu0 0.0
          %1283 = vmatpush1.msra.mxu0 %v1214
          %1284 = vmatprep.subr.mxu0 0.0
          %1285 = vmatpush1.msra.mxu0 %v1215
          %1286 = vmatprep.subr.mxu0 0.0
          %1287 = vmatpush1.msra.mxu0 %v1216
          %1288 = vmatprep.subr.mxu0 0.0
          %1289 = vmatpush1.msra.mxu0 %v1217
          %1290 = vmatprep.subr.mxu0 0.0
          %1291 = vmatpush1.msra.mxu0 %v1218
          %1292 = vmatprep.subr.mxu0 0.0
          %1293 = vmatpush1.msra.mxu0 %v1219
          %1294 = vmatprep.subr.mxu0 0.0
          %1295 = vmatpush1.msra.mxu0 %v1220
          %1296 = vmatprep.subr.mxu0 0.0
          %1297 = vmatpush1.msra.mxu0 %v1221
          %1298 = vmatprep.subr.mxu0 0.0
          %1299 = vmatpush1.msra.mxu0 %v1222
          %1300 = vmatprep.subr.mxu0 0.0
          %1301 = vmatpush1.msra.mxu0 %v1223
          %1302 = vmatprep.subr.mxu0 0.0
          %1303 = vmatpush1.msra.mxu0 %v1224
          %1304 = vmatprep.subr.mxu0 0.0
          %1305 = vmatpush1.msra.mxu0 %v1225
          %1306 = vmatprep.mubr.f32.mxu0 %v1131
          %1307 = vmatmul.mubr.f32.gmra.mrb[0].mxu0 %v1097
          %v1308 = vpop.f32.mrb[0].mxu0
          %v1309 = vadd.f32 0.0, %v1308
          %v1310 = vpop.f32.mrb[0].mxu0
          %1311 = vmatprep.mubr.f32.mxu0 %v1134
          %1312 = vmatmul.mubr.f32.gmra.mrb[0].mxu0 %v1099
          %v1313 = vpop.f32.mrb[0].mxu0
          %v1314 = vadd.f32 0.0, %v1313
          %v1315 = vpop.f32.mrb[0].mxu0
          %1316 = vmatprep.mubr.f32.mxu0 %v1137
          %1317 = vmatmul.mubr.f32.gmra.mrb[0].mxu0 %v1101
          %v1318 = vpop.f32.mrb[0].mxu0
          %v1319 = vadd.f32 0.0, %v1318
          %v1320 = vpop.f32.mrb[0].mxu0
          %1321 = vmatprep.mubr.f32.mxu0 %v1140
          %1322 = vmatmul.mubr.f32.gmra.mrb[0].mxu0 %v1103
          %v1323 = vpop.f32.mrb[0].mxu0
          %v1324 = vadd.f32 0.0, %v1323
          %v1325 = vpop.f32.mrb[0].mxu0
          %1326 = vmatprep.mubr.f32.mxu0 %v1143
          %1327 = vmatmul.mubr.f32.gmra.mrb[0].mxu0 %v1105
          %v1328 = vpop.f32.mrb[0].mxu0
          %v1329 = vadd.f32 0.0, %v1328
          %v1330 = vpop.f32.mrb[0].mxu0
          %1331 = vmatprep.mubr.f32.mxu0 %v1146
          %1332 = vmatmul.mubr.f32.gmra.mrb[0].mxu0 %v1107
          %v1333 = vpop.f32.mrb[0].mxu0
          %v1334 = vadd.f32 0.0, %v1333
          %v1335 = vpop.f32.mrb[0].mxu0
          %1336 = vmatprep.mubr.f32.mxu0 %v1149
          %1337 = vmatmul.mubr.f32.gmra.mrb[0].mxu0 %v1109
          %v1338 = vpop.f32.mrb[0].mxu0
          %v1339 = vadd.f32 0.0, %v1338
          %v1340 = vpop.f32.mrb[0].mxu0
          %1341 = vmatprep.mubr.f32.mxu0 %v1152
          %1342 = vmatmul.mubr.f32.gmra.mrb[0].mxu0 %v1111
          %v1343 = vpop.f32.mrb[0].mxu0
          %v1344 = vadd.f32 0.0, %v1343
          %v1345 = vpop.f32.mrb[0].mxu0
          %1346 = vdwg.mxu0
          %1347 = vmatprep.subr.mxu0 0.0
          %1348 = vmatpush1.msra.mxu0 %v1226
          %1349 = vmatprep.subr.mxu0 0.0
          %1350 = vmatpush1.msra.mxu0 %v1227
          %1351 = vmatprep.subr.mxu0 0.0
          %1352 = vmatpush1.msra.mxu0 %v1228
          %1353 = vmatprep.subr.mxu0 0.0
          %1354 = vmatpush1.msra.mxu0 %v1229
          %1355 = vmatprep.subr.mxu0 0.0
          %1356 = vmatpush1.msra.mxu0 %v1230
          %1357 = vmatprep.subr.mxu0 0.0
          %1358 = vmatpush1.msra.mxu0 %v1231
          %1359 = vmatprep.subr.mxu0 0.0
          %1360 = vmatpush1.msra.mxu0 %v1232
          %1361 = vmatprep.subr.mxu0 0.0
          %1362 = vmatpush1.msra.mxu0 %v1233
          %1363 = vmatprep.subr.mxu0 0.0
          %1364 = vmatpush1.msra.mxu0 %v1234
          %1365 = vmatprep.subr.mxu0 0.0
          %1366 = vmatpush1.msra.mxu0 %v1235
          %1367 = vmatprep.subr.mxu0 0.0
          %1368 = vmatpush1.msra.mxu0 %v1236
          %1369 = vmatprep.subr.mxu0 0.0
          %1370 = vmatpush1.msra.mxu0 %v1237
          %1371 = vmatprep.subr.mxu0 0.0
          %1372 = vmatpush1.msra.mxu0 %v1238
          %1373 = vmatprep.subr.mxu0 0.0
          %1374 = vmatpush1.msra.mxu0 %v1239
          %1375 = vmatprep.subr.mxu0 0.0
          %1376 = vmatpush1.msra.mxu0 %v1240
          %1377 = vmatprep.subr.mxu0 0.0
          %1378 = vmatpush1.msra.mxu0 %v1241
          %1379 = vmatprep.subr.mxu0 0.0
          %1380 = vmatpush1.msra.mxu0 0.0
          %1381 = vmatprep.subr.mxu0 0.0
          %1382 = vmatpush1.msra.mxu0 0.0
          %1383 = vmatprep.subr.mxu0 0.0
          %1384 = vmatpush1.msra.mxu0 0.0
          %1385 = vmatprep.subr.mxu0 0.0
          %1386 = vmatpush1.msra.mxu0 0.0
          %1387 = vmatprep.subr.mxu0 0.0
          %1388 = vmatpush1.msra.mxu0 0.0
          %1389 = vmatprep.subr.mxu0 0.0
          %1390 = vmatpush1.msra.mxu0 0.0
          %1391 = vmatprep.subr.mxu0 0.0
          %1392 = vmatpush1.msra.mxu0 0.0
          %1393 = vmatprep.subr.mxu0 0.0
          %1394 = vmatpush1.msra.mxu0 0.0
          %1395 = vmatprep.subr.mxu0 0.0
          %1396 = vmatpush1.msra.mxu0 0.0
          %1397 = vmatprep.subr.mxu0 0.0
          %1398 = vmatpush1.msra.mxu0 0.0
          %1399 = vmatprep.subr.mxu0 0.0
          %1400 = vmatpush1.msra.mxu0 0.0
          %1401 = vmatprep.subr.mxu0 0.0
          %1402 = vmatpush1.msra.mxu0 0.0
          %1403 = vmatprep.subr.mxu0 0.0
          %1404 = vmatpush1.msra.mxu0 0.0
          %1405 = vmatprep.subr.mxu0 0.0
          %1406 = vmatpush1.msra.mxu0 0.0
          %1407 = vmatprep.subr.mxu0 0.0
          %1408 = vmatpush1.msra.mxu0 0.0
          %1409 = vmatprep.subr.mxu0 0.0
          %1410 = vmatpush1.msra.mxu0 0.0
          %1411 = vmatprep.mubr.f32.mxu0 0.0
          %1412 = vmatmul.mubr.f32.gmra.mrb[0].mxu0 %v1163
          %v1413 = vpop.f32.mrb[0].mxu0
          %v1414 = vadd.f32 %v1309, %v1413
          %v1415 = vpop.f32.mrb[0].mxu0
          %1416 = vmatprep.mubr.f32.mxu0 0.0
          %1417 = vmatmul.mubr.f32.gmra.mrb[0].mxu0 %v1166
          %v1418 = vpop.f32.mrb[0].mxu0
          %v1419 = vadd.f32 %v1314, %v1418
          %v1420 = vpop.f32.mrb[0].mxu0
          %1421 = vmatprep.mubr.f32.mxu0 0.0
          %1422 = vmatmul.mubr.f32.gmra.mrb[0].mxu0 %v1169
          %v1423 = vpop.f32.mrb[0].mxu0
          %v1424 = vadd.f32 %v1319, %v1423
          %v1425 = vpop.f32.mrb[0].mxu0
          %1426 = vmatprep.mubr.f32.mxu0 0.0
          %1427 = vmatmul.mubr.f32.gmra.mrb[0].mxu0 %v1172
          %v1428 = vpop.f32.mrb[0].mxu0
          %v1429 = vadd.f32 %v1324, %v1428
          %v1430 = vpop.f32.mrb[0].mxu0
          %1431 = vmatprep.mubr.f32.mxu0 0.0
          %1432 = vmatmul.mubr.f32.gmra.mrb[0].mxu0 %v1175
          %v1433 = vpop.f32.mrb[0].mxu0
          %v1434 = vadd.f32 %v1329, %v1433
          %v1435 = vpop.f32.mrb[0].mxu0
          %1436 = vmatprep.mubr.f32.mxu0 0.0
          %1437 = vmatmul.mubr.f32.gmra.mrb[0].mxu0 %v1178
          %v1438 = vpop.f32.mrb[0].mxu0
          %v1439 = vadd.f32 %v1334, %v1438
          %v1440 = vpop.f32.mrb[0].mxu0
          %1441 = vmatprep.mubr.f32.mxu0 0.0
          %1442 = vmatmul.mubr.f32.gmra.mrb[0].mxu0 %v1181
          %v1443 = vpop.f32.mrb[0].mxu0
          %v1444 = vadd.f32 %v1339, %v1443
          %v1445 = vpop.f32.mrb[0].mxu0
          %1446 = vmatprep.mubr.f32.mxu0 0.0
          %1447 = vmatmul.mubr.f32.gmra.mrb[0].mxu0 %v1184
          %v1448 = vpop.f32.mrb[0].mxu0
          %v1449 = vadd.f32 %v1344, %v1448
          %v1450 = vpop.f32.mrb[0].mxu0
          %1451 = vdwg.mxu0
          %v1452 = vld [vmem:[#allocation4] sm:$0xff]
          %v1453 = vld [vmem:[#allocation4 + $0x8] sm:$0xff]
          %v1454 = vld [vmem:[#allocation4 + $0x10] sm:$0xff]
          %v1455 = vld [vmem:[#allocation4 + $0x18] sm:$0xff]
          %v1456 = vld [vmem:[#allocation4 + $0x20] sm:$0xff]
          %v1457 = vld [vmem:[#allocation4 + $0x28] sm:$0xff]
          %v1458 = vld [vmem:[#allocation4 + $0x30] sm:$0xff]
          %v1459 = vld [vmem:[#allocation4 + $0x38] sm:$0xff]
          %v1460 = vadd.f32 %v1452, %v1414
          %v1461 = vadd.f32 %v1453, %v1419
          %v1462 = vadd.f32 %v1454, %v1424
          %v1463 = vadd.f32 %v1455, %v1429
          %v1464 = vadd.f32 %v1456, %v1434
          %v1465 = vadd.f32 %v1457, %v1439
          %v1466 = vadd.f32 %v1458, %v1444
          %v1467 = vadd.f32 %v1459, %v1449
          %1468 = vst [vmem:[#allocation4] sm:$0xff] %v1460
          %1469 = vst [vmem:[#allocation4 + $0x8] sm:$0xff] %v1461
          %1470 = vst [vmem:[#allocation4 + $0x10] sm:$0xff] %v1462
          %1471 = vst [vmem:[#allocation4 + $0x18] sm:$0xff] %v1463
          %1472 = vst [vmem:[#allocation4 + $0x20] sm:$0xff] %v1464
          %1473 = vst [vmem:[#allocation4 + $0x28] sm:$0xff] %v1465
          %1474 = vst [vmem:[#allocation4 + $0x30] sm:$0xff] %v1466
          %1475 = vst [vmem:[#allocation4 + $0x38] sm:$0xff] %v1467
          %v1476 = vld [vmem:[#allocation4] sm:$0xff]
          %v1477 = vld [vmem:[#allocation4 + $0x8] sm:$0xff]
          %v1478 = vld [vmem:[#allocation4 + $0x10] sm:$0xff]
          %v1479 = vld [vmem:[#allocation4 + $0x18] sm:$0xff]
          %v1480 = vld [vmem:[#allocation4 + $0x20] sm:$0xff]
          %v1481 = vld [vmem:[#allocation4 + $0x28] sm:$0xff]
          %v1482 = vld [vmem:[#allocation4 + $0x30] sm:$0xff]
          %v1483 = vld [vmem:[#allocation4 + $0x38] sm:$0xff]
          %v1484 = vld [vmem:[%s2] sm:$0x1]
          %v1486 = vlaneseq
          %v1487 = vshrl.u32 %v1486, 7
          %v1488 = vsub.s32 0, %v1487
          %v1489 = vrot.slane %v1484, %v1488
          %v1491 = vadd.f32 %v1476, %v1489
          %v1492 = vadd.f32 %v1477, %v1489
          %v1493 = vadd.f32 %v1478, %v1489
          %v1494 = vadd.f32 %v1479, %v1489
          %v1495 = vadd.f32 %v1480, %v1489
          %v1496 = vadd.f32 %v1481, %v1489
          %v1497 = vadd.f32 %v1482, %v1489
          %v1498 = vadd.f32 %v1483, %v1489
          %v1499 = vmax.f32 %v1491, 0.0
          %v1500 = vmax.f32 %v1492, 0.0
          %v1501 = vmax.f32 %v1493, 0.0
          %v1502 = vmax.f32 %v1494, 0.0
          %v1503 = vmax.f32 %v1495, 0.0
          %v1504 = vmax.f32 %v1496, 0.0
          %v1505 = vmax.f32 %v1497, 0.0
          %v1506 = vmax.f32 %v1498, 0.0
          %v1515 = vrot.slane %v1499, 7
          %v1516 = vrot.slane %v1500, 7
          %v1517 = vrot.slane %v1501, 7
          %v1518 = vrot.slane %v1502, 7
          %v1519 = vrot.slane %v1503, 7
          %v1520 = vrot.slane %v1504, 7
          %v1521 = vrot.slane %v1505, 7
          %v1522 = vrot.slane %v1506, 7
          %v1531 = vsel %vm317, 0.0, %v1515
          %v1532 = vsel %vm317, 0.0, %v1516
          %v1533 = vsel %vm317, 0.0, %v1517
          %v1534 = vsel %vm317, 0.0, %v1518
          %v1535 = vsel %vm317, 0.0, %v1519
          %v1536 = vsel %vm317, 0.0, %v1520
          %v1537 = vsel %vm317, 0.0, %v1521
          %v1538 = vsel %vm317, 0.0, %v1522
          %v1539 = vsel %vm317, %v1515, 0.0
          %v1540 = vsel %vm317, %v1516, 0.0
          %v1541 = vsel %vm317, %v1517, 0.0
          %v1542 = vsel %vm317, %v1518, 0.0
          %v1543 = vsel %vm317, %v1519, 0.0
          %v1544 = vsel %vm317, %v1520, 0.0
          %v1545 = vsel %vm317, %v1521, 0.0
          %v1546 = vsel %vm317, %v1522, 0.0
          %s1547 = scalar_lea.vmem [#allocation3], %s334
          %1548 = vst [vmem:[%s1547] sm:$0xff] %v1531
          %1549 = vst [vmem:[%s1547 + $0x8] sm:$0x3] %v1539
          %1550 = vst [vmem:[%s1547 + $0x10] sm:$0xff] %v1532
          %1551 = vst [vmem:[%s1547 + $0x18] sm:$0x3] %v1540
          %1552 = vst [vmem:[%s1547 + $0x20] sm:$0xff] %v1533
          %1553 = vst [vmem:[%s1547 + $0x28] sm:$0x3] %v1541
          %1554 = vst [vmem:[%s1547 + $0x30] sm:$0xff] %v1534
          %1555 = vst [vmem:[%s1547 + $0x38] sm:$0x3] %v1542
          %1556 = vst [vmem:[%s1547 + $0x40] sm:$0xff] %v1535
          %1557 = vst [vmem:[%s1547 + $0x48] sm:$0x3] %v1543
          %1558 = vst [vmem:[%s1547 + $0x50] sm:$0xff] %v1536
          %1559 = vst [vmem:[%s1547 + $0x58] sm:$0x3] %v1544
          %1560 = vst [vmem:[%s1547 + $0x60] sm:$0xff] %v1537
          %1561 = vst [vmem:[%s1547 + $0x68] sm:$0x3] %v1545
          %1562 = vst [vmem:[%s1547 + $0x70] sm:$0xff] %v1538
          %1563 = vst [vmem:[%s1547 + $0x78] sm:$0x3] %v1546
          %v1564 = vld [vmem:[%s277] sm:$0xff]
          %v1565 = vld [vmem:[%s277 + $0x8] sm:$0x3]
          %v1566 = vld [vmem:[%s277 + $0x10] sm:$0xff]
          %v1567 = vld [vmem:[%s277 + $0x18] sm:$0x3]
          %v1568 = vld [vmem:[%s277 + $0x20] sm:$0xff]
          %v1569 = vld [vmem:[%s277 + $0x28] sm:$0x3]
          %v1570 = vld [vmem:[%s277 + $0x30] sm:$0xff]
          %v1571 = vld [vmem:[%s277 + $0x38] sm:$0x3]
          %v1572 = vld [vmem:[%s277 + $0x40] sm:$0xff]
          %v1573 = vld [vmem:[%s277 + $0x48] sm:$0x3]
          %v1574 = vld [vmem:[%s277 + $0x50] sm:$0xff]
          %v1575 = vld [vmem:[%s277 + $0x58] sm:$0x3]
          %v1576 = vld [vmem:[%s277 + $0x60] sm:$0xff]
          %v1577 = vld [vmem:[%s277 + $0x68] sm:$0x3]
          %v1578 = vld [vmem:[%s277 + $0x70] sm:$0xff]
          %v1579 = vld [vmem:[%s277 + $0x78] sm:$0x3]
          %v1596 = vrot.slane %v1564, 1
          %v1597 = vrot.slane %v1565, 1
          %v1598 = vsel %vm384, %v1596, %v1597
          %v1599 = vrot.slane %v1566, 1
          %v1600 = vrot.slane %v1567, 1
          %v1601 = vsel %vm384, %v1599, %v1600
          %v1602 = vrot.slane %v1568, 1
          %v1603 = vrot.slane %v1569, 1
          %v1604 = vsel %vm384, %v1602, %v1603
          %v1605 = vrot.slane %v1570, 1
          %v1606 = vrot.slane %v1571, 1
          %v1607 = vsel %vm384, %v1605, %v1606
          %v1608 = vrot.slane %v1572, 1
          %v1609 = vrot.slane %v1573, 1
          %v1610 = vsel %vm384, %v1608, %v1609
          %v1611 = vrot.slane %v1574, 1
          %v1612 = vrot.slane %v1575, 1
          %v1613 = vsel %vm384, %v1611, %v1612
          %v1614 = vrot.slane %v1576, 1
          %v1615 = vrot.slane %v1577, 1
          %v1616 = vsel %vm384, %v1614, %v1615
          %v1617 = vrot.slane %v1578, 1
          %v1618 = vrot.slane %v1579, 1
          %v1619 = vsel %vm384, %v1617, %v1618
          %v1628 = vrot.slane %v1564, 2
          %v1629 = vrot.slane %v1565, 2
          %v1630 = vsel %vm417, %v1628, %v1629
          %v1631 = vrot.slane %v1566, 2
          %v1632 = vrot.slane %v1567, 2
          %v1633 = vsel %vm417, %v1631, %v1632
          %v1634 = vrot.slane %v1568, 2
          %v1635 = vrot.slane %v1569, 2
          %v1636 = vsel %vm417, %v1634, %v1635
          %v1637 = vrot.slane %v1570, 2
          %v1638 = vrot.slane %v1571, 2
          %v1639 = vsel %vm417, %v1637, %v1638
          %v1640 = vrot.slane %v1572, 2
          %v1641 = vrot.slane %v1573, 2
          %v1642 = vsel %vm417, %v1640, %v1641
          %v1643 = vrot.slane %v1574, 2
          %v1644 = vrot.slane %v1575, 2
          %v1645 = vsel %vm417, %v1643, %v1644
          %v1646 = vrot.slane %v1576, 2
          %v1647 = vrot.slane %v1577, 2
          %v1648 = vsel %vm417, %v1646, %v1647
          %v1649 = vrot.slane %v1578, 2
          %v1650 = vrot.slane %v1579, 2
          %v1651 = vsel %vm417, %v1649, %v1650
          %v1660 = vld [vmem:[#allocation7] sm:$0xff]
          %v1661 = vld [vmem:[#allocation7 + $0x8] sm:$0xff]
          %v1662 = vld [vmem:[#allocation7 + $0x10] sm:$0xff]
          %v1663 = vld [vmem:[#allocation7 + $0x18] sm:$0xff]
          %v1664 = vld [vmem:[#allocation7 + $0x20] sm:$0xff]
          %v1665 = vld [vmem:[#allocation7 + $0x28] sm:$0xff]
          %v1666 = vld [vmem:[#allocation7 + $0x30] sm:$0xff]
          %v1667 = vld [vmem:[#allocation7 + $0x38] sm:$0xff]
          %v1668 = vld [vmem:[#allocation7 + $0x40] sm:$0xff]
          %v1669 = vld [vmem:[#allocation7 + $0x48] sm:$0xff]
          %v1670 = vld [vmem:[#allocation7 + $0x50] sm:$0xff]
          %v1671 = vld [vmem:[#allocation7 + $0x58] sm:$0xff]
          %v1672 = vld [vmem:[#allocation7 + $0x60] sm:$0xff]
          %v1673 = vld [vmem:[#allocation7 + $0x68] sm:$0xff]
          %v1674 = vld [vmem:[#allocation7 + $0x70] sm:$0xff]
          %v1675 = vld [vmem:[#allocation7 + $0x78] sm:$0xff]
          %v1676 = vld [vmem:[#allocation7 + $0x80] sm:$0xff]
          %v1677 = vld [vmem:[#allocation7 + $0x88] sm:$0xff]
          %v1678 = vld [vmem:[#allocation7 + $0x90] sm:$0xff]
          %v1679 = vld [vmem:[#allocation7 + $0x98] sm:$0xff]
          %v1680 = vld [vmem:[#allocation7 + $0xa0] sm:$0xff]
          %v1681 = vld [vmem:[#allocation7 + $0xa8] sm:$0xff]
          %v1682 = vld [vmem:[#allocation7 + $0xb0] sm:$0xff]
          %v1683 = vld [vmem:[#allocation7 + $0xb8] sm:$0xff]
          %v1684 = vld [vmem:[#allocation7 + $0xc0] sm:$0xff]
          %v1685 = vld [vmem:[#allocation7 + $0xc8] sm:$0xff]
          %v1686 = vld [vmem:[#allocation7 + $0xd0] sm:$0xff]
          %v1687 = vld [vmem:[#allocation7 + $0xd8] sm:$0xff]
          %v1688 = vld [vmem:[#allocation7 + $0xe0] sm:$0xff]
          %v1689 = vld [vmem:[#allocation7 + $0xe8] sm:$0xff]
          %v1690 = vld [vmem:[#allocation7 + $0xf0] sm:$0xff]
          %v1691 = vld [vmem:[#allocation7 + $0xf8] sm:$0xff]
          %v1692 = vld [vmem:[#allocation7 + $0x100] sm:$0xff]
          %v1693 = vld [vmem:[#allocation7 + $0x108] sm:$0xff]
          %v1694 = vld [vmem:[#allocation7 + $0x110] sm:$0xff]
          %v1695 = vld [vmem:[#allocation7 + $0x118] sm:$0xff]
          %v1696 = vld [vmem:[#allocation7 + $0x120] sm:$0xff]
          %v1697 = vld [vmem:[#allocation7 + $0x128] sm:$0xff]
          %v1698 = vld [vmem:[#allocation7 + $0x130] sm:$0xff]
          %v1699 = vld [vmem:[#allocation7 + $0x138] sm:$0xff]
          %v1700 = vld [vmem:[#allocation7 + $0x140] sm:$0xff]
          %v1701 = vld [vmem:[#allocation7 + $0x148] sm:$0xff]
          %v1702 = vld [vmem:[#allocation7 + $0x150] sm:$0xff]
          %v1703 = vld [vmem:[#allocation7 + $0x158] sm:$0xff]
          %v1704 = vld [vmem:[#allocation7 + $0x160] sm:$0xff]
          %v1705 = vld [vmem:[#allocation7 + $0x168] sm:$0xff]
          %v1706 = vld [vmem:[#allocation7 + $0x170] sm:$0xff]
          %v1707 = vld [vmem:[#allocation7 + $0x178] sm:$0xff]
          %1708 = vmatprep.subr.mxu0 0.0
          %1709 = vmatpush1.msra.mxu0 %v1660
          %1710 = vmatprep.subr.mxu0 0.0
          %1711 = vmatpush1.msra.mxu0 %v1661
          %1712 = vmatprep.subr.mxu0 0.0
          %1713 = vmatpush1.msra.mxu0 %v1662
          %1714 = vmatprep.subr.mxu0 0.0
          %1715 = vmatpush1.msra.mxu0 %v1663
          %1716 = vmatprep.subr.mxu0 0.0
          %1717 = vmatpush1.msra.mxu0 %v1664
          %1718 = vmatprep.subr.mxu0 0.0
          %1719 = vmatpush1.msra.mxu0 %v1665
          %1720 = vmatprep.subr.mxu0 0.0
          %1721 = vmatpush1.msra.mxu0 %v1666
          %1722 = vmatprep.subr.mxu0 0.0
          %1723 = vmatpush1.msra.mxu0 %v1667
          %1724 = vmatprep.subr.mxu0 0.0
          %1725 = vmatpush1.msra.mxu0 %v1668
          %1726 = vmatprep.subr.mxu0 0.0
          %1727 = vmatpush1.msra.mxu0 %v1669
          %1728 = vmatprep.subr.mxu0 0.0
          %1729 = vmatpush1.msra.mxu0 %v1670
          %1730 = vmatprep.subr.mxu0 0.0
          %1731 = vmatpush1.msra.mxu0 %v1671
          %1732 = vmatprep.subr.mxu0 0.0
          %1733 = vmatpush1.msra.mxu0 %v1672
          %1734 = vmatprep.subr.mxu0 0.0
          %1735 = vmatpush1.msra.mxu0 %v1673
          %1736 = vmatprep.subr.mxu0 0.0
          %1737 = vmatpush1.msra.mxu0 %v1674
          %1738 = vmatprep.subr.mxu0 0.0
          %1739 = vmatpush1.msra.mxu0 %v1675
          %1740 = vmatprep.subr.mxu0 0.0
          %1741 = vmatpush1.msra.mxu0 %v1676
          %1742 = vmatprep.subr.mxu0 0.0
          %1743 = vmatpush1.msra.mxu0 %v1677
          %1744 = vmatprep.subr.mxu0 0.0
          %1745 = vmatpush1.msra.mxu0 %v1678
          %1746 = vmatprep.subr.mxu0 0.0
          %1747 = vmatpush1.msra.mxu0 %v1679
          %1748 = vmatprep.subr.mxu0 0.0
          %1749 = vmatpush1.msra.mxu0 %v1680
          %1750 = vmatprep.subr.mxu0 0.0
          %1751 = vmatpush1.msra.mxu0 %v1681
          %1752 = vmatprep.subr.mxu0 0.0
          %1753 = vmatpush1.msra.mxu0 %v1682
          %1754 = vmatprep.subr.mxu0 0.0
          %1755 = vmatpush1.msra.mxu0 %v1683
          %1756 = vmatprep.subr.mxu0 0.0
          %1757 = vmatpush1.msra.mxu0 %v1684
          %1758 = vmatprep.subr.mxu0 0.0
          %1759 = vmatpush1.msra.mxu0 %v1685
          %1760 = vmatprep.subr.mxu0 0.0
          %1761 = vmatpush1.msra.mxu0 %v1686
          %1762 = vmatprep.subr.mxu0 0.0
          %1763 = vmatpush1.msra.mxu0 %v1687
          %1764 = vmatprep.subr.mxu0 0.0
          %1765 = vmatpush1.msra.mxu0 %v1688
          %1766 = vmatprep.subr.mxu0 0.0
          %1767 = vmatpush1.msra.mxu0 %v1689
          %1768 = vmatprep.subr.mxu0 0.0
          %1769 = vmatpush1.msra.mxu0 %v1690
          %1770 = vmatprep.subr.mxu0 0.0
          %1771 = vmatpush1.msra.mxu0 %v1691
          %1772 = vmatprep.mubr.f32.mxu0 %v1598
          %1773 = vmatmul.mubr.f32.gmra.mrb[0].mxu0 %v1564
          %v1774 = vpop.f32.mrb[0].mxu0
          %v1775 = vadd.f32 0.0, %v1774
          %v1776 = vpop.f32.mrb[0].mxu0
          %1777 = vmatprep.mubr.f32.mxu0 %v1601
          %1778 = vmatmul.mubr.f32.gmra.mrb[0].mxu0 %v1566
          %v1779 = vpop.f32.mrb[0].mxu0
          %v1780 = vadd.f32 0.0, %v1779
          %v1781 = vpop.f32.mrb[0].mxu0
          %1782 = vmatprep.mubr.f32.mxu0 %v1604
          %1783 = vmatmul.mubr.f32.gmra.mrb[0].mxu0 %v1568
          %v1784 = vpop.f32.mrb[0].mxu0
          %v1785 = vadd.f32 0.0, %v1784
          %v1786 = vpop.f32.mrb[0].mxu0
          %1787 = vmatprep.mubr.f32.mxu0 %v1607
          %1788 = vmatmul.mubr.f32.gmra.mrb[0].mxu0 %v1570
          %v1789 = vpop.f32.mrb[0].mxu0
          %v1790 = vadd.f32 0.0, %v1789
          %v1791 = vpop.f32.mrb[0].mxu0
          %1792 = vmatprep.mubr.f32.mxu0 %v1610
          %1793 = vmatmul.mubr.f32.gmra.mrb[0].mxu0 %v1572
          %v1794 = vpop.f32.mrb[0].mxu0
          %v1795 = vadd.f32 0.0, %v1794
          %v1796 = vpop.f32.mrb[0].mxu0
          %1797 = vmatprep.mubr.f32.mxu0 %v1613
          %1798 = vmatmul.mubr.f32.gmra.mrb[0].mxu0 %v1574
          %v1799 = vpop.f32.mrb[0].mxu0
          %v1800 = vadd.f32 0.0, %v1799
          %v1801 = vpop.f32.mrb[0].mxu0
          %1802 = vmatprep.mubr.f32.mxu0 %v1616
          %1803 = vmatmul.mubr.f32.gmra.mrb[0].mxu0 %v1576
          %v1804 = vpop.f32.mrb[0].mxu0
          %v1805 = vadd.f32 0.0, %v1804
          %v1806 = vpop.f32.mrb[0].mxu0
          %1807 = vmatprep.mubr.f32.mxu0 %v1619
          %1808 = vmatmul.mubr.f32.gmra.mrb[0].mxu0 %v1578
          %v1809 = vpop.f32.mrb[0].mxu0
          %v1810 = vadd.f32 0.0, %v1809
          %v1811 = vpop.f32.mrb[0].mxu0
          %1812 = vdwg.mxu0
          %1813 = vmatprep.subr.mxu0 0.0
          %1814 = vmatpush1.msra.mxu0 %v1692
          %1815 = vmatprep.subr.mxu0 0.0
          %1816 = vmatpush1.msra.mxu0 %v1693
          %1817 = vmatprep.subr.mxu0 0.0
          %1818 = vmatpush1.msra.mxu0 %v1694
          %1819 = vmatprep.subr.mxu0 0.0
          %1820 = vmatpush1.msra.mxu0 %v1695
          %1821 = vmatprep.subr.mxu0 0.0
          %1822 = vmatpush1.msra.mxu0 %v1696
          %1823 = vmatprep.subr.mxu0 0.0
          %1824 = vmatpush1.msra.mxu0 %v1697
          %1825 = vmatprep.subr.mxu0 0.0
          %1826 = vmatpush1.msra.mxu0 %v1698
          %1827 = vmatprep.subr.mxu0 0.0
          %1828 = vmatpush1.msra.mxu0 %v1699
          %1829 = vmatprep.subr.mxu0 0.0
          %1830 = vmatpush1.msra.mxu0 %v1700
          %1831 = vmatprep.subr.mxu0 0.0
          %1832 = vmatpush1.msra.mxu0 %v1701
          %1833 = vmatprep.subr.mxu0 0.0
          %1834 = vmatpush1.msra.mxu0 %v1702
          %1835 = vmatprep.subr.mxu0 0.0
          %1836 = vmatpush1.msra.mxu0 %v1703
          %1837 = vmatprep.subr.mxu0 0.0
          %1838 = vmatpush1.msra.mxu0 %v1704
          %1839 = vmatprep.subr.mxu0 0.0
          %1840 = vmatpush1.msra.mxu0 %v1705
          %1841 = vmatprep.subr.mxu0 0.0
          %1842 = vmatpush1.msra.mxu0 %v1706
          %1843 = vmatprep.subr.mxu0 0.0
          %1844 = vmatpush1.msra.mxu0 %v1707
          %1845 = vmatprep.subr.mxu0 0.0
          %1846 = vmatpush1.msra.mxu0 0.0
          %1847 = vmatprep.subr.mxu0 0.0
          %1848 = vmatpush1.msra.mxu0 0.0
          %1849 = vmatprep.subr.mxu0 0.0
          %1850 = vmatpush1.msra.mxu0 0.0
          %1851 = vmatprep.subr.mxu0 0.0
          %1852 = vmatpush1.msra.mxu0 0.0
          %1853 = vmatprep.subr.mxu0 0.0
          %1854 = vmatpush1.msra.mxu0 0.0
          %1855 = vmatprep.subr.mxu0 0.0
          %1856 = vmatpush1.msra.mxu0 0.0
          %1857 = vmatprep.subr.mxu0 0.0
          %1858 = vmatpush1.msra.mxu0 0.0
          %1859 = vmatprep.subr.mxu0 0.0
          %1860 = vmatpush1.msra.mxu0 0.0
          %1861 = vmatprep.subr.mxu0 0.0
          %1862 = vmatpush1.msra.mxu0 0.0
          %1863 = vmatprep.subr.mxu0 0.0
          %1864 = vmatpush1.msra.mxu0 0.0
          %1865 = vmatprep.subr.mxu0 0.0
          %1866 = vmatpush1.msra.mxu0 0.0
          %1867 = vmatprep.subr.mxu0 0.0
          %1868 = vmatpush1.msra.mxu0 0.0
          %1869 = vmatprep.subr.mxu0 0.0
          %1870 = vmatpush1.msra.mxu0 0.0
          %1871 = vmatprep.subr.mxu0 0.0
          %1872 = vmatpush1.msra.mxu0 0.0
          %1873 = vmatprep.subr.mxu0 0.0
          %1874 = vmatpush1.msra.mxu0 0.0
          %1875 = vmatprep.subr.mxu0 0.0
          %1876 = vmatpush1.msra.mxu0 0.0
          %1877 = vmatprep.mubr.f32.mxu0 0.0
          %1878 = vmatmul.mubr.f32.gmra.mrb[0].mxu0 %v1630
          %v1879 = vpop.f32.mrb[0].mxu0
          %v1880 = vadd.f32 %v1775, %v1879
          %v1881 = vpop.f32.mrb[0].mxu0
          %1882 = vmatprep.mubr.f32.mxu0 0.0
          %1883 = vmatmul.mubr.f32.gmra.mrb[0].mxu0 %v1633
          %v1884 = vpop.f32.mrb[0].mxu0
          %v1885 = vadd.f32 %v1780, %v1884
          %v1886 = vpop.f32.mrb[0].mxu0
          %1887 = vmatprep.mubr.f32.mxu0 0.0
          %1888 = vmatmul.mubr.f32.gmra.mrb[0].mxu0 %v1636
          %v1889 = vpop.f32.mrb[0].mxu0
          %v1890 = vadd.f32 %v1785, %v1889
          %v1891 = vpop.f32.mrb[0].mxu0
          %1892 = vmatprep.mubr.f32.mxu0 0.0
          %1893 = vmatmul.mubr.f32.gmra.mrb[0].mxu0 %v1639
          %v1894 = vpop.f32.mrb[0].mxu0
          %v1895 = vadd.f32 %v1790, %v1894
          %v1896 = vpop.f32.mrb[0].mxu0
          %1897 = vmatprep.mubr.f32.mxu0 0.0
          %1898 = vmatmul.mubr.f32.gmra.mrb[0].mxu0 %v1642
          %v1899 = vpop.f32.mrb[0].mxu0
          %v1900 = vadd.f32 %v1795, %v1899
          %v1901 = vpop.f32.mrb[0].mxu0
          %1902 = vmatprep.mubr.f32.mxu0 0.0
          %1903 = vmatmul.mubr.f32.gmra.mrb[0].mxu0 %v1645
          %v1904 = vpop.f32.mrb[0].mxu0
          %v1905 = vadd.f32 %v1800, %v1904
          %v1906 = vpop.f32.mrb[0].mxu0
          %1907 = vmatprep.mubr.f32.mxu0 0.0
          %1908 = vmatmul.mubr.f32.gmra.mrb[0].mxu0 %v1648
          %v1909 = vpop.f32.mrb[0].mxu0
          %v1910 = vadd.f32 %v1805, %v1909
          %v1911 = vpop.f32.mrb[0].mxu0
          %1912 = vmatprep.mubr.f32.mxu0 0.0
          %1913 = vmatmul.mubr.f32.gmra.mrb[0].mxu0 %v1651
          %v1914 = vpop.f32.mrb[0].mxu0
          %v1915 = vadd.f32 %v1810, %v1914
          %v1916 = vpop.f32.mrb[0].mxu0
          %1917 = vdwg.mxu0
          %1918 = vst [vmem:[#allocation4] sm:$0xff] %v1880
          %1919 = vst [vmem:[#allocation4 + $0x8] sm:$0xff] %v1885
          %1920 = vst [vmem:[#allocation4 + $0x10] sm:$0xff] %v1890
          %1921 = vst [vmem:[#allocation4 + $0x18] sm:$0xff] %v1895
          %1922 = vst [vmem:[#allocation4 + $0x20] sm:$0xff] %v1900
          %1923 = vst [vmem:[#allocation4 + $0x28] sm:$0xff] %v1905
          %1924 = vst [vmem:[#allocation4 + $0x30] sm:$0xff] %v1910
          %1925 = vst [vmem:[#allocation4 + $0x38] sm:$0xff] %v1915
          %v1926 = vld [vmem:[%s1547] sm:$0xff]
          %v1927 = vld [vmem:[%s1547 + $0x8] sm:$0x3]
          %v1928 = vld [vmem:[%s1547 + $0x10] sm:$0xff]
          %v1929 = vld [vmem:[%s1547 + $0x18] sm:$0x3]
          %v1930 = vld [vmem:[%s1547 + $0x20] sm:$0xff]
          %v1931 = vld [vmem:[%s1547 + $0x28] sm:$0x3]
          %v1932 = vld [vmem:[%s1547 + $0x30] sm:$0xff]
          %v1933 = vld [vmem:[%s1547 + $0x38] sm:$0x3]
          %v1934 = vld [vmem:[%s1547 + $0x40] sm:$0xff]
          %v1935 = vld [vmem:[%s1547 + $0x48] sm:$0x3]
          %v1936 = vld [vmem:[%s1547 + $0x50] sm:$0xff]
          %v1937 = vld [vmem:[%s1547 + $0x58] sm:$0x3]
          %v1938 = vld [vmem:[%s1547 + $0x60] sm:$0xff]
          %v1939 = vld [vmem:[%s1547 + $0x68] sm:$0x3]
          %v1940 = vld [vmem:[%s1547 + $0x70] sm:$0xff]
          %v1941 = vld [vmem:[%s1547 + $0x78] sm:$0x3]
          %v1958 = vrot.slane %v1926, 1
          %v1959 = vrot.slane %v1927, 1
          %v1960 = vsel %vm384, %v1958, %v1959
          %v1961 = vrot.slane %v1928, 1
          %v1962 = vrot.slane %v1929, 1
          %v1963 = vsel %vm384, %v1961, %v1962
          %v1964 = vrot.slane %v1930, 1
          %v1965 = vrot.slane %v1931, 1
          %v1966 = vsel %vm384, %v1964, %v1965
          %v1967 = vrot.slane %v1932, 1
          %v1968 = vrot.slane %v1933, 1
          %v1969 = vsel %vm384, %v1967, %v1968
          %v1970 = vrot.slane %v1934, 1
          %v1971 = vrot.slane %v1935, 1
          %v1972 = vsel %vm384, %v1970, %v1971
          %v1973 = vrot.slane %v1936, 1
          %v1974 = vrot.slane %v1937, 1
          %v1975 = vsel %vm384, %v1973, %v1974
          %v1976 = vrot.slane %v1938, 1
          %v1977 = vrot.slane %v1939, 1
          %v1978 = vsel %vm384, %v1976, %v1977
          %v1979 = vrot.slane %v1940, 1
          %v1980 = vrot.slane %v1941, 1
          %v1981 = vsel %vm384, %v1979, %v1980
          %v1990 = vrot.slane %v1926, 2
          %v1991 = vrot.slane %v1927, 2
          %v1992 = vsel %vm417, %v1990, %v1991
          %v1993 = vrot.slane %v1928, 2
          %v1994 = vrot.slane %v1929, 2
          %v1995 = vsel %vm417, %v1993, %v1994
          %v1996 = vrot.slane %v1930, 2
          %v1997 = vrot.slane %v1931, 2
          %v1998 = vsel %vm417, %v1996, %v1997
          %v1999 = vrot.slane %v1932, 2
          %v2000 = vrot.slane %v1933, 2
          %v2001 = vsel %vm417, %v1999, %v2000
          %v2002 = vrot.slane %v1934, 2
          %v2003 = vrot.slane %v1935, 2
          %v2004 = vsel %vm417, %v2002, %v2003
          %v2005 = vrot.slane %v1936, 2
          %v2006 = vrot.slane %v1937, 2
          %v2007 = vsel %vm417, %v2005, %v2006
          %v2008 = vrot.slane %v1938, 2
          %v2009 = vrot.slane %v1939, 2
          %v2010 = vsel %vm417, %v2008, %v2009
          %v2011 = vrot.slane %v1940, 2
          %v2012 = vrot.slane %v1941, 2
          %v2013 = vsel %vm417, %v2011, %v2012
          %s2022 = scalar_lea.vmem [#allocation7], 384
          %v2023 = vld [vmem:[%s2022] sm:$0xff]
          %v2024 = vld [vmem:[%s2022 + $0x8] sm:$0xff]
          %v2025 = vld [vmem:[%s2022 + $0x10] sm:$0xff]
          %v2026 = vld [vmem:[%s2022 + $0x18] sm:$0xff]
          %v2027 = vld [vmem:[%s2022 + $0x20] sm:$0xff]
          %v2028 = vld [vmem:[%s2022 + $0x28] sm:$0xff]
          %v2029 = vld [vmem:[%s2022 + $0x30] sm:$0xff]
          %v2030 = vld [vmem:[%s2022 + $0x38] sm:$0xff]
          %v2031 = vld [vmem:[%s2022 + $0x40] sm:$0xff]
          %v2032 = vld [vmem:[%s2022 + $0x48] sm:$0xff]
          %v2033 = vld [vmem:[%s2022 + $0x50] sm:$0xff]
          %v2034 = vld [vmem:[%s2022 + $0x58] sm:$0xff]
          %v2035 = vld [vmem:[%s2022 + $0x60] sm:$0xff]
          %v2036 = vld [vmem:[%s2022 + $0x68] sm:$0xff]
          %v2037 = vld [vmem:[%s2022 + $0x70] sm:$0xff]
          %v2038 = vld [vmem:[%s2022 + $0x78] sm:$0xff]
          %v2039 = vld [vmem:[%s2022 + $0x80] sm:$0xff]
          %v2040 = vld [vmem:[%s2022 + $0x88] sm:$0xff]
          %v2041 = vld [vmem:[%s2022 + $0x90] sm:$0xff]
          %v2042 = vld [vmem:[%s2022 + $0x98] sm:$0xff]
          %v2043 = vld [vmem:[%s2022 + $0xa0] sm:$0xff]
          %v2044 = vld [vmem:[%s2022 + $0xa8] sm:$0xff]
          %v2045 = vld [vmem:[%s2022 + $0xb0] sm:$0xff]
          %v2046 = vld [vmem:[%s2022 + $0xb8] sm:$0xff]
          %v2047 = vld [vmem:[%s2022 + $0xc0] sm:$0xff]
          %v2048 = vld [vmem:[%s2022 + $0xc8] sm:$0xff]
          %v2049 = vld [vmem:[%s2022 + $0xd0] sm:$0xff]
          %v2050 = vld [vmem:[%s2022 + $0xd8] sm:$0xff]
          %v2051 = vld [vmem:[%s2022 + $0xe0] sm:$0xff]
          %v2052 = vld [vmem:[%s2022 + $0xe8] sm:$0xff]
          %v2053 = vld [vmem:[%s2022 + $0xf0] sm:$0xff]
          %v2054 = vld [vmem:[%s2022 + $0xf8] sm:$0xff]
          %v2055 = vld [vmem:[%s2022 + $0x100] sm:$0xff]
          %v2056 = vld [vmem:[%s2022 + $0x108] sm:$0xff]
          %v2057 = vld [vmem:[%s2022 + $0x110] sm:$0xff]
          %v2058 = vld [vmem:[%s2022 + $0x118] sm:$0xff]
          %v2059 = vld [vmem:[%s2022 + $0x120] sm:$0xff]
          %v2060 = vld [vmem:[%s2022 + $0x128] sm:$0xff]
          %v2061 = vld [vmem:[%s2022 + $0x130] sm:$0xff]
          %v2062 = vld [vmem:[%s2022 + $0x138] sm:$0xff]
          %v2063 = vld [vmem:[%s2022 + $0x140] sm:$0xff]
          %v2064 = vld [vmem:[%s2022 + $0x148] sm:$0xff]
          %v2065 = vld [vmem:[%s2022 + $0x150] sm:$0xff]
          %v2066 = vld [vmem:[%s2022 + $0x158] sm:$0xff]
          %v2067 = vld [vmem:[%s2022 + $0x160] sm:$0xff]
          %v2068 = vld [vmem:[%s2022 + $0x168] sm:$0xff]
          %v2069 = vld [vmem:[%s2022 + $0x170] sm:$0xff]
          %v2070 = vld [vmem:[%s2022 + $0x178] sm:$0xff]
          %2071 = vmatprep.subr.mxu0 0.0
          %2072 = vmatpush1.msra.mxu0 %v2023
          %2073 = vmatprep.subr.mxu0 0.0
          %2074 = vmatpush1.msra.mxu0 %v2024
          %2075 = vmatprep.subr.mxu0 0.0
          %2076 = vmatpush1.msra.mxu0 %v2025
          %2077 = vmatprep.subr.mxu0 0.0
          %2078 = vmatpush1.msra.mxu0 %v2026
          %2079 = vmatprep.subr.mxu0 0.0
          %2080 = vmatpush1.msra.mxu0 %v2027
          %2081 = vmatprep.subr.mxu0 0.0
          %2082 = vmatpush1.msra.mxu0 %v2028
          %2083 = vmatprep.subr.mxu0 0.0
          %2084 = vmatpush1.msra.mxu0 %v2029
          %2085 = vmatprep.subr.mxu0 0.0
          %2086 = vmatpush1.msra.mxu0 %v2030
          %2087 = vmatprep.subr.mxu0 0.0
          %2088 = vmatpush1.msra.mxu0 %v2031
          %2089 = vmatprep.subr.mxu0 0.0
          %2090 = vmatpush1.msra.mxu0 %v2032
          %2091 = vmatprep.subr.mxu0 0.0
          %2092 = vmatpush1.msra.mxu0 %v2033
          %2093 = vmatprep.subr.mxu0 0.0
          %2094 = vmatpush1.msra.mxu0 %v2034
          %2095 = vmatprep.subr.mxu0 0.0
          %2096 = vmatpush1.msra.mxu0 %v2035
          %2097 = vmatprep.subr.mxu0 0.0
          %2098 = vmatpush1.msra.mxu0 %v2036
          %2099 = vmatprep.subr.mxu0 0.0
          %2100 = vmatpush1.msra.mxu0 %v2037
          %2101 = vmatprep.subr.mxu0 0.0
          %2102 = vmatpush1.msra.mxu0 %v2038
          %2103 = vmatprep.subr.mxu0 0.0
          %2104 = vmatpush1.msra.mxu0 %v2039
          %2105 = vmatprep.subr.mxu0 0.0
          %2106 = vmatpush1.msra.mxu0 %v2040
          %2107 = vmatprep.subr.mxu0 0.0
          %2108 = vmatpush1.msra.mxu0 %v2041
          %2109 = vmatprep.subr.mxu0 0.0
          %2110 = vmatpush1.msra.mxu0 %v2042
          %2111 = vmatprep.subr.mxu0 0.0
          %2112 = vmatpush1.msra.mxu0 %v2043
          %2113 = vmatprep.subr.mxu0 0.0
          %2114 = vmatpush1.msra.mxu0 %v2044
          %2115 = vmatprep.subr.mxu0 0.0
          %2116 = vmatpush1.msra.mxu0 %v2045
          %2117 = vmatprep.subr.mxu0 0.0
          %2118 = vmatpush1.msra.mxu0 %v2046
          %2119 = vmatprep.subr.mxu0 0.0
          %2120 = vmatpush1.msra.mxu0 %v2047
          %2121 = vmatprep.subr.mxu0 0.0
          %2122 = vmatpush1.msra.mxu0 %v2048
          %2123 = vmatprep.subr.mxu0 0.0
          %2124 = vmatpush1.msra.mxu0 %v2049
          %2125 = vmatprep.subr.mxu0 0.0
          %2126 = vmatpush1.msra.mxu0 %v2050
          %2127 = vmatprep.subr.mxu0 0.0
          %2128 = vmatpush1.msra.mxu0 %v2051
          %2129 = vmatprep.subr.mxu0 0.0
          %2130 = vmatpush1.msra.mxu0 %v2052
          %2131 = vmatprep.subr.mxu0 0.0
          %2132 = vmatpush1.msra.mxu0 %v2053
          %2133 = vmatprep.subr.mxu0 0.0
          %2134 = vmatpush1.msra.mxu0 %v2054
          %2135 = vmatprep.mubr.f32.mxu0 %v1960
          %2136 = vmatmul.mubr.f32.gmra.mrb[0].mxu0 %v1926
          %v2137 = vpop.f32.mrb[0].mxu0
          %v2138 = vadd.f32 0.0, %v2137
          %v2139 = vpop.f32.mrb[0].mxu0
          %2140 = vmatprep.mubr.f32.mxu0 %v1963
          %2141 = vmatmul.mubr.f32.gmra.mrb[0].mxu0 %v1928
          %v2142 = vpop.f32.mrb[0].mxu0
          %v2143 = vadd.f32 0.0, %v2142
          %v2144 = vpop.f32.mrb[0].mxu0
          %2145 = vmatprep.mubr.f32.mxu0 %v1966
          %2146 = vmatmul.mubr.f32.gmra.mrb[0].mxu0 %v1930
          %v2147 = vpop.f32.mrb[0].mxu0
          %v2148 = vadd.f32 0.0, %v2147
          %v2149 = vpop.f32.mrb[0].mxu0
          %2150 = vmatprep.mubr.f32.mxu0 %v1969
          %2151 = vmatmul.mubr.f32.gmra.mrb[0].mxu0 %v1932
          %v2152 = vpop.f32.mrb[0].mxu0
          %v2153 = vadd.f32 0.0, %v2152
          %v2154 = vpop.f32.mrb[0].mxu0
          %2155 = vmatprep.mubr.f32.mxu0 %v1972
          %2156 = vmatmul.mubr.f32.gmra.mrb[0].mxu0 %v1934
          %v2157 = vpop.f32.mrb[0].mxu0
          %v2158 = vadd.f32 0.0, %v2157
          %v2159 = vpop.f32.mrb[0].mxu0
          %2160 = vmatprep.mubr.f32.mxu0 %v1975
          %2161 = vmatmul.mubr.f32.gmra.mrb[0].mxu0 %v1936
          %v2162 = vpop.f32.mrb[0].mxu0
          %v2163 = vadd.f32 0.0, %v2162
          %v2164 = vpop.f32.mrb[0].mxu0
          %2165 = vmatprep.mubr.f32.mxu0 %v1978
          %2166 = vmatmul.mubr.f32.gmra.mrb[0].mxu0 %v1938
          %v2167 = vpop.f32.mrb[0].mxu0
          %v2168 = vadd.f32 0.0, %v2167
          %v2169 = vpop.f32.mrb[0].mxu0
          %2170 = vmatprep.mubr.f32.mxu0 %v1981
          %2171 = vmatmul.mubr.f32.gmra.mrb[0].mxu0 %v1940
          %v2172 = vpop.f32.mrb[0].mxu0
          %v2173 = vadd.f32 0.0, %v2172
          %v2174 = vpop.f32.mrb[0].mxu0
          %2175 = vdwg.mxu0
          %2176 = vmatprep.subr.mxu0 0.0
          %2177 = vmatpush1.msra.mxu0 %v2055
          %2178 = vmatprep.subr.mxu0 0.0
          %2179 = vmatpush1.msra.mxu0 %v2056
          %2180 = vmatprep.subr.mxu0 0.0
          %2181 = vmatpush1.msra.mxu0 %v2057
          %2182 = vmatprep.subr.mxu0 0.0
          %2183 = vmatpush1.msra.mxu0 %v2058
          %2184 = vmatprep.subr.mxu0 0.0
          %2185 = vmatpush1.msra.mxu0 %v2059
          %2186 = vmatprep.subr.mxu0 0.0
          %2187 = vmatpush1.msra.mxu0 %v2060
          %2188 = vmatprep.subr.mxu0 0.0
          %2189 = vmatpush1.msra.mxu0 %v2061
          %2190 = vmatprep.subr.mxu0 0.0
          %2191 = vmatpush1.msra.mxu0 %v2062
          %2192 = vmatprep.subr.mxu0 0.0
          %2193 = vmatpush1.msra.mxu0 %v2063
          %2194 = vmatprep.subr.mxu0 0.0
          %2195 = vmatpush1.msra.mxu0 %v2064
          %2196 = vmatprep.subr.mxu0 0.0
          %2197 = vmatpush1.msra.mxu0 %v2065
          %2198 = vmatprep.subr.mxu0 0.0
          %2199 = vmatpush1.msra.mxu0 %v2066
          %2200 = vmatprep.subr.mxu0 0.0
          %2201 = vmatpush1.msra.mxu0 %v2067
          %2202 = vmatprep.subr.mxu0 0.0
          %2203 = vmatpush1.msra.mxu0 %v2068
          %2204 = vmatprep.subr.mxu0 0.0
          %2205 = vmatpush1.msra.mxu0 %v2069
          %2206 = vmatprep.subr.mxu0 0.0
          %2207 = vmatpush1.msra.mxu0 %v2070
          %2208 = vmatprep.subr.mxu0 0.0
          %2209 = vmatpush1.msra.mxu0 0.0
          %2210 = vmatprep.subr.mxu0 0.0
          %2211 = vmatpush1.msra.mxu0 0.0
          %2212 = vmatprep.subr.mxu0 0.0
          %2213 = vmatpush1.msra.mxu0 0.0
          %2214 = vmatprep.subr.mxu0 0.0
          %2215 = vmatpush1.msra.mxu0 0.0
          %2216 = vmatprep.subr.mxu0 0.0
          %2217 = vmatpush1.msra.mxu0 0.0
          %2218 = vmatprep.subr.mxu0 0.0
          %2219 = vmatpush1.msra.mxu0 0.0
          %2220 = vmatprep.subr.mxu0 0.0
          %2221 = vmatpush1.msra.mxu0 0.0
          %2222 = vmatprep.subr.mxu0 0.0
          %2223 = vmatpush1.msra.mxu0 0.0
          %2224 = vmatprep.subr.mxu0 0.0
          %2225 = vmatpush1.msra.mxu0 0.0
          %2226 = vmatprep.subr.mxu0 0.0
          %2227 = vmatpush1.msra.mxu0 0.0
          %2228 = vmatprep.subr.mxu0 0.0
          %2229 = vmatpush1.msra.mxu0 0.0
          %2230 = vmatprep.subr.mxu0 0.0
          %2231 = vmatpush1.msra.mxu0 0.0
          %2232 = vmatprep.subr.mxu0 0.0
          %2233 = vmatpush1.msra.mxu0 0.0
          %2234 = vmatprep.subr.mxu0 0.0
          %2235 = vmatpush1.msra.mxu0 0.0
          %2236 = vmatprep.subr.mxu0 0.0
          %2237 = vmatpush1.msra.mxu0 0.0
          %2238 = vmatprep.subr.mxu0 0.0
          %2239 = vmatpush1.msra.mxu0 0.0
          %2240 = vmatprep.mubr.f32.mxu0 0.0
          %2241 = vmatmul.mubr.f32.gmra.mrb[0].mxu0 %v1992
          %v2242 = vpop.f32.mrb[0].mxu0
          %v2243 = vadd.f32 %v2138, %v2242
          %v2244 = vpop.f32.mrb[0].mxu0
          %2245 = vmatprep.mubr.f32.mxu0 0.0
          %2246 = vmatmul.mubr.f32.gmra.mrb[0].mxu0 %v1995
          %v2247 = vpop.f32.mrb[0].mxu0
          %v2248 = vadd.f32 %v2143, %v2247
          %v2249 = vpop.f32.mrb[0].mxu0
          %2250 = vmatprep.mubr.f32.mxu0 0.0
          %2251 = vmatmul.mubr.f32.gmra.mrb[0].mxu0 %v1998
          %v2252 = vpop.f32.mrb[0].mxu0
          %v2253 = vadd.f32 %v2148, %v2252
          %v2254 = vpop.f32.mrb[0].mxu0
          %2255 = vmatprep.mubr.f32.mxu0 0.0
          %2256 = vmatmul.mubr.f32.gmra.mrb[0].mxu0 %v2001
          %v2257 = vpop.f32.mrb[0].mxu0
          %v2258 = vadd.f32 %v2153, %v2257
          %v2259 = vpop.f32.mrb[0].mxu0
          %2260 = vmatprep.mubr.f32.mxu0 0.0
          %2261 = vmatmul.mubr.f32.gmra.mrb[0].mxu0 %v2004
          %v2262 = vpop.f32.mrb[0].mxu0
          %v2263 = vadd.f32 %v2158, %v2262
          %v2264 = vpop.f32.mrb[0].mxu0
          %2265 = vmatprep.mubr.f32.mxu0 0.0
          %2266 = vmatmul.mubr.f32.gmra.mrb[0].mxu0 %v2007
          %v2267 = vpop.f32.mrb[0].mxu0
          %v2268 = vadd.f32 %v2163, %v2267
          %v2269 = vpop.f32.mrb[0].mxu0
          %2270 = vmatprep.mubr.f32.mxu0 0.0
          %2271 = vmatmul.mubr.f32.gmra.mrb[0].mxu0 %v2010
          %v2272 = vpop.f32.mrb[0].mxu0
          %v2273 = vadd.f32 %v2168, %v2272
          %v2274 = vpop.f32.mrb[0].mxu0
          %2275 = vmatprep.mubr.f32.mxu0 0.0
          %2276 = vmatmul.mubr.f32.gmra.mrb[0].mxu0 %v2013
          %v2277 = vpop.f32.mrb[0].mxu0
          %v2278 = vadd.f32 %v2173, %v2277
          %v2279 = vpop.f32.mrb[0].mxu0
          %2280 = vdwg.mxu0
          %v2281 = vld [vmem:[#allocation4] sm:$0xff]
          %v2282 = vld [vmem:[#allocation4 + $0x8] sm:$0xff]
          %v2283 = vld [vmem:[#allocation4 + $0x10] sm:$0xff]
          %v2284 = vld [vmem:[#allocation4 + $0x18] sm:$0xff]
          %v2285 = vld [vmem:[#allocation4 + $0x20] sm:$0xff]
          %v2286 = vld [vmem:[#allocation4 + $0x28] sm:$0xff]
          %v2287 = vld [vmem:[#allocation4 + $0x30] sm:$0xff]
          %v2288 = vld [vmem:[#allocation4 + $0x38] sm:$0xff]
          %v2289 = vadd.f32 %v2281, %v2243
          %v2290 = vadd.f32 %v2282, %v2248
          %v2291 = vadd.f32 %v2283, %v2253
          %v2292 = vadd.f32 %v2284, %v2258
          %v2293 = vadd.f32 %v2285, %v2263
          %v2294 = vadd.f32 %v2286, %v2268
          %v2295 = vadd.f32 %v2287, %v2273
          %v2296 = vadd.f32 %v2288, %v2278
          %2297 = vst [vmem:[#allocation4] sm:$0xff] %v2289
          %2298 = vst [vmem:[#allocation4 + $0x8] sm:$0xff] %v2290
          %2299 = vst [vmem:[#allocation4 + $0x10] sm:$0xff] %v2291
          %2300 = vst [vmem:[#allocation4 + $0x18] sm:$0xff] %v2292
          %2301 = vst [vmem:[#allocation4 + $0x20] sm:$0xff] %v2293
          %2302 = vst [vmem:[#allocation4 + $0x28] sm:$0xff] %v2294
          %2303 = vst [vmem:[#allocation4 + $0x30] sm:$0xff] %v2295
          %2304 = vst [vmem:[#allocation4 + $0x38] sm:$0xff] %v2296
          %s2305 = scalar_lea.vmem [#allocation3], %s1095
          %v2306 = vld [vmem:[%s2305] sm:$0xff]
          %v2307 = vld [vmem:[%s2305 + $0x8] sm:$0x3]
          %v2308 = vld [vmem:[%s2305 + $0x10] sm:$0xff]
          %v2309 = vld [vmem:[%s2305 + $0x18] sm:$0x3]
          %v2310 = vld [vmem:[%s2305 + $0x20] sm:$0xff]
          %v2311 = vld [vmem:[%s2305 + $0x28] sm:$0x3]
          %v2312 = vld [vmem:[%s2305 + $0x30] sm:$0xff]
          %v2313 = vld [vmem:[%s2305 + $0x38] sm:$0x3]
          %v2314 = vld [vmem:[%s2305 + $0x40] sm:$0xff]
          %v2315 = vld [vmem:[%s2305 + $0x48] sm:$0x3]
          %v2316 = vld [vmem:[%s2305 + $0x50] sm:$0xff]
          %v2317 = vld [vmem:[%s2305 + $0x58] sm:$0x3]
          %v2318 = vld [vmem:[%s2305 + $0x60] sm:$0xff]
          %v2319 = vld [vmem:[%s2305 + $0x68] sm:$0x3]
          %v2320 = vld [vmem:[%s2305 + $0x70] sm:$0xff]
          %v2321 = vld [vmem:[%s2305 + $0x78] sm:$0x3]
          %v2338 = vrot.slane %v2306, 1
          %v2339 = vrot.slane %v2307, 1
          %v2340 = vsel %vm384, %v2338, %v2339
          %v2341 = vrot.slane %v2308, 1
          %v2342 = vrot.slane %v2309, 1
          %v2343 = vsel %vm384, %v2341, %v2342
          %v2344 = vrot.slane %v2310, 1
          %v2345 = vrot.slane %v2311, 1
          %v2346 = vsel %vm384, %v2344, %v2345
          %v2347 = vrot.slane %v2312, 1
          %v2348 = vrot.slane %v2313, 1
          %v2349 = vsel %vm384, %v2347, %v2348
          %v2350 = vrot.slane %v2314, 1
          %v2351 = vrot.slane %v2315, 1
          %v2352 = vsel %vm384, %v2350, %v2351
          %v2353 = vrot.slane %v2316, 1
          %v2354 = vrot.slane %v2317, 1
          %v2355 = vsel %vm384, %v2353, %v2354
          %v2356 = vrot.slane %v2318, 1
          %v2357 = vrot.slane %v2319, 1
          %v2358 = vsel %vm384, %v2356, %v2357
          %v2359 = vrot.slane %v2320, 1
          %v2360 = vrot.slane %v2321, 1
          %v2361 = vsel %vm384, %v2359, %v2360
          %v2370 = vrot.slane %v2306, 2
          %v2371 = vrot.slane %v2307, 2
          %v2372 = vsel %vm417, %v2370, %v2371
          %v2373 = vrot.slane %v2308, 2
          %v2374 = vrot.slane %v2309, 2
          %v2375 = vsel %vm417, %v2373, %v2374
          %v2376 = vrot.slane %v2310, 2
          %v2377 = vrot.slane %v2311, 2
          %v2378 = vsel %vm417, %v2376, %v2377
          %v2379 = vrot.slane %v2312, 2
          %v2380 = vrot.slane %v2313, 2
          %v2381 = vsel %vm417, %v2379, %v2380
          %v2382 = vrot.slane %v2314, 2
          %v2383 = vrot.slane %v2315, 2
          %v2384 = vsel %vm417, %v2382, %v2383
          %v2385 = vrot.slane %v2316, 2
          %v2386 = vrot.slane %v2317, 2
          %v2387 = vsel %vm417, %v2385, %v2386
          %v2388 = vrot.slane %v2318, 2
          %v2389 = vrot.slane %v2319, 2
          %v2390 = vsel %vm417, %v2388, %v2389
          %v2391 = vrot.slane %v2320, 2
          %v2392 = vrot.slane %v2321, 2
          %v2393 = vsel %vm417, %v2391, %v2392
          %s2402 = scalar_lea.vmem [#allocation7], 768
          %v2403 = vld [vmem:[%s2402] sm:$0xff]
          %v2404 = vld [vmem:[%s2402 + $0x8] sm:$0xff]
          %v2405 = vld [vmem:[%s2402 + $0x10] sm:$0xff]
          %v2406 = vld [vmem:[%s2402 + $0x18] sm:$0xff]
          %v2407 = vld [vmem:[%s2402 + $0x20] sm:$0xff]
          %v2408 = vld [vmem:[%s2402 + $0x28] sm:$0xff]
          %v2409 = vld [vmem:[%s2402 + $0x30] sm:$0xff]
          %v2410 = vld [vmem:[%s2402 + $0x38] sm:$0xff]
          %v2411 = vld [vmem:[%s2402 + $0x40] sm:$0xff]
          %v2412 = vld [vmem:[%s2402 + $0x48] sm:$0xff]
          %v2413 = vld [vmem:[%s2402 + $0x50] sm:$0xff]
          %v2414 = vld [vmem:[%s2402 + $0x58] sm:$0xff]
          %v2415 = vld [vmem:[%s2402 + $0x60] sm:$0xff]
          %v2416 = vld [vmem:[%s2402 + $0x68] sm:$0xff]
          %v2417 = vld [vmem:[%s2402 + $0x70] sm:$0xff]
          %v2418 = vld [vmem:[%s2402 + $0x78] sm:$0xff]
          %v2419 = vld [vmem:[%s2402 + $0x80] sm:$0xff]
          %v2420 = vld [vmem:[%s2402 + $0x88] sm:$0xff]
          %v2421 = vld [vmem:[%s2402 + $0x90] sm:$0xff]
          %v2422 = vld [vmem:[%s2402 + $0x98] sm:$0xff]
          %v2423 = vld [vmem:[%s2402 + $0xa0] sm:$0xff]
          %v2424 = vld [vmem:[%s2402 + $0xa8] sm:$0xff]
          %v2425 = vld [vmem:[%s2402 + $0xb0] sm:$0xff]
          %v2426 = vld [vmem:[%s2402 + $0xb8] sm:$0xff]
          %v2427 = vld [vmem:[%s2402 + $0xc0] sm:$0xff]
          %v2428 = vld [vmem:[%s2402 + $0xc8] sm:$0xff]
          %v2429 = vld [vmem:[%s2402 + $0xd0] sm:$0xff]
          %v2430 = vld [vmem:[%s2402 + $0xd8] sm:$0xff]
          %v2431 = vld [vmem:[%s2402 + $0xe0] sm:$0xff]
          %v2432 = vld [vmem:[%s2402 + $0xe8] sm:$0xff]
          %v2433 = vld [vmem:[%s2402 + $0xf0] sm:$0xff]
          %v2434 = vld [vmem:[%s2402 + $0xf8] sm:$0xff]
          %v2435 = vld [vmem:[%s2402 + $0x100] sm:$0xff]
          %v2436 = vld [vmem:[%s2402 + $0x108] sm:$0xff]
          %v2437 = vld [vmem:[%s2402 + $0x110] sm:$0xff]
          %v2438 = vld [vmem:[%s2402 + $0x118] sm:$0xff]
          %v2439 = vld [vmem:[%s2402 + $0x120] sm:$0xff]
          %v2440 = vld [vmem:[%s2402 + $0x128] sm:$0xff]
          %v2441 = vld [vmem:[%s2402 + $0x130] sm:$0xff]
          %v2442 = vld [vmem:[%s2402 + $0x138] sm:$0xff]
          %v2443 = vld [vmem:[%s2402 + $0x140] sm:$0xff]
          %v2444 = vld [vmem:[%s2402 + $0x148] sm:$0xff]
          %v2445 = vld [vmem:[%s2402 + $0x150] sm:$0xff]
          %v2446 = vld [vmem:[%s2402 + $0x158] sm:$0xff]
          %v2447 = vld [vmem:[%s2402 + $0x160] sm:$0xff]
          %v2448 = vld [vmem:[%s2402 + $0x168] sm:$0xff]
          %v2449 = vld [vmem:[%s2402 + $0x170] sm:$0xff]
          %v2450 = vld [vmem:[%s2402 + $0x178] sm:$0xff]
          %2451 = vmatprep.subr.mxu0 0.0
          %2452 = vmatpush1.msra.mxu0 %v2403
          %2453 = vmatprep.subr.mxu0 0.0
          %2454 = vmatpush1.msra.mxu0 %v2404
          %2455 = vmatprep.subr.mxu0 0.0
          %2456 = vmatpush1.msra.mxu0 %v2405
          %2457 = vmatprep.subr.mxu0 0.0
          %2458 = vmatpush1.msra.mxu0 %v2406
          %2459 = vmatprep.subr.mxu0 0.0
          %2460 = vmatpush1.msra.mxu0 %v2407
          %2461 = vmatprep.subr.mxu0 0.0
          %2462 = vmatpush1.msra.mxu0 %v2408
          %2463 = vmatprep.subr.mxu0 0.0
          %2464 = vmatpush1.msra.mxu0 %v2409
          %2465 = vmatprep.subr.mxu0 0.0
          %2466 = vmatpush1.msra.mxu0 %v2410
          %2467 = vmatprep.subr.mxu0 0.0
          %2468 = vmatpush1.msra.mxu0 %v2411
          %2469 = vmatprep.subr.mxu0 0.0
          %2470 = vmatpush1.msra.mxu0 %v2412
          %2471 = vmatprep.subr.mxu0 0.0
          %2472 = vmatpush1.msra.mxu0 %v2413
          %2473 = vmatprep.subr.mxu0 0.0
          %2474 = vmatpush1.msra.mxu0 %v2414
          %2475 = vmatprep.subr.mxu0 0.0
          %2476 = vmatpush1.msra.mxu0 %v2415
          %2477 = vmatprep.subr.mxu0 0.0
          %2478 = vmatpush1.msra.mxu0 %v2416
          %2479 = vmatprep.subr.mxu0 0.0
          %2480 = vmatpush1.msra.mxu0 %v2417
          %2481 = vmatprep.subr.mxu0 0.0
          %2482 = vmatpush1.msra.mxu0 %v2418
          %2483 = vmatprep.subr.mxu0 0.0
          %2484 = vmatpush1.msra.mxu0 %v2419
          %2485 = vmatprep.subr.mxu0 0.0
          %2486 = vmatpush1.msra.mxu0 %v2420
          %2487 = vmatprep.subr.mxu0 0.0
          %2488 = vmatpush1.msra.mxu0 %v2421
          %2489 = vmatprep.subr.mxu0 0.0
          %2490 = vmatpush1.msra.mxu0 %v2422
          %2491 = vmatprep.subr.mxu0 0.0
          %2492 = vmatpush1.msra.mxu0 %v2423
          %2493 = vmatprep.subr.mxu0 0.0
          %2494 = vmatpush1.msra.mxu0 %v2424
          %2495 = vmatprep.subr.mxu0 0.0
          %2496 = vmatpush1.msra.mxu0 %v2425
          %2497 = vmatprep.subr.mxu0 0.0
          %2498 = vmatpush1.msra.mxu0 %v2426
          %2499 = vmatprep.subr.mxu0 0.0
          %2500 = vmatpush1.msra.mxu0 %v2427
          %2501 = vmatprep.subr.mxu0 0.0
          %2502 = vmatpush1.msra.mxu0 %v2428
          %2503 = vmatprep.subr.mxu0 0.0
          %2504 = vmatpush1.msra.mxu0 %v2429
          %2505 = vmatprep.subr.mxu0 0.0
          %2506 = vmatpush1.msra.mxu0 %v2430
          %2507 = vmatprep.subr.mxu0 0.0
          %2508 = vmatpush1.msra.mxu0 %v2431
          %2509 = vmatprep.subr.mxu0 0.0
          %2510 = vmatpush1.msra.mxu0 %v2432
          %2511 = vmatprep.subr.mxu0 0.0
          %2512 = vmatpush1.msra.mxu0 %v2433
          %2513 = vmatprep.subr.mxu0 0.0
          %2514 = vmatpush1.msra.mxu0 %v2434
          %2515 = vmatprep.mubr.f32.mxu0 %v2340
          %2516 = vmatmul.mubr.f32.gmra.mrb[0].mxu0 %v2306
          %v2517 = vpop.f32.mrb[0].mxu0
          %v2518 = vadd.f32 0.0, %v2517
          %v2519 = vpop.f32.mrb[0].mxu0
          %2520 = vmatprep.mubr.f32.mxu0 %v2343
          %2521 = vmatmul.mubr.f32.gmra.mrb[0].mxu0 %v2308
          %v2522 = vpop.f32.mrb[0].mxu0
          %v2523 = vadd.f32 0.0, %v2522
          %v2524 = vpop.f32.mrb[0].mxu0
          %2525 = vmatprep.mubr.f32.mxu0 %v2346
          %2526 = vmatmul.mubr.f32.gmra.mrb[0].mxu0 %v2310
          %v2527 = vpop.f32.mrb[0].mxu0
          %v2528 = vadd.f32 0.0, %v2527
          %v2529 = vpop.f32.mrb[0].mxu0
          %2530 = vmatprep.mubr.f32.mxu0 %v2349
          %2531 = vmatmul.mubr.f32.gmra.mrb[0].mxu0 %v2312
          %v2532 = vpop.f32.mrb[0].mxu0
          %v2533 = vadd.f32 0.0, %v2532
          %v2534 = vpop.f32.mrb[0].mxu0
          %2535 = vmatprep.mubr.f32.mxu0 %v2352
          %2536 = vmatmul.mubr.f32.gmra.mrb[0].mxu0 %v2314
          %v2537 = vpop.f32.mrb[0].mxu0
          %v2538 = vadd.f32 0.0, %v2537
          %v2539 = vpop.f32.mrb[0].mxu0
          %2540 = vmatprep.mubr.f32.mxu0 %v2355
          %2541 = vmatmul.mubr.f32.gmra.mrb[0].mxu0 %v2316
          %v2542 = vpop.f32.mrb[0].mxu0
          %v2543 = vadd.f32 0.0, %v2542
          %v2544 = vpop.f32.mrb[0].mxu0
          %2545 = vmatprep.mubr.f32.mxu0 %v2358
          %2546 = vmatmul.mubr.f32.gmra.mrb[0].mxu0 %v2318
          %v2547 = vpop.f32.mrb[0].mxu0
          %v2548 = vadd.f32 0.0, %v2547
          %v2549 = vpop.f32.mrb[0].mxu0
          %2550 = vmatprep.mubr.f32.mxu0 %v2361
          %2551 = vmatmul.mubr.f32.gmra.mrb[0].mxu0 %v2320
          %v2552 = vpop.f32.mrb[0].mxu0
          %v2553 = vadd.f32 0.0, %v2552
          %v2554 = vpop.f32.mrb[0].mxu0
          %2555 = vdwg.mxu0
          %2556 = vmatprep.subr.mxu0 0.0
          %2557 = vmatpush1.msra.mxu0 %v2435
          %2558 = vmatprep.subr.mxu0 0.0
          %2559 = vmatpush1.msra.mxu0 %v2436
          %2560 = vmatprep.subr.mxu0 0.0
          %2561 = vmatpush1.msra.mxu0 %v2437
          %2562 = vmatprep.subr.mxu0 0.0
          %2563 = vmatpush1.msra.mxu0 %v2438
          %2564 = vmatprep.subr.mxu0 0.0
          %2565 = vmatpush1.msra.mxu0 %v2439
          %2566 = vmatprep.subr.mxu0 0.0
          %2567 = vmatpush1.msra.mxu0 %v2440
          %2568 = vmatprep.subr.mxu0 0.0
          %2569 = vmatpush1.msra.mxu0 %v2441
          %2570 = vmatprep.subr.mxu0 0.0
          %2571 = vmatpush1.msra.mxu0 %v2442
          %2572 = vmatprep.subr.mxu0 0.0
          %2573 = vmatpush1.msra.mxu0 %v2443
          %2574 = vmatprep.subr.mxu0 0.0
          %2575 = vmatpush1.msra.mxu0 %v2444
          %2576 = vmatprep.subr.mxu0 0.0
          %2577 = vmatpush1.msra.mxu0 %v2445
          %2578 = vmatprep.subr.mxu0 0.0
          %2579 = vmatpush1.msra.mxu0 %v2446
          %2580 = vmatprep.subr.mxu0 0.0
          %2581 = vmatpush1.msra.mxu0 %v2447
          %2582 = vmatprep.subr.mxu0 0.0
          %2583 = vmatpush1.msra.mxu0 %v2448
          %2584 = vmatprep.subr.mxu0 0.0
          %2585 = vmatpush1.msra.mxu0 %v2449
          %2586 = vmatprep.subr.mxu0 0.0
          %2587 = vmatpush1.msra.mxu0 %v2450
          %2588 = vmatprep.subr.mxu0 0.0
          %2589 = vmatpush1.msra.mxu0 0.0
          %2590 = vmatprep.subr.mxu0 0.0
          %2591 = vmatpush1.msra.mxu0 0.0
          %2592 = vmatprep.subr.mxu0 0.0
          %2593 = vmatpush1.msra.mxu0 0.0
          %2594 = vmatprep.subr.mxu0 0.0
          %2595 = vmatpush1.msra.mxu0 0.0
          %2596 = vmatprep.subr.mxu0 0.0
          %2597 = vmatpush1.msra.mxu0 0.0
          %2598 = vmatprep.subr.mxu0 0.0
          %2599 = vmatpush1.msra.mxu0 0.0
          %2600 = vmatprep.subr.mxu0 0.0
          %2601 = vmatpush1.msra.mxu0 0.0
          %2602 = vmatprep.subr.mxu0 0.0
          %2603 = vmatpush1.msra.mxu0 0.0
          %2604 = vmatprep.subr.mxu0 0.0
          %2605 = vmatpush1.msra.mxu0 0.0
          %2606 = vmatprep.subr.mxu0 0.0
          %2607 = vmatpush1.msra.mxu0 0.0
          %2608 = vmatprep.subr.mxu0 0.0
          %2609 = vmatpush1.msra.mxu0 0.0
          %2610 = vmatprep.subr.mxu0 0.0
          %2611 = vmatpush1.msra.mxu0 0.0
          %2612 = vmatprep.subr.mxu0 0.0
          %2613 = vmatpush1.msra.mxu0 0.0
          %2614 = vmatprep.subr.mxu0 0.0
          %2615 = vmatpush1.msra.mxu0 0.0
          %2616 = vmatprep.subr.mxu0 0.0
          %2617 = vmatpush1.msra.mxu0 0.0
          %2618 = vmatprep.subr.mxu0 0.0
          %2619 = vmatpush1.msra.mxu0 0.0
          %2620 = vmatprep.mubr.f32.mxu0 0.0
          %2621 = vmatmul.mubr.f32.gmra.mrb[0].mxu0 %v2372
          %v2622 = vpop.f32.mrb[0].mxu0
          %v2623 = vadd.f32 %v2518, %v2622
          %v2624 = vpop.f32.mrb[0].mxu0
          %2625 = vmatprep.mubr.f32.mxu0 0.0
          %2626 = vmatmul.mubr.f32.gmra.mrb[0].mxu0 %v2375
          %v2627 = vpop.f32.mrb[0].mxu0
          %v2628 = vadd.f32 %v2523, %v2627
          %v2629 = vpop.f32.mrb[0].mxu0
          %2630 = vmatprep.mubr.f32.mxu0 0.0
          %2631 = vmatmul.mubr.f32.gmra.mrb[0].mxu0 %v2378
          %v2632 = vpop.f32.mrb[0].mxu0
          %v2633 = vadd.f32 %v2528, %v2632
          %v2634 = vpop.f32.mrb[0].mxu0
          %2635 = vmatprep.mubr.f32.mxu0 0.0
          %2636 = vmatmul.mubr.f32.gmra.mrb[0].mxu0 %v2381
          %v2637 = vpop.f32.mrb[0].mxu0
          %v2638 = vadd.f32 %v2533, %v2637
          %v2639 = vpop.f32.mrb[0].mxu0
          %2640 = vmatprep.mubr.f32.mxu0 0.0
          %2641 = vmatmul.mubr.f32.gmra.mrb[0].mxu0 %v2384
          %v2642 = vpop.f32.mrb[0].mxu0
          %v2643 = vadd.f32 %v2538, %v2642
          %v2644 = vpop.f32.mrb[0].mxu0
          %2645 = vmatprep.mubr.f32.mxu0 0.0
          %2646 = vmatmul.mubr.f32.gmra.mrb[0].mxu0 %v2387
          %v2647 = vpop.f32.mrb[0].mxu0
          %v2648 = vadd.f32 %v2543, %v2647
          %v2649 = vpop.f32.mrb[0].mxu0
          %2650 = vmatprep.mubr.f32.mxu0 0.0
          %2651 = vmatmul.mubr.f32.gmra.mrb[0].mxu0 %v2390
          %v2652 = vpop.f32.mrb[0].mxu0
          %v2653 = vadd.f32 %v2548, %v2652
          %v2654 = vpop.f32.mrb[0].mxu0
          %2655 = vmatprep.mubr.f32.mxu0 0.0
          %2656 = vmatmul.mubr.f32.gmra.mrb[0].mxu0 %v2393
          %v2657 = vpop.f32.mrb[0].mxu0
          %v2658 = vadd.f32 %v2553, %v2657
          %v2659 = vpop.f32.mrb[0].mxu0
          %2660 = vdwg.mxu0
          %v2661 = vld [vmem:[#allocation4] sm:$0xff]
          %v2662 = vld [vmem:[#allocation4 + $0x8] sm:$0xff]
          %v2663 = vld [vmem:[#allocation4 + $0x10] sm:$0xff]
          %v2664 = vld [vmem:[#allocation4 + $0x18] sm:$0xff]
          %v2665 = vld [vmem:[#allocation4 + $0x20] sm:$0xff]
          %v2666 = vld [vmem:[#allocation4 + $0x28] sm:$0xff]
          %v2667 = vld [vmem:[#allocation4 + $0x30] sm:$0xff]
          %v2668 = vld [vmem:[#allocation4 + $0x38] sm:$0xff]
          %v2669 = vadd.f32 %v2661, %v2623
          %v2670 = vadd.f32 %v2662, %v2628
          %v2671 = vadd.f32 %v2663, %v2633
          %v2672 = vadd.f32 %v2664, %v2638
          %v2673 = vadd.f32 %v2665, %v2643
          %v2674 = vadd.f32 %v2666, %v2648
          %v2675 = vadd.f32 %v2667, %v2653
          %v2676 = vadd.f32 %v2668, %v2658
          %2677 = vst [vmem:[#allocation4] sm:$0xff] %v2669
          %2678 = vst [vmem:[#allocation4 + $0x8] sm:$0xff] %v2670
          %2679 = vst [vmem:[#allocation4 + $0x10] sm:$0xff] %v2671
          %2680 = vst [vmem:[#allocation4 + $0x18] sm:$0xff] %v2672
          %2681 = vst [vmem:[#allocation4 + $0x20] sm:$0xff] %v2673
          %2682 = vst [vmem:[#allocation4 + $0x28] sm:$0xff] %v2674
          %2683 = vst [vmem:[#allocation4 + $0x30] sm:$0xff] %v2675
          %2684 = vst [vmem:[#allocation4 + $0x38] sm:$0xff] %v2676
          %v2685 = vld [vmem:[#allocation4] sm:$0xff]
          %v2686 = vld [vmem:[#allocation4 + $0x8] sm:$0xff]
          %v2687 = vld [vmem:[#allocation4 + $0x10] sm:$0xff]
          %v2688 = vld [vmem:[#allocation4 + $0x18] sm:$0xff]
          %v2689 = vld [vmem:[#allocation4 + $0x20] sm:$0xff]
          %v2690 = vld [vmem:[#allocation4 + $0x28] sm:$0xff]
          %v2691 = vld [vmem:[#allocation4 + $0x30] sm:$0xff]
          %v2692 = vld [vmem:[#allocation4 + $0x38] sm:$0xff]
          %v2693 = vld [vmem:[%s4] sm:$0x1]
          %v2695 = vlaneseq
          %v2696 = vshrl.u32 %v2695, 7
          %v2697 = vsub.s32 0, %v2696
          %v2698 = vrot.slane %v2693, %v2697
          %v2700 = vadd.f32 %v2685, %v2698
          %v2701 = vadd.f32 %v2686, %v2698
          %v2702 = vadd.f32 %v2687, %v2698
          %v2703 = vadd.f32 %v2688, %v2698
          %v2704 = vadd.f32 %v2689, %v2698
          %v2705 = vadd.f32 %v2690, %v2698
          %v2706 = vadd.f32 %v2691, %v2698
          %v2707 = vadd.f32 %v2692, %v2698
          %v2708 = vld [vmem:[%s284] sm:$0xff]
          %v2709 = vld [vmem:[%s284 + $0x8] sm:$0xff]
          %v2710 = vld [vmem:[%s284 + $0x10] sm:$0xff]
          %v2711 = vld [vmem:[%s284 + $0x18] sm:$0xff]
          %v2712 = vld [vmem:[%s284 + $0x20] sm:$0xff]
          %v2713 = vld [vmem:[%s284 + $0x28] sm:$0xff]
          %v2714 = vld [vmem:[%s284 + $0x30] sm:$0xff]
          %v2715 = vld [vmem:[%s284 + $0x38] sm:$0xff]
          %v2716 = vadd.f32 %v2700, %v2708
          %v2717 = vadd.f32 %v2701, %v2709
          %v2718 = vadd.f32 %v2702, %v2710
          %v2719 = vadd.f32 %v2703, %v2711
          %v2720 = vadd.f32 %v2704, %v2712
          %v2721 = vadd.f32 %v2705, %v2713
          %v2722 = vadd.f32 %v2706, %v2714
          %v2723 = vadd.f32 %v2707, %v2715
          %v2724 = vmax.f32 %v2716, 0.0
          %v2725 = vmax.f32 %v2717, 0.0
          %v2726 = vmax.f32 %v2718, 0.0
          %v2727 = vmax.f32 %v2719, 0.0
          %v2728 = vmax.f32 %v2720, 0.0
          %v2729 = vmax.f32 %v2721, 0.0
          %v2730 = vmax.f32 %v2722, 0.0
          %v2731 = vmax.f32 %v2723, 0.0
          %s2732 = scalar_lea.vmem %s261, %s283
          %2733 = vst [vmem:[%s2732] sm:$0xff] %v2724
          %2734 = vst [vmem:[%s2732 + $0x8] sm:$0xff] %v2725
          %2735 = vst [vmem:[%s2732 + $0x10] sm:$0xff] %v2726
          %2736 = vst [vmem:[%s2732 + $0x18] sm:$0xff] %v2727
          %2737 = vst [vmem:[%s2732 + $0x20] sm:$0xff] %v2728
          %2738 = vst [vmem:[%s2732 + $0x28] sm:$0xff] %v2729
          %2739 = vst [vmem:[%s2732 + $0x30] sm:$0xff] %v2730
          %2740 = vst [vmem:[%s2732 + $0x38] sm:$0xff] %v2731
        $region53: #{resblock_forward.1} parent=39 // loop_footer
          %s268 = sadd.s32 1, %s264
        $region54: #{resblock_forward.1} parent=39 // loop_footer_branch
          %263 = sbr.rel target = $region50
        $region55: #{resblock_forward.1} parent=39 // loop_exit
          _
        %s2741 = smul.u32 2, %s18
        %p2742 = scmp.lt.s32.totalorder %s2741, 3
        %s2743 = scalar_select %p2742, %s2741, 3
        %s2744 = smul.addr %s2743, 8
        %s2745 = smul.addr %s2744, 8
        %s2746 = scalar_lea.vmem %s5, %s2745
        // Predicated region
        $region56: #{resblock_forward.1} parent=39 // pred_check
          %p2747 = pneg %p146
        $region57: #{resblock_forward.1} parent=39 // pred_check_branch
          %2749 = sbr.rel (%p2747) target = $region59
        $region58: #{resblock_forward.1} parent=39 // pred_region
          %s2750 = smul.u32 2, %s18
        $region59: #{resblock_forward.1} parent=39 // pred_fallthru
          _
      $region40: #{resblock_forward.1} parent=5 // pred_fallthru
        _
      %p2751 = scmp.le.s32.totalorder 2, %s13
      // Predicated region
      $region60: #{resblock_forward.1} parent=5 // pred_check
        %p2752 = pneg %p2751
      $region61: #{resblock_forward.1} parent=5 // pred_check_branch
        %2754 = sbr.rel (%p2752) target = $region63
      $region62: #{resblock_forward.1} parent=5 // pred_region
        %s2755 = ssub.s32 %s13, 2
        // Predicated region
        $region64: #{resblock_forward.1} parent=62 // pred_check
          %p2756 = pneg %p152
        $region65: #{resblock_forward.1} parent=62 // pred_check_branch
          %2758 = sbr.rel (%p2756) target = $region67
        $region66: #{resblock_forward.1} parent=62 // pred_region
          %s2759 = smul.u32 2, %s19
          %p2760 = scmp.lt.s32.totalorder %s2759, 3
          %s2761 = scalar_select %p2760, %s2759, 3
          %s2762 = smul.addr %s2761, 8
          %s2763 = smul.addr %s2762, 8
          %s2764 = scalar_lea.vmem %s5, %s2763
        $region67: #{resblock_forward.1} parent=62 // pred_fallthru
          _
      $region63: #{resblock_forward.1} parent=5 // pred_fallthru
        _
    $region6: #{resblock_forward.1} parent=1 // loop_footer
      %s17 = sadd.s32 1, %s13
    $region7: #{resblock_forward.1} parent=1 // loop_footer_branch
      %12 = sbr.rel target = $region3
    $region8: #{resblock_forward.1} parent=1 // loop_exit
      _
    %2765 = vsyncpa [#allocation6], 1
    %s2766 = scalar_lea.sflag [#allocation6], 1
    %2767 = vsyncpa %s2766, 1
    %2768 = vsyncpa [#allocation8], 1

</llo_original>
